<compile_context>
chip_gen: v6e
topology: v6e:2x2x1
jax: 0.10.0
libtpu: 0.0.40
codegen_flags: <defaults>
</compile_context>

<pallas_src>
import functools

import jax
import jax.numpy as jnp
from jax.experimental import pallas as pl
from jax.experimental.pallas import tpu as pltpu


def _round_up(x: int, m: int) -> int:
    return -(-x // m) * m


def _tile_vmem_bytes(th: int, W: int, cin: int, cout: int, cout_total: int,
                     itemsize: int) -> int:
    """Padded-layout VMEM estimate for one grid step (incl. double buffering)."""
    lane, sub = 128, 8
    in_tile = (th + 2) * _round_up(W + 2, sub) * _round_up(cin, lane) * itemsize
    out_tile = th * _round_up(W, sub) * _round_up(cout_total, lane) * itemsize
    w_tile = 9 * _round_up(cin, sub) * _round_up(cout, lane) * itemsize
    acc = th * _round_up(W, sub) * _round_up(cout, lane) * 4  # f32 accumulator
    # 2x for Pallas double-buffering of in/out blocks, plus a few live temporaries.
    return 2 * (in_tile + out_tile) + w_tile + 3 * acc


def _pick_tile_h(H: int, W: int, cin: int, cout: int, cout_total: int,
                 itemsize: int, budget_bytes: int = 12 << 20) -> int:
    """Largest H-tile dividing H whose padded working set fits the VMEM budget."""
    cands = [t for t in (256, 128, 64, 32, 16, 8) if t <= H and H % t == 0]
    for th in cands:
        if _tile_vmem_bytes(th, W, cin, cout, cout_total, itemsize) <= budget_bytes:
            return th
    return cands[-1] if cands else H


def _skip_conv_kernel(xs_ref, w_ref, b_ref, out_ref, *, mode: str, tile_h: int,
                      width: int, matmul_dtype):
    """Grid = (batch, H-tiles); no cross-step state (both axes parallel).

    xs_ref:  (TH+2, W+2, Cin)  halo slab for this tile (already zero-padded)
    w_ref:   (9, Cin, Cout)    conv weights, row = 3*dh + dw
    b_ref:   (1, Cout)         conv bias
    out_ref: (TH, W, Ct)       Ct = Cin+Cout for 'cat', else Cout
    """
    TH, W = tile_h, width
    Cin = xs_ref.shape[-1]
    Cout = w_ref.shape[-1]

    # Center tap == the skip-branch values; load once, reuse for both.
    x_center = xs_ref[1:1 + TH, 1:1 + W, :]                         # (TH, W, Cin)

    # 3x3 conv as 9 accumulating K=Cin matmuls into an f32 accumulator.
    # (TH, W, Cin) -> (TH*W, Cin) is layout-preserving when W % 8 == 0.
    acc = jnp.zeros((TH * W, Cout), jnp.float32)
    for dh in range(3):
        for dw in range(3):
            if dh == 1 and dw == 1:
                tap = x_center
            else:
                tap = xs_ref[dh:dh + TH, dw:dw + W, :]               # (TH, W, Cin)
            tap2d = tap.reshape(TH * W, Cin)
            wk = w_ref[3 * dh + dw]                                  # (Cin, Cout)
            if matmul_dtype is not None:
                tap2d = tap2d.astype(matmul_dtype)
                wk = wk.astype(matmul_dtype)
            acc = acc + jnp.dot(tap2d, wk, preferred_element_type=jnp.float32)

    # bias + ReLU in f32, then back to (TH, W, Cout)
    y = jnp.maximum(acc + b_ref[...], 0.0).reshape(TH, W, Cout)

    if mode == "cat":
        # PyTorch cat dim=1 (channels, NCHW) == last axis in NHWC; single full store.
        out_ref[...] = jnp.concatenate(
            [x_center.astype(out_ref.dtype), y.astype(out_ref.dtype)], axis=-1)
    elif mode == "add":
        out_ref[...] = (x_center.astype(jnp.float32) + y).astype(out_ref.dtype)
    else:  # "mul"
        out_ref[...] = (x_center.astype(jnp.float32) * y).astype(out_ref.dtype)


def skip_connection_forward(x_nchw, w, b, *, mode: str = "cat",
                            tile_h: int | None = None, matmul_dtype=None):
    """SkipConnection.forward with submodule = Conv2d(Cin, Cout, 3, padding=1) + ReLU.

    x_nchw: (N, Cin, H, W)   -- PyTorch layout.
    w:      (3, 3, Cin, Cout) (HWIO)
    b:      (Cout,)
    Returns (N, Cin+Cout, H, W) for 'cat', (N, Cout, H, W) for 'add'/'mul'.
    """
    N, Cin, H, W = x_nchw.shape
    assert w.shape[:3] == (3, 3, Cin), w.shape
    Cout = w.shape[3]
    if mode not in ("cat", "add", "mul"):
        raise NotImplementedError(f"Unsupported mode {mode}.")
    if mode in ("add", "mul"):
        assert Cin == Cout, "add/mul modes require matching channel counts"

    Ct = Cin + Cout if mode == "cat" else Cout
    itemsize = jnp.dtype(x_nchw.dtype).itemsize

    if tile_h is None:
        tile_h = _pick_tile_h(H, W, Cin, Cout, Ct, itemsize)
    assert H % tile_h == 0
    n_h = H // tile_h

    # NHWC, 'same'-pad once, then duplicate the 1-row halos per H-tile in HBM so the
    # kernel's input block is a plain, non-overlapping (TH+2, W+2, Cin) slab that the
    # Pallas pipeline double-buffers automatically (cost: ~(TH+2)/TH extra read).
    x = jnp.transpose(x_nchw, (0, 2, 3, 1))                          # (N, H, W, Cin)
    x_pad = jnp.pad(x, ((0, 0), (1, 1), (1, 1), (0, 0)))             # (N, H+2, W+2, Cin)
    x_tiles = jnp.stack(
        [x_pad[:, h * tile_h: h * tile_h + tile_h + 2] for h in range(n_h)],
        axis=1)                                                      # (N, n_h, TH+2, W+2, Cin)

    w_taps = w.reshape(9, Cin, Cout)                                 # row = 3*dh + dw
    b2 = b.reshape(1, Cout)

    vmem_limit = int(min(max(4 * _tile_vmem_bytes(tile_h, W, Cin, Cout, Ct, itemsize),
                             32 << 20), 48 << 20))

    kernel = functools.partial(_skip_conv_kernel, mode=mode, tile_h=tile_h,
                               width=W, matmul_dtype=matmul_dtype)

    out_nhwc = pl.pallas_call(
        kernel,
        out_shape=jax.ShapeDtypeStruct((N, H, W, Ct), x.dtype),
        grid=(N, n_h),
        in_specs=[
            pl.BlockSpec((None, None, tile_h + 2, W + 2, Cin),
                         lambda n, h: (n, h, 0, 0, 0)),
            pl.BlockSpec((9, Cin, Cout), lambda n, h: (0, 0, 0)),
            pl.BlockSpec((1, Cout), lambda n, h: (0, 0)),
        ],
        out_specs=pl.BlockSpec((None, tile_h, W, Ct), lambda n, h: (n, h, 0, 0)),
        compiler_params=pltpu.CompilerParams(
            dimension_semantics=("parallel", "parallel"),
            vmem_limit_bytes=vmem_limit),
    )(x_tiles, w_taps, b2)

    return jnp.transpose(out_nhwc, (0, 3, 1, 2))                     # back to NCHW


def _reference(x_nchw, w, b, *, mode="cat"):
    """Plain-JAX reference for numerical validation."""
    x = jnp.transpose(x_nchw, (0, 2, 3, 1))
    y = jax.lax.conv_general_dilated(
        x, w, window_strides=(1, 1), padding="SAME",
        dimension_numbers=("NHWC", "HWIO", "NHWC"))
    y = jnp.maximum(y + b[None, None, None, :], 0.0)
    if mode == "cat":
        out = jnp.concatenate([x, y], axis=-1)
    elif mode == "add":
        out = x + y
    else:
        out = x * y
    return jnp.transpose(out, (0, 3, 1, 2))


if __name__ == "__main__":
    key = jax.random.PRNGKey(0)
    k_x, k_w, k_b = jax.random.split(key, 3)

    N, C, H, W = 2, 4, 16, 16
    x = jax.random.normal(k_x, (N, C, H, W), dtype=jnp.float32)

    # Deterministic submodule params: Conv2d(C, C, kernel_size=3, padding=1)
    fan_in = C * 3 * 3
    w = jax.random.normal(k_w, (3, 3, C, C), dtype=jnp.float32) / jnp.sqrt(fan_in)
    b = jax.random.normal(k_b, (C,), dtype=jnp.float32) * 0.1

    out = jax.block_until_ready(skip_connection_forward(x, w, b, mode="cat"))
    ref = _reference(x, w, b, mode="cat")
    assert out.shape == (N, 2 * C, H, W), out.shape
    assert jnp.allclose(out, ref, atol=1e-4, rtol=1e-4), "cat mismatch vs reference"

    # exercise 'add' and 'mul' modes too (same channel count required)
    out_add = jax.block_until_ready(skip_connection_forward(x, w, b, mode="add"))
    assert jnp.allclose(out_add, _reference(x, w, b, mode="add"), atol=1e-4, rtol=1e-4)
    out_mul = jax.block_until_ready(skip_connection_forward(x, w, b, mode="mul"))
    assert jnp.allclose(out_mul, _reference(x, w, b, mode="mul"), atol=1e-4, rtol=1e-4)

    print("KERNEL_OK")
</pallas_src>

<mosaic_0001>
module attributes {stable_mosaic.version = 11 : i64} {
  func.func @_skip_conv_kernel(%arg0: i32, %arg1: i32, %arg2: memref<1x1x18x18x4xf32, #tpu.memory_space<vmem>>, %arg3: memref<9x4x4xf32, #tpu.memory_space<vmem>>, %arg4: memref<1x4xf32, #tpu.memory_space<vmem>>, %arg5: memref<1x16x16x8xf32, #tpu.memory_space<vmem>>) attributes {dimension_semantics = [#tpu.dimension_semantics<parallel>, #tpu.dimension_semantics<parallel>], iteration_bounds = array<i64: 2, 1>, scalar_prefetch = 0 : i64, scratch_operands = 0 : i64, tpu.core_type = #tpu.core_type<tc>, window_params = [{transform_indices = @transform_0, window_bounds = array<i64: 1, 1, 18, 18, 4>}, {pipeline_mode = #tpu.pipeline_mode<synchronous>, transform_indices = @transform_1, window_bounds = array<i64: 9, 4, 4>}, {pipeline_mode = #tpu.pipeline_mode<synchronous>, transform_indices = @transform_2, window_bounds = array<i64: 1, 4>}, {transform_indices = @transform_3, window_bounds = array<i64: 1, 16, 16, 8>}]} {
    %c0 = arith.constant 0 : index
    %c0_0 = arith.constant 0 : index
    %c1 = arith.constant 1 : index
    %c1_1 = arith.constant 1 : index
    %c0_2 = arith.constant 0 : index
    %0 = vector.load %arg2[%c0, %c0_0, %c1, %c1_1, %c0_2] : memref<1x1x18x18x4xf32, #tpu.memory_space<vmem>>, vector<1x1x16x16x4xf32>
    %1 = vector.shape_cast %0 : vector<1x1x16x16x4xf32> to vector<16x16x4xf32>
    %cst = arith.constant 0.000000e+00 : f32
    %2 = vector.broadcast %cst : f32 to vector<256x4xf32>
    %c0_3 = arith.constant 0 : index
    %c0_4 = arith.constant 0 : index
    %c0_5 = arith.constant 0 : index
    %c0_6 = arith.constant 0 : index
    %c0_7 = arith.constant 0 : index
    %3 = vector.load %arg2[%c0_3, %c0_4, %c0_5, %c0_6, %c0_7] : memref<1x1x18x18x4xf32, #tpu.memory_space<vmem>>, vector<1x1x16x16x4xf32>
    %4 = vector.shape_cast %3 : vector<1x1x16x16x4xf32> to vector<16x16x4xf32>
    %5 = vector.shape_cast %4 : vector<16x16x4xf32> to vector<256x4xf32>
    %c0_8 = arith.constant 0 : index
    %c0_9 = arith.constant 0 : index
    %c0_10 = arith.constant 0 : index
    %6 = vector.load %arg3[%c0_8, %c0_9, %c0_10] : memref<9x4x4xf32, #tpu.memory_space<vmem>>, vector<1x4x4xf32>
    %7 = vector.shape_cast %6 : vector<1x4x4xf32> to vector<4x4xf32>
    %cst_11 = arith.constant dense<0.000000e+00> : vector<256x4xf32>
    %8 = tpu.matmul %5, %7, %cst_11 {dimension_numbers = #tpu.dot_dimension_numbers<[1], [0], [0], [1], [0, 0, 1, 1], [], []>} : vector<256x4xf32>, vector<4x4xf32>, vector<256x4xf32> -> vector<256x4xf32>
    %9 = arith.addf %2, %8 : vector<256x4xf32>
    %c0_12 = arith.constant 0 : index
    %c0_13 = arith.constant 0 : index
    %c0_14 = arith.constant 0 : index
    %c1_15 = arith.constant 1 : index
    %c0_16 = arith.constant 0 : index
    %10 = vector.load %arg2[%c0_12, %c0_13, %c0_14, %c1_15, %c0_16] : memref<1x1x18x18x4xf32, #tpu.memory_space<vmem>>, vector<1x1x16x16x4xf32>
    %11 = vector.shape_cast %10 : vector<1x1x16x16x4xf32> to vector<16x16x4xf32>
    %12 = vector.shape_cast %11 : vector<16x16x4xf32> to vector<256x4xf32>
    %c1_17 = arith.constant 1 : index
    %c0_18 = arith.constant 0 : index
    %c0_19 = arith.constant 0 : index
    %13 = vector.load %arg3[%c1_17, %c0_18, %c0_19] : memref<9x4x4xf32, #tpu.memory_space<vmem>>, vector<1x4x4xf32>
    %14 = vector.shape_cast %13 : vector<1x4x4xf32> to vector<4x4xf32>
    %cst_20 = arith.constant dense<0.000000e+00> : vector<256x4xf32>
    %15 = tpu.matmul %12, %14, %cst_20 {dimension_numbers = #tpu.dot_dimension_numbers<[1], [0], [0], [1], [0, 0, 1, 1], [], []>} : vector<256x4xf32>, vector<4x4xf32>, vector<256x4xf32> -> vector<256x4xf32>
    %16 = arith.addf %9, %15 : vector<256x4xf32>
    %c0_21 = arith.constant 0 : index
    %c0_22 = arith.constant 0 : index
    %c0_23 = arith.constant 0 : index
    %c2 = arith.constant 2 : index
    %c0_24 = arith.constant 0 : index
    %17 = vector.load %arg2[%c0_21, %c0_22, %c0_23, %c2, %c0_24] : memref<1x1x18x18x4xf32, #tpu.memory_space<vmem>>, vector<1x1x16x16x4xf32>
    %18 = vector.shape_cast %17 : vector<1x1x16x16x4xf32> to vector<16x16x4xf32>
    %19 = vector.shape_cast %18 : vector<16x16x4xf32> to vector<256x4xf32>
    %c2_25 = arith.constant 2 : index
    %c0_26 = arith.constant 0 : index
    %c0_27 = arith.constant 0 : index
    %20 = vector.load %arg3[%c2_25, %c0_26, %c0_27] : memref<9x4x4xf32, #tpu.memory_space<vmem>>, vector<1x4x4xf32>
    %21 = vector.shape_cast %20 : vector<1x4x4xf32> to vector<4x4xf32>
    %cst_28 = arith.constant dense<0.000000e+00> : vector<256x4xf32>
    %22 = tpu.matmul %19, %21, %cst_28 {dimension_numbers = #tpu.dot_dimension_numbers<[1], [0], [0], [1], [0, 0, 1, 1], [], []>} : vector<256x4xf32>, vector<4x4xf32>, vector<256x4xf32> -> vector<256x4xf32>
    %23 = arith.addf %16, %22 : vector<256x4xf32>
    %c0_29 = arith.constant 0 : index
    %c0_30 = arith.constant 0 : index
    %c1_31 = arith.constant 1 : index
    %c0_32 = arith.constant 0 : index
    %c0_33 = arith.constant 0 : index
    %24 = vector.load %arg2[%c0_29, %c0_30, %c1_31, %c0_32, %c0_33] : memref<1x1x18x18x4xf32, #tpu.memory_space<vmem>>, vector<1x1x16x16x4xf32>
    %25 = vector.shape_cast %24 : vector<1x1x16x16x4xf32> to vector<16x16x4xf32>
    %26 = vector.shape_cast %25 : vector<16x16x4xf32> to vector<256x4xf32>
    %c3 = arith.constant 3 : index
    %c0_34 = arith.constant 0 : index
    %c0_35 = arith.constant 0 : index
    %27 = vector.load %arg3[%c3, %c0_34, %c0_35] : memref<9x4x4xf32, #tpu.memory_space<vmem>>, vector<1x4x4xf32>
    %28 = vector.shape_cast %27 : vector<1x4x4xf32> to vector<4x4xf32>
    %cst_36 = arith.constant dense<0.000000e+00> : vector<256x4xf32>
    %29 = tpu.matmul %26, %28, %cst_36 {dimension_numbers = #tpu.dot_dimension_numbers<[1], [0], [0], [1], [0, 0, 1, 1], [], []>} : vector<256x4xf32>, vector<4x4xf32>, vector<256x4xf32> -> vector<256x4xf32>
    %30 = arith.addf %23, %29 : vector<256x4xf32>
    %31 = vector.shape_cast %1 : vector<16x16x4xf32> to vector<256x4xf32>
    %c4 = arith.constant 4 : index
    %c0_37 = arith.constant 0 : index
    %c0_38 = arith.constant 0 : index
    %32 = vector.load %arg3[%c4, %c0_37, %c0_38] : memref<9x4x4xf32, #tpu.memory_space<vmem>>, vector<1x4x4xf32>
    %33 = vector.shape_cast %32 : vector<1x4x4xf32> to vector<4x4xf32>
    %cst_39 = arith.constant dense<0.000000e+00> : vector<256x4xf32>
    %34 = tpu.matmul %31, %33, %cst_39 {dimension_numbers = #tpu.dot_dimension_numbers<[1], [0], [0], [1], [0, 0, 1, 1], [], []>} : vector<256x4xf32>, vector<4x4xf32>, vector<256x4xf32> -> vector<256x4xf32>
    %35 = arith.addf %30, %34 : vector<256x4xf32>
    %c0_40 = arith.constant 0 : index
    %c0_41 = arith.constant 0 : index
    %c1_42 = arith.constant 1 : index
    %c2_43 = arith.constant 2 : index
    %c0_44 = arith.constant 0 : index
    %36 = vector.load %arg2[%c0_40, %c0_41, %c1_42, %c2_43, %c0_44] : memref<1x1x18x18x4xf32, #tpu.memory_space<vmem>>, vector<1x1x16x16x4xf32>
    %37 = vector.shape_cast %36 : vector<1x1x16x16x4xf32> to vector<16x16x4xf32>
    %38 = vector.shape_cast %37 : vector<16x16x4xf32> to vector<256x4xf32>
    %c5 = arith.constant 5 : index
    %c0_45 = arith.constant 0 : index
    %c0_46 = arith.constant 0 : index
    %39 = vector.load %arg3[%c5, %c0_45, %c0_46] : memref<9x4x4xf32, #tpu.memory_space<vmem>>, vector<1x4x4xf32>
    %40 = vector.shape_cast %39 : vector<1x4x4xf32> to vector<4x4xf32>
    %cst_47 = arith.constant dense<0.000000e+00> : vector<256x4xf32>
    %41 = tpu.matmul %38, %40, %cst_47 {dimension_numbers = #tpu.dot_dimension_numbers<[1], [0], [0], [1], [0, 0, 1, 1], [], []>} : vector<256x4xf32>, vector<4x4xf32>, vector<256x4xf32> -> vector<256x4xf32>
    %42 = arith.addf %35, %41 : vector<256x4xf32>
    %c0_48 = arith.constant 0 : index
    %c0_49 = arith.constant 0 : index
    %c2_50 = arith.constant 2 : index
    %c0_51 = arith.constant 0 : index
    %c0_52 = arith.constant 0 : index
    %43 = vector.load %arg2[%c0_48, %c0_49, %c2_50, %c0_51, %c0_52] : memref<1x1x18x18x4xf32, #tpu.memory_space<vmem>>, vector<1x1x16x16x4xf32>
    %44 = vector.shape_cast %43 : vector<1x1x16x16x4xf32> to vector<16x16x4xf32>
    %45 = vector.shape_cast %44 : vector<16x16x4xf32> to vector<256x4xf32>
    %c6 = arith.constant 6 : index
    %c0_53 = arith.constant 0 : index
    %c0_54 = arith.constant 0 : index
    %46 = vector.load %arg3[%c6, %c0_53, %c0_54] : memref<9x4x4xf32, #tpu.memory_space<vmem>>, vector<1x4x4xf32>
    %47 = vector.shape_cast %46 : vector<1x4x4xf32> to vector<4x4xf32>
    %cst_55 = arith.constant dense<0.000000e+00> : vector<256x4xf32>
    %48 = tpu.matmul %45, %47, %cst_55 {dimension_numbers = #tpu.dot_dimension_numbers<[1], [0], [0], [1], [0, 0, 1, 1], [], []>} : vector<256x4xf32>, vector<4x4xf32>, vector<256x4xf32> -> vector<256x4xf32>
    %49 = arith.addf %42, %48 : vector<256x4xf32>
    %c0_56 = arith.constant 0 : index
    %c0_57 = arith.constant 0 : index
    %c2_58 = arith.constant 2 : index
    %c1_59 = arith.constant 1 : index
    %c0_60 = arith.constant 0 : index
    %50 = vector.load %arg2[%c0_56, %c0_57, %c2_58, %c1_59, %c0_60] : memref<1x1x18x18x4xf32, #tpu.memory_space<vmem>>, vector<1x1x16x16x4xf32>
    %51 = vector.shape_cast %50 : vector<1x1x16x16x4xf32> to vector<16x16x4xf32>
    %52 = vector.shape_cast %51 : vector<16x16x4xf32> to vector<256x4xf32>
    %c7 = arith.constant 7 : index
    %c0_61 = arith.constant 0 : index
    %c0_62 = arith.constant 0 : index
    %53 = vector.load %arg3[%c7, %c0_61, %c0_62] : memref<9x4x4xf32, #tpu.memory_space<vmem>>, vector<1x4x4xf32>
    %54 = vector.shape_cast %53 : vector<1x4x4xf32> to vector<4x4xf32>
    %cst_63 = arith.constant dense<0.000000e+00> : vector<256x4xf32>
    %55 = tpu.matmul %52, %54, %cst_63 {dimension_numbers = #tpu.dot_dimension_numbers<[1], [0], [0], [1], [0, 0, 1, 1], [], []>} : vector<256x4xf32>, vector<4x4xf32>, vector<256x4xf32> -> vector<256x4xf32>
    %56 = arith.addf %49, %55 : vector<256x4xf32>
    %c0_64 = arith.constant 0 : index
    %c0_65 = arith.constant 0 : index
    %c2_66 = arith.constant 2 : index
    %c2_67 = arith.constant 2 : index
    %c0_68 = arith.constant 0 : index
    %57 = vector.load %arg2[%c0_64, %c0_65, %c2_66, %c2_67, %c0_68] : memref<1x1x18x18x4xf32, #tpu.memory_space<vmem>>, vector<1x1x16x16x4xf32>
    %58 = vector.shape_cast %57 : vector<1x1x16x16x4xf32> to vector<16x16x4xf32>
    %59 = vector.shape_cast %58 : vector<16x16x4xf32> to vector<256x4xf32>
    %c8 = arith.constant 8 : index
    %c0_69 = arith.constant 0 : index
    %c0_70 = arith.constant 0 : index
    %60 = vector.load %arg3[%c8, %c0_69, %c0_70] : memref<9x4x4xf32, #tpu.memory_space<vmem>>, vector<1x4x4xf32>
    %61 = vector.shape_cast %60 : vector<1x4x4xf32> to vector<4x4xf32>
    %cst_71 = arith.constant dense<0.000000e+00> : vector<256x4xf32>
    %62 = tpu.matmul %59, %61, %cst_71 {dimension_numbers = #tpu.dot_dimension_numbers<[1], [0], [0], [1], [0, 0, 1, 1], [], []>} : vector<256x4xf32>, vector<4x4xf32>, vector<256x4xf32> -> vector<256x4xf32>
    %63 = arith.addf %56, %62 : vector<256x4xf32>
    %c0_72 = arith.constant 0 : index
    %c0_73 = arith.constant 0 : index
    %64 = vector.load %arg4[%c0_72, %c0_73] : memref<1x4xf32, #tpu.memory_space<vmem>>, vector<1x4xf32>
    %65 = vector.broadcast %64 : vector<1x4xf32> to vector<256x4xf32>
    %66 = arith.addf %63, %65 : vector<256x4xf32>
    %cst_74 = arith.constant 0.000000e+00 : f32
    %67 = vector.broadcast %cst_74 : f32 to vector<256x4xf32>
    %68 = arith.maximumf %66, %67 : vector<256x4xf32>
    %69 = vector.shape_cast %68 : vector<256x4xf32> to vector<16x16x4xf32>
    %70 = tpu.concatenate %1, %69 in 2 : vector<16x16x4xf32>, vector<16x16x4xf32> -> vector<16x16x8xf32>
    %c0_75 = arith.constant 0 : index
    %c0_76 = arith.constant 0 : index
    %c0_77 = arith.constant 0 : index
    %c0_78 = arith.constant 0 : index
    %71 = vector.load %arg5[%c0_75, %c0_76, %c0_77, %c0_78] : memref<1x16x16x8xf32, #tpu.memory_space<vmem>>, vector<1x16x16x8xf32>
    %72 = vector.shape_cast %71 : vector<1x16x16x8xf32> to vector<16x16x8xf32>
    %73 = vector.shape_cast %70 : vector<16x16x8xf32> to vector<1x16x16x8xf32>
    tpu.vector_store %arg5[%c0_75, %c0_76, %c0_77, %c0_78], %73 {strides = array<i32>} : memref<1x16x16x8xf32, #tpu.memory_space<vmem>>, vector<1x16x16x8xf32>,
    return
  }
  func.func @transform_0(%arg0: i32, %arg1: i32) -> (i32, i32, i32, i32, i32) {
    %c0_i32 = arith.constant 0 : i32
    %c0_i32_0 = arith.constant 0 : i32
    %c0_i32_1 = arith.constant 0 : i32
    %c0_i32_2 = arith.constant 0 : i32
    return %arg0, %arg1, %c0_i32, %c0_i32_0, %c0_i32_1 : i32, i32, i32, i32, i32
  }
  func.func @transform_1(%arg0: i32, %arg1: i32) -> (i32, i32, i32) {
    %c0_i32 = arith.constant 0 : i32
    %c0_i32_0 = arith.constant 0 : i32
    %c0_i32_1 = arith.constant 0 : i32
    %c0_i32_2 = arith.constant 0 : i32
    return %c0_i32, %c0_i32_0, %c0_i32_1 : i32, i32, i32
  }
  func.func @transform_2(%arg0: i32, %arg1: i32) -> (i32, i32) {
    %c0_i32 = arith.constant 0 : i32
    %c0_i32_0 = arith.constant 0 : i32
    %c0_i32_1 = arith.constant 0 : i32
    return %c0_i32, %c0_i32_0 : i32, i32
  }
  func.func @transform_3(%arg0: i32, %arg1: i32) -> (i32, i32, i32, i32) {
    %c0_i32 = arith.constant 0 : i32
    %c0_i32_0 = arith.constant 0 : i32
    %c0_i32_1 = arith.constant 0 : i32
    return %arg0, %arg1, %c0_i32, %c0_i32_0 : i32, i32, i32, i32
  }
}

</mosaic_0001>

<llo_original>
// kernel: tpu_custom_call.1
$region0: #{tpu_custom_call.1}
  #allocation0 [shape = 'u32[]', space=smem, size = 0x4, offset = 0x4, fixed_abs, tag = 'smem constant byte address 0x4 - core index']
  #allocation1 [shape = 'u32[144,128]{1,0:T(1,128)}', space=vmem, size = 0x12000, scoped, tag = 'internal scratch']
  %s0 = inlined_call_operand.vmem [shape: f32[2,1,18,18,4], index: 0, kind: input, shape index: {}]
  %s1 = inlined_call_operand.vmem [shape: f32[9,4,4], index: 1, kind: input, shape index: {}]
  %s2 = inlined_call_operand.vmem [shape: f32[1,4], index: 2, kind: input, shape index: {}]
  %s3 = inlined_call_operand.vmem [shape: f32[2,16,16,8], index: 3, kind: output, shape index: {}]
  %s4 = sld [smem:[#allocation0]]
  $region45: #{tpu_custom_call.1} parent=0
    _
  %s6 = ssub.s32 1, %s4
  %s7 = scalar_select 0, %s6, %s4
  loop: start=0, step=1, limit=4
  $region2: #{tpu_custom_call.1} parent=0 // loop_pre_header
    _
  $region3: #{tpu_custom_call.1} parent=0 // loop_header
    %s9 = sphi 0, %s13
    %p10 = scmp.ge.s32.totalorder %s9, 4
    %s16 = sphi 0, %s28
    %s17 = sphi 0, %s24
    %s18 = sphi 0, %s16
    %s19 = sphi 0, %s17
    %s20 = sphi 0, %s18
    %s21 = sphi 0, %s19
    %s33 = sphi 0, %s35
    %s36 = sphi 0, %s33
    %s37 = sphi 0, %s36
    %s53 = sphi 0, %s37
    %s57 = sphi 0, %s57
    %s59 = sphi 0, %s57
    %s60 = sphi 0, %s59
    %s74 = sphi 0, %s60
    %s78 = sphi 0, %s78
    %s80 = sphi 0, %s78
    %s81 = sphi 0, %s80
    %s95 = sphi 0, %s81
    %s103 = sphi 0, %s105
    %s106 = sphi 0, %s103
    %s107 = sphi 0, %s106
    %s123 = sphi 0, %s107
  $region4: #{tpu_custom_call.1} parent=0 // loop_header_branch
    %12 = sbr.rel (%p10) target = $region8
  $region5: #{tpu_custom_call.1} parent=0 // loop_body
    %s14 = ssub.s32 %s9, 1
    %s15 = ssub.s32 %s9, 2
    %s22 = sadd.s32 1, %s17
    %p23 = scmp.ge.s32.totalorder %s22, 1
    %s24 = scalar_select %p23, 0, %s22
    %s25 = sadd.s32 1, %s16
    %s26 = scalar_select %p23, %s25, %s16
    %p27 = scmp.ge.s32.totalorder %s26, 2
    %s28 = scalar_select %p27, 0, %s26
    %s29 = ssub.s32 %s16, %s28
    %s30 = ssub.s32 %s17, %s24
    %s31 = sor.u32 %s29, %s30
    %p32 = scmp.eq.s32.totalorder %s31, 0
    %s34 = sadd.s32 %s33, 1
    %s35 = scalar_select %p32, %s33, %s34
    %p38 = pneg %p32
    %p39 = scmp.eq.s32.totalorder %s9, 1
    %p40 = por %p38, %p39
    %p41 = scmp.ne.s32.totalorder %s33, %s36
    %p42 = scmp.eq.s32.totalorder %s9, 0
    %p43 = por %p41, %p42
    %p44 = scmp.ne.s32.totalorder %s33, %s36
    %p45 = scmp.eq.s32.totalorder %s14, 1
    %p46 = por %p44, %p45
    %p47 = scmp.ne.s32.totalorder %s36, %s37
    %p48 = scmp.eq.s32.totalorder %s14, 0
    %p49 = por %p47, %p48
    %p50 = scmp.ne.s32.totalorder %s36, %s37
    %p51 = scmp.eq.s32.totalorder %s15, 1
    %p52 = por %p50, %p51
    %p54 = scmp.ne.s32.totalorder %s37, %s53
    %p55 = scmp.eq.s32.totalorder %s15, 0
    %p56 = por %p54, %p55
    %s58 = sadd.s32 %s57, 1
    %p61 = scmp.eq.s32.totalorder %s9, 1
    %p62 = scmp.ne.s32.totalorder %s57, %s59
    %p63 = scmp.eq.s32.totalorder %s9, 0
    %p64 = por %p62, %p63
    %p65 = scmp.ne.s32.totalorder %s57, %s59
    %p66 = scmp.eq.s32.totalorder %s14, 1
    %p67 = por %p65, %p66
    %p68 = scmp.ne.s32.totalorder %s59, %s60
    %p69 = scmp.eq.s32.totalorder %s14, 0
    %p70 = por %p68, %p69
    %p71 = scmp.ne.s32.totalorder %s59, %s60
    %p72 = scmp.eq.s32.totalorder %s15, 1
    %p73 = por %p71, %p72
    %p75 = scmp.ne.s32.totalorder %s60, %s74
    %p76 = scmp.eq.s32.totalorder %s15, 0
    %p77 = por %p75, %p76
    %s79 = sadd.s32 %s78, 1
    %p82 = scmp.eq.s32.totalorder %s9, 1
    %p83 = scmp.ne.s32.totalorder %s78, %s80
    %p84 = scmp.eq.s32.totalorder %s9, 0
    %p85 = por %p83, %p84
    %p86 = scmp.ne.s32.totalorder %s78, %s80
    %p87 = scmp.eq.s32.totalorder %s14, 1
    %p88 = por %p86, %p87
    %p89 = scmp.ne.s32.totalorder %s80, %s81
    %p90 = scmp.eq.s32.totalorder %s14, 0
    %p91 = por %p89, %p90
    %p92 = scmp.ne.s32.totalorder %s80, %s81
    %p93 = scmp.eq.s32.totalorder %s15, 1
    %p94 = por %p92, %p93
    %p96 = scmp.ne.s32.totalorder %s81, %s95
    %p97 = scmp.eq.s32.totalorder %s15, 0
    %p98 = por %p96, %p97
    %s99 = ssub.s32 %s16, %s28
    %s100 = ssub.s32 %s17, %s24
    %s101 = sor.u32 %s99, %s100
    %p102 = scmp.eq.s32.totalorder %s101, 0
    %s104 = sadd.s32 %s103, 1
    %s105 = scalar_select %p102, %s103, %s104
    %p108 = pneg %p102
    %p109 = scmp.eq.s32.totalorder %s9, 1
    %p110 = por %p108, %p109
    %p111 = scmp.ne.s32.totalorder %s103, %s106
    %p112 = scmp.eq.s32.totalorder %s9, 0
    %p113 = por %p111, %p112
    %p114 = scmp.ne.s32.totalorder %s103, %s106
    %p115 = scmp.eq.s32.totalorder %s14, 1
    %p116 = por %p114, %p115
    %p117 = scmp.ne.s32.totalorder %s106, %s107
    %p118 = scmp.eq.s32.totalorder %s14, 0
    %p119 = por %p117, %p118
    %p120 = scmp.ne.s32.totalorder %s106, %s107
    %p121 = scmp.eq.s32.totalorder %s15, 1
    %p122 = por %p120, %p121
    %p124 = scmp.ne.s32.totalorder %s107, %s123
    %p125 = scmp.eq.s32.totalorder %s15, 0
    %p126 = por %p124, %p125
    %p127 = scmp.le.s32.totalorder 1, %s9
    %p128 = scmp.lt.s32.totalorder %s9, 3
    %p129 = pnand %p127, %p128
    %p130 = pneg %p129
    // Predicated region
    $region9: #{tpu_custom_call.1} parent=5 // pred_check
      _
    $region10: #{tpu_custom_call.1} parent=5 // pred_check_branch
      %132 = sbr.rel (%p129) target = $region12
    $region11: #{tpu_custom_call.1} parent=5 // pred_region
      %s133 = ssub.s32 %s9, 1
      // Predicated region
      $region13: #{tpu_custom_call.1} parent=11 // pred_check
        %p134 = pneg %p70
      $region14: #{tpu_custom_call.1} parent=11 // pred_check_branch
        %136 = sbr.rel (%p134) target = $region16
      $region15: #{tpu_custom_call.1} parent=11 // pred_region
        _
      $region16: #{tpu_custom_call.1} parent=11 // pred_fallthru
        _
      // Predicated region
      $region17: #{tpu_custom_call.1} parent=11 // pred_check
        %p137 = pneg %p91
      $region18: #{tpu_custom_call.1} parent=11 // pred_check_branch
        %139 = sbr.rel (%p137) target = $region20
      $region19: #{tpu_custom_call.1} parent=11 // pred_region
        _
      $region20: #{tpu_custom_call.1} parent=11 // pred_fallthru
        _
    $region12: #{tpu_custom_call.1} parent=5 // pred_fallthru
      _
    %p140 = scmp.lt.s32.totalorder %s9, 2
    // Predicated region
    $region21: #{tpu_custom_call.1} parent=5 // pred_check
      %p141 = pneg %p140
    $region22: #{tpu_custom_call.1} parent=5 // pred_check_branch
      %143 = sbr.rel (%p141) target = $region24
    $region23: #{tpu_custom_call.1} parent=5 // pred_region
      // Predicated region
      $region25: #{tpu_custom_call.1} parent=23 // pred_check
        %p144 = pneg %p43
      $region26: #{tpu_custom_call.1} parent=23 // pred_check_branch
        %146 = sbr.rel (%p144) target = $region28
      $region27: #{tpu_custom_call.1} parent=23 // pred_region
        %p147 = scmp.lt.s32.totalorder %s16, 1
        %s148 = scalar_select %p147, %s16, 1
        %p149 = scmp.lt.s32.totalorder %s17, 0
        %s150 = scalar_select %p149, %s17, 0
        %s151 = smul.addr %s150, 54
        %s152 = smul.addr %s148, 54
        %s153 = sadd.s32 %s151, %s152
        %s154 = smul.addr %s153, 8
        %s155 = scalar_lea.vmem %s0, %s154
      $region28: #{tpu_custom_call.1} parent=23 // pred_fallthru
        _
    $region24: #{tpu_custom_call.1} parent=5 // pred_fallthru
      _
    %p156 = scmp.le.s32.totalorder 1, %s9
    %p157 = scmp.lt.s32.totalorder %s9, 3
    %p158 = pnand %p156, %p157
    %p159 = pneg %p158
    // Predicated region
    $region29: #{tpu_custom_call.1} parent=5 // pred_check
      _
    $region30: #{tpu_custom_call.1} parent=5 // pred_check_branch
      %161 = sbr.rel (%p158) target = $region32
    $region31: #{tpu_custom_call.1} parent=5 // pred_region
      %s162 = ssub.s32 %s9, 1
      %p163 = scmp.lt.s32.totalorder %s18, 1
      %s164 = scalar_select %p163, %s18, 1
      %p165 = scmp.lt.s32.totalorder %s19, 0
      %s166 = scalar_select %p165, %s19, 0
      %s167 = smul.addr %s166, 54
      %s168 = smul.addr %s164, 54
      %s169 = sadd.s32 %s167, %s168
      %s170 = smul.addr %s169, 8
      %s171 = scalar_lea.vmem %s0, %s170
      %p172 = pneg %p49
      %p173 = pneg %p46
      %p174 = pneg %p70
      %p175 = pneg %p67
      %p176 = pneg %p91
      %p177 = pneg %p88
      %p178 = pneg %p119
      %p179 = pneg %p116
      %s180 = smul.u32 16, %s19
      %p181 = scmp.lt.s32.totalorder %s18, 1
      %s182 = scalar_select %p181, %s18, 1
      %p183 = scmp.lt.s32.totalorder %s180, 15
      %s184 = scalar_select %p183, %s180, 15
      %s185 = smul.addr %s184, 2
      %s186 = smul.addr %s182, 32
      %s187 = sadd.s32 %s185, %s186
      %s188 = smul.addr %s187, 8
      %s189 = scalar_lea.vmem %s3, %s188
      %p190 = scmp.lt.s32.totalorder %s18, 1
      %s191 = scalar_select %p190, %s18, 1
      %p192 = scmp.lt.s32.totalorder %s19, 0
      %s193 = scalar_select %p192, %s19, 0
      %s194 = smul.addr %s193, 54
      %s195 = smul.addr %s191, 54
      %s196 = sadd.s32 %s194, %s195
      %s197 = smul.addr %s196, 8
      %s198 = scalar_lea.vmem %s0, %s197
      %s199 = smul.u32 16, %s19
      %p200 = scmp.lt.s32.totalorder %s18, 1
      %s201 = scalar_select %p200, %s18, 1
      %p202 = scmp.lt.s32.totalorder %s199, 15
      %s203 = scalar_select %p202, %s199, 15
      %s204 = smul.addr %s203, 2
      %s205 = smul.addr %s201, 32
      %s206 = sadd.s32 %s204, %s205
      %s207 = smul.addr %s206, 8
      %s208 = scalar_lea.vmem %s3, %s207
      %s209 = smul.u32 16, %s19
      %s210 = scalar_lea.vmem %s198, 24
      %v211 = vld [vmem:[%s210 + $0x1] sm:$0xff]
      %v212 = vld [vmem:[%s210 + $0x9] sm:$0xff]
      %v213 = vld [vmem:[%s210 + $0x19] sm:$0xff]
      %v214 = vld [vmem:[%s210 + $0x21] sm:$0xff]
      %v215 = vld [vmem:[%s210 + $0x31] sm:$0xff]
      %v216 = vld [vmem:[%s210 + $0x39] sm:$0xff]
      %v217 = vld [vmem:[%s210 + $0x49] sm:$0xff]
      %v218 = vld [vmem:[%s210 + $0x51] sm:$0xff]
      %v219 = vld [vmem:[%s210 + $0x61] sm:$0xff]
      %v220 = vld [vmem:[%s210 + $0x69] sm:$0xff]
      %v221 = vld [vmem:[%s210 + $0x79] sm:$0xff]
      %v222 = vld [vmem:[%s210 + $0x81] sm:$0xff]
      %v223 = vld [vmem:[%s210 + $0x91] sm:$0xff]
      %v224 = vld [vmem:[%s210 + $0x99] sm:$0xff]
      %v225 = vld [vmem:[%s210 + $0xa9] sm:$0xff]
      %v226 = vld [vmem:[%s210 + $0xb1] sm:$0xff]
      %v227 = vld [vmem:[%s210 + $0xc1] sm:$0xff]
      %v228 = vld [vmem:[%s210 + $0xc9] sm:$0xff]
      %v229 = vld [vmem:[%s210 + $0xd9] sm:$0xff]
      %v230 = vld [vmem:[%s210 + $0xe1] sm:$0xff]
      %v231 = vld [vmem:[%s210 + $0xf1] sm:$0xff]
      %v232 = vld [vmem:[%s210 + $0xf9] sm:$0xff]
      %v233 = vld [vmem:[%s210 + $0x109] sm:$0xff]
      %v234 = vld [vmem:[%s210 + $0x111] sm:$0xff]
      %v235 = vld [vmem:[%s210 + $0x121] sm:$0xff]
      %v236 = vld [vmem:[%s210 + $0x129] sm:$0xff]
      %v237 = vld [vmem:[%s210 + $0x139] sm:$0xff]
      %v238 = vld [vmem:[%s210 + $0x141] sm:$0xff]
      %v239 = vld [vmem:[%s210 + $0x151] sm:$0xff]
      %v240 = vld [vmem:[%s210 + $0x159] sm:$0xff]
      %v241 = vld [vmem:[%s210 + $0x169] sm:$0xff]
      %v242 = vld [vmem:[%s210 + $0x171] sm:$0xff]
      %v243 = vld [vmem:[%s198] sm:$0xff]
      %v244 = vld [vmem:[%s198 + $0x8] sm:$0xff]
      %v245 = vld [vmem:[%s198 + $0x18] sm:$0xff]
      %v246 = vld [vmem:[%s198 + $0x20] sm:$0xff]
      %v247 = vld [vmem:[%s198 + $0x30] sm:$0xff]
      %v248 = vld [vmem:[%s198 + $0x38] sm:$0xff]
      %v249 = vld [vmem:[%s198 + $0x48] sm:$0xff]
      %v250 = vld [vmem:[%s198 + $0x50] sm:$0xff]
      %v251 = vld [vmem:[%s198 + $0x60] sm:$0xff]
      %v252 = vld [vmem:[%s198 + $0x68] sm:$0xff]
      %v253 = vld [vmem:[%s198 + $0x78] sm:$0xff]
      %v254 = vld [vmem:[%s198 + $0x80] sm:$0xff]
      %v255 = vld [vmem:[%s198 + $0x90] sm:$0xff]
      %v256 = vld [vmem:[%s198 + $0x98] sm:$0xff]
      %v257 = vld [vmem:[%s198 + $0xa8] sm:$0xff]
      %v258 = vld [vmem:[%s198 + $0xb0] sm:$0xff]
      %v259 = vld [vmem:[%s198 + $0xc0] sm:$0xff]
      %v260 = vld [vmem:[%s198 + $0xc8] sm:$0xff]
      %v261 = vld [vmem:[%s198 + $0xd8] sm:$0xff]
      %v262 = vld [vmem:[%s198 + $0xe0] sm:$0xff]
      %v263 = vld [vmem:[%s198 + $0xf0] sm:$0xff]
      %v264 = vld [vmem:[%s198 + $0xf8] sm:$0xff]
      %v265 = vld [vmem:[%s198 + $0x108] sm:$0xff]
      %v266 = vld [vmem:[%s198 + $0x110] sm:$0xff]
      %v267 = vld [vmem:[%s198 + $0x120] sm:$0xff]
      %v268 = vld [vmem:[%s198 + $0x128] sm:$0xff]
      %v269 = vld [vmem:[%s198 + $0x138] sm:$0xff]
      %v270 = vld [vmem:[%s198 + $0x140] sm:$0xff]
      %v271 = vld [vmem:[%s198 + $0x150] sm:$0xff]
      %v272 = vld [vmem:[%s198 + $0x158] sm:$0xff]
      %v273 = vld [vmem:[%s198 + $0x168] sm:$0xff]
      %v274 = vld [vmem:[%s198 + $0x170] sm:$0xff]
      %v275 = vld [vmem:[%s1] sm:$0xf]
      %v276 = vld [vmem:[%s198 + $0x1] sm:$0xff]
      %v277 = vld [vmem:[%s198 + $0x9] sm:$0xff]
      %v278 = vld [vmem:[%s198 + $0x19] sm:$0xff]
      %v279 = vld [vmem:[%s198 + $0x21] sm:$0xff]
      %v280 = vld [vmem:[%s198 + $0x31] sm:$0xff]
      %v281 = vld [vmem:[%s198 + $0x39] sm:$0xff]
      %v282 = vld [vmem:[%s198 + $0x49] sm:$0xff]
      %v283 = vld [vmem:[%s198 + $0x51] sm:$0xff]
      %v284 = vld [vmem:[%s198 + $0x61] sm:$0xff]
      %v285 = vld [vmem:[%s198 + $0x69] sm:$0xff]
      %v286 = vld [vmem:[%s198 + $0x79] sm:$0xff]
      %v287 = vld [vmem:[%s198 + $0x81] sm:$0xff]
      %v288 = vld [vmem:[%s198 + $0x91] sm:$0xff]
      %v289 = vld [vmem:[%s198 + $0x99] sm:$0xff]
      %v290 = vld [vmem:[%s198 + $0xa9] sm:$0xff]
      %v291 = vld [vmem:[%s198 + $0xb1] sm:$0xff]
      %v292 = vld [vmem:[%s198 + $0xc1] sm:$0xff]
      %v293 = vld [vmem:[%s198 + $0xc9] sm:$0xff]
      %v294 = vld [vmem:[%s198 + $0xd9] sm:$0xff]
      %v295 = vld [vmem:[%s198 + $0xe1] sm:$0xff]
      %v296 = vld [vmem:[%s198 + $0xf1] sm:$0xff]
      %v297 = vld [vmem:[%s198 + $0xf9] sm:$0xff]
      %v298 = vld [vmem:[%s198 + $0x109] sm:$0xff]
      %v299 = vld [vmem:[%s198 + $0x111] sm:$0xff]
      %v300 = vld [vmem:[%s198 + $0x121] sm:$0xff]
      %v301 = vld [vmem:[%s198 + $0x129] sm:$0xff]
      %v302 = vld [vmem:[%s198 + $0x139] sm:$0xff]
      %v303 = vld [vmem:[%s198 + $0x141] sm:$0xff]
      %v304 = vld [vmem:[%s198 + $0x151] sm:$0xff]
      %v305 = vld [vmem:[%s198 + $0x159] sm:$0xff]
      %v306 = vld [vmem:[%s198 + $0x169] sm:$0xff]
      %v307 = vld [vmem:[%s198 + $0x171] sm:$0xff]
      %s308 = scalar_lea.vmem %s1, 4
      %v309 = vld [vmem:[%s308] sm:$0xf]
      %vm310 = vcmask 31744
      %v312 = vsel %vm310, %v276, 0
      %v315 = vsel %vm310, %v277, 0
      %v318 = vsel %vm310, %v278, 0
      %v321 = vsel %vm310, %v279, 0
      %v324 = vsel %vm310, %v280, 0
      %v327 = vsel %vm310, %v281, 0
      %v330 = vsel %vm310, %v282, 0
      %v333 = vsel %vm310, %v283, 0
      %v336 = vsel %vm310, %v284, 0
      %v339 = vsel %vm310, %v285, 0
      %v342 = vsel %vm310, %v286, 0
      %v345 = vsel %vm310, %v287, 0
      %v348 = vsel %vm310, %v288, 0
      %v351 = vsel %vm310, %v289, 0
      %v354 = vsel %vm310, %v290, 0
      %v357 = vsel %vm310, %v291, 0
      %v360 = vsel %vm310, %v292, 0
      %v363 = vsel %vm310, %v293, 0
      %v366 = vsel %vm310, %v294, 0
      %v369 = vsel %vm310, %v295, 0
      %v372 = vsel %vm310, %v296, 0
      %v375 = vsel %vm310, %v297, 0
      %v378 = vsel %vm310, %v298, 0
      %v381 = vsel %vm310, %v299, 0
      %v384 = vsel %vm310, %v300, 0
      %v387 = vsel %vm310, %v301, 0
      %v390 = vsel %vm310, %v302, 0
      %v393 = vsel %vm310, %v303, 0
      %v396 = vsel %vm310, %v304, 0
      %v399 = vsel %vm310, %v305, 0
      %v402 = vsel %vm310, %v306, 0
      %v405 = vsel %vm310, %v307, 0
      %vm407 = vcmask 1043456
      %v409 = vsel %vm407, %v309, 0
      %411 = vmatprep.subr.mxu0 0.0
      %412 = vmatpush1.msra.mxu0 0.0
      %413 = vmatprep.subr.mxu0 0.0
      %414 = vmatpush1.msra.mxu0 0.0
      %415 = vmatprep.subr.mxu0 0.0
      %416 = vmatpush1.msra.mxu0 0.0
      %417 = vmatprep.subr.mxu0 0.0
      %418 = vmatpush1.msra.mxu0 0.0
      %419 = vmatprep.subr.mxu0 0.0
      %420 = vmatpush1.msra.mxu0 0.0
      %421 = vmatprep.subr.mxu0 0.0
      %422 = vmatpush1.msra.mxu0 0.0
      %423 = vmatprep.subr.mxu0 0.0
      %424 = vmatpush1.msra.mxu0 0.0
      %425 = vmatprep.subr.mxu0 0.0
      %426 = vmatpush1.msra.mxu0 0.0
      %427 = vmatprep.subr.mxu0 0.0
      %428 = vmatpush1.msra.mxu0 0.0
      %429 = vmatprep.subr.mxu0 0.0
      %430 = vmatpush1.msra.mxu0 0.0
      %431 = vmatprep.subr.mxu0 0.0
      %432 = vmatpush1.msra.mxu0 0.0
      %433 = vmatprep.subr.mxu0 0.0
      %434 = vmatpush1.msra.mxu0 0.0
      %435 = vmatprep.subr.mxu0 0.0
      %436 = vmatpush1.msra.mxu0 0.0
      %437 = vmatprep.subr.mxu0 0.0
      %438 = vmatpush1.msra.mxu0 0.0
      %439 = vmatprep.subr.mxu0 0.0
      %440 = vmatpush1.msra.mxu0 0.0
      %441 = vmatprep.subr.mxu0 0.0
      %442 = vmatpush1.msra.mxu0 %v409
      %443 = vmatprep.subr.mxu0 0.0
      %444 = vmatpush2.msra.mxu0 0.0
      %445 = vmatprep.subr.mxu0 0.0
      %446 = vmatpush2.msra.mxu0 0.0
      %447 = vmatprep.subr.mxu0 0.0
      %448 = vmatpush2.msra.mxu0 0.0
      %449 = vmatprep.subr.mxu0 0.0
      %450 = vmatpush2.msra.mxu0 0.0
      %451 = vmatprep.subr.mxu0 0.0
      %452 = vmatpush2.msra.mxu0 0.0
      %453 = vmatprep.subr.mxu0 0.0
      %454 = vmatpush2.msra.mxu0 0.0
      %455 = vmatprep.subr.mxu0 0.0
      %456 = vmatpush2.msra.mxu0 0.0
      %457 = vmatprep.subr.mxu0 0.0
      %458 = vmatpush2.msra.mxu0 0.0
      %459 = vmatprep.subr.mxu0 0.0
      %460 = vmatpush2.msra.mxu0 0.0
      %461 = vmatprep.subr.mxu0 0.0
      %462 = vmatpush2.msra.mxu0 0.0
      %463 = vmatprep.subr.mxu0 0.0
      %464 = vmatpush2.msra.mxu0 0.0
      %465 = vmatprep.subr.mxu0 0.0
      %466 = vmatpush2.msra.mxu0 0.0
      %467 = vmatprep.subr.mxu0 0.0
      %468 = vmatpush2.msra.mxu0 0.0
      %469 = vmatprep.subr.mxu0 0.0
      %470 = vmatpush2.msra.mxu0 0.0
      %471 = vmatprep.subr.mxu0 0.0
      %472 = vmatpush2.msra.mxu0 0.0
      %473 = vmatprep.subr.mxu0 0.0
      %474 = vmatpush2.msra.mxu0 0.0
      %475 = vmatprep.mubr.f32.mxu0 0.0
      %476 = vmatmul.mubr.f32.gmra.mxu0 %v312
      %v477 = vpop.f32.mrf.mxu0
      %v478 = vadd.f32 0.0, %v477
      %v479 = vpop.f32.mrf.mxu0
      %480 = vmatprep.mubr.f32.mxu0 0.0
      %481 = vmatmul.mubr.f32.gmra.mxu0 %v315
      %v482 = vpop.f32.mrf.mxu0
      %v483 = vadd.f32 0.0, %v482
      %v484 = vpop.f32.mrf.mxu0
      %485 = vmatprep.mubr.f32.mxu0 0.0
      %486 = vmatmul.mubr.f32.gmra.mxu0 %v318
      %v487 = vpop.f32.mrf.mxu0
      %v488 = vadd.f32 0.0, %v487
      %v489 = vpop.f32.mrf.mxu0
      %490 = vmatprep.mubr.f32.mxu0 0.0
      %491 = vmatmul.mubr.f32.gmra.mxu0 %v321
      %v492 = vpop.f32.mrf.mxu0
      %v493 = vadd.f32 0.0, %v492
      %v494 = vpop.f32.mrf.mxu0
      %495 = vmatprep.mubr.f32.mxu0 0.0
      %496 = vmatmul.mubr.f32.gmra.mxu0 %v324
      %v497 = vpop.f32.mrf.mxu0
      %v498 = vadd.f32 0.0, %v497
      %v499 = vpop.f32.mrf.mxu0
      %500 = vmatprep.mubr.f32.mxu0 0.0
      %501 = vmatmul.mubr.f32.gmra.mxu0 %v327
      %v502 = vpop.f32.mrf.mxu0
      %v503 = vadd.f32 0.0, %v502
      %v504 = vpop.f32.mrf.mxu0
      %505 = vmatprep.mubr.f32.mxu0 0.0
      %506 = vmatmul.mubr.f32.gmra.mxu0 %v330
      %v507 = vpop.f32.mrf.mxu0
      %v508 = vadd.f32 0.0, %v507
      %v509 = vpop.f32.mrf.mxu0
      %510 = vmatprep.mubr.f32.mxu0 0.0
      %511 = vmatmul.mubr.f32.gmra.mxu0 %v333
      %v512 = vpop.f32.mrf.mxu0
      %v513 = vadd.f32 0.0, %v512
      %v514 = vpop.f32.mrf.mxu0
      %515 = vmatprep.mubr.f32.mxu0 0.0
      %516 = vmatmul.mubr.f32.gmra.mxu0 %v336
      %v517 = vpop.f32.mrf.mxu0
      %v518 = vadd.f32 0.0, %v517
      %v519 = vpop.f32.mrf.mxu0
      %520 = vmatprep.mubr.f32.mxu0 0.0
      %521 = vmatmul.mubr.f32.gmra.mxu0 %v339
      %v522 = vpop.f32.mrf.mxu0
      %v523 = vadd.f32 0.0, %v522
      %v524 = vpop.f32.mrf.mxu0
      %525 = vmatprep.mubr.f32.mxu0 0.0
      %526 = vmatmul.mubr.f32.gmra.mxu0 %v342
      %v527 = vpop.f32.mrf.mxu0
      %v528 = vadd.f32 0.0, %v527
      %v529 = vpop.f32.mrf.mxu0
      %530 = vmatprep.mubr.f32.mxu0 0.0
      %531 = vmatmul.mubr.f32.gmra.mxu0 %v345
      %v532 = vpop.f32.mrf.mxu0
      %v533 = vadd.f32 0.0, %v532
      %v534 = vpop.f32.mrf.mxu0
      %535 = vmatprep.mubr.f32.mxu0 0.0
      %536 = vmatmul.mubr.f32.gmra.mxu0 %v348
      %v537 = vpop.f32.mrf.mxu0
      %v538 = vadd.f32 0.0, %v537
      %v539 = vpop.f32.mrf.mxu0
      %540 = vmatprep.mubr.f32.mxu0 0.0
      %541 = vmatmul.mubr.f32.gmra.mxu0 %v351
      %v542 = vpop.f32.mrf.mxu0
      %v543 = vadd.f32 0.0, %v542
      %v544 = vpop.f32.mrf.mxu0
      %545 = vmatprep.mubr.f32.mxu0 0.0
      %546 = vmatmul.mubr.f32.gmra.mxu0 %v354
      %v547 = vpop.f32.mrf.mxu0
      %v548 = vadd.f32 0.0, %v547
      %v549 = vpop.f32.mrf.mxu0
      %550 = vmatprep.mubr.f32.mxu0 0.0
      %551 = vmatmul.mubr.f32.gmra.mxu0 %v357
      %v552 = vpop.f32.mrf.mxu0
      %v553 = vadd.f32 0.0, %v552
      %v554 = vpop.f32.mrf.mxu0
      %555 = vmatprep.mubr.f32.mxu0 0.0
      %556 = vmatmul.mubr.f32.gmra.mxu0 %v360
      %v557 = vpop.f32.mrf.mxu0
      %v558 = vadd.f32 0.0, %v557
      %v559 = vpop.f32.mrf.mxu0
      %560 = vmatprep.mubr.f32.mxu0 0.0
      %561 = vmatmul.mubr.f32.gmra.mxu0 %v363
      %v562 = vpop.f32.mrf.mxu0
      %v563 = vadd.f32 0.0, %v562
      %v564 = vpop.f32.mrf.mxu0
      %565 = vmatprep.mubr.f32.mxu0 0.0
      %566 = vmatmul.mubr.f32.gmra.mxu0 %v366
      %v567 = vpop.f32.mrf.mxu0
      %v568 = vadd.f32 0.0, %v567
      %v569 = vpop.f32.mrf.mxu0
      %570 = vmatprep.mubr.f32.mxu0 0.0
      %571 = vmatmul.mubr.f32.gmra.mxu0 %v369
      %v572 = vpop.f32.mrf.mxu0
      %v573 = vadd.f32 0.0, %v572
      %v574 = vpop.f32.mrf.mxu0
      %575 = vmatprep.mubr.f32.mxu0 0.0
      %576 = vmatmul.mubr.f32.gmra.mxu0 %v372
      %v577 = vpop.f32.mrf.mxu0
      %v578 = vadd.f32 0.0, %v577
      %v579 = vpop.f32.mrf.mxu0
      %580 = vmatprep.mubr.f32.mxu0 0.0
      %581 = vmatmul.mubr.f32.gmra.mxu0 %v375
      %v582 = vpop.f32.mrf.mxu0
      %v583 = vadd.f32 0.0, %v582
      %v584 = vpop.f32.mrf.mxu0
      %585 = vmatprep.mubr.f32.mxu0 0.0
      %586 = vmatmul.mubr.f32.gmra.mxu0 %v378
      %v587 = vpop.f32.mrf.mxu0
      %v588 = vadd.f32 0.0, %v587
      %v589 = vpop.f32.mrf.mxu0
      %590 = vmatprep.mubr.f32.mxu0 0.0
      %591 = vmatmul.mubr.f32.gmra.mxu0 %v381
      %v592 = vpop.f32.mrf.mxu0
      %v593 = vadd.f32 0.0, %v592
      %v594 = vpop.f32.mrf.mxu0
      %595 = vmatprep.mubr.f32.mxu0 0.0
      %596 = vmatmul.mubr.f32.gmra.mxu0 %v384
      %v597 = vpop.f32.mrf.mxu0
      %v598 = vadd.f32 0.0, %v597
      %v599 = vpop.f32.mrf.mxu0
      %600 = vmatprep.mubr.f32.mxu0 0.0
      %601 = vmatmul.mubr.f32.gmra.mxu0 %v387
      %v602 = vpop.f32.mrf.mxu0
      %v603 = vadd.f32 0.0, %v602
      %v604 = vpop.f32.mrf.mxu0
      %605 = vmatprep.mubr.f32.mxu0 0.0
      %606 = vmatmul.mubr.f32.gmra.mxu0 %v390
      %v607 = vpop.f32.mrf.mxu0
      %v608 = vadd.f32 0.0, %v607
      %v609 = vpop.f32.mrf.mxu0
      %610 = vmatprep.mubr.f32.mxu0 0.0
      %611 = vmatmul.mubr.f32.gmra.mxu0 %v393
      %v612 = vpop.f32.mrf.mxu0
      %v613 = vadd.f32 0.0, %v612
      %v614 = vpop.f32.mrf.mxu0
      %615 = vmatprep.mubr.f32.mxu0 0.0
      %616 = vmatmul.mubr.f32.gmra.mxu0 %v396
      %v617 = vpop.f32.mrf.mxu0
      %v618 = vadd.f32 0.0, %v617
      %v619 = vpop.f32.mrf.mxu0
      %620 = vmatprep.mubr.f32.mxu0 0.0
      %621 = vmatmul.mubr.f32.gmra.mxu0 %v399
      %v622 = vpop.f32.mrf.mxu0
      %v623 = vadd.f32 0.0, %v622
      %v624 = vpop.f32.mrf.mxu0
      %625 = vmatprep.mubr.f32.mxu0 0.0
      %626 = vmatmul.mubr.f32.gmra.mxu0 %v402
      %v627 = vpop.f32.mrf.mxu0
      %v628 = vadd.f32 0.0, %v627
      %v629 = vpop.f32.mrf.mxu0
      %630 = vmatprep.mubr.f32.mxu0 0.0
      %631 = vmatmul.mubr.f32.gmra.mxu0 %v405
      %v632 = vpop.f32.mrf.mxu0
      %v633 = vadd.f32 0.0, %v632
      %v634 = vpop.f32.mrf.mxu0
      %635 = vdwg.mxu0
      %v637 = vsel %vm310, %v243, 0
      %v640 = vsel %vm310, %v244, 0
      %v643 = vsel %vm310, %v245, 0
      %v646 = vsel %vm310, %v246, 0
      %v649 = vsel %vm310, %v247, 0
      %v652 = vsel %vm310, %v248, 0
      %v655 = vsel %vm310, %v249, 0
      %v658 = vsel %vm310, %v250, 0
      %v661 = vsel %vm310, %v251, 0
      %v664 = vsel %vm310, %v252, 0
      %v667 = vsel %vm310, %v253, 0
      %v670 = vsel %vm310, %v254, 0
      %v673 = vsel %vm310, %v255, 0
      %v676 = vsel %vm310, %v256, 0
      %v679 = vsel %vm310, %v257, 0
      %v682 = vsel %vm310, %v258, 0
      %v685 = vsel %vm310, %v259, 0
      %v688 = vsel %vm310, %v260, 0
      %v691 = vsel %vm310, %v261, 0
      %v694 = vsel %vm310, %v262, 0
      %v697 = vsel %vm310, %v263, 0
      %v700 = vsel %vm310, %v264, 0
      %v703 = vsel %vm310, %v265, 0
      %v706 = vsel %vm310, %v266, 0
      %v709 = vsel %vm310, %v267, 0
      %v712 = vsel %vm310, %v268, 0
      %v715 = vsel %vm310, %v269, 0
      %v718 = vsel %vm310, %v270, 0
      %v721 = vsel %vm310, %v271, 0
      %v724 = vsel %vm310, %v272, 0
      %v727 = vsel %vm310, %v273, 0
      %v730 = vsel %vm310, %v274, 0
      %v733 = vsel %vm407, %v275, 0
      %735 = vmatprep.subr.mxu0 0.0
      %736 = vmatpush1.msra.mxu0 0.0
      %737 = vmatprep.subr.mxu0 0.0
      %738 = vmatpush1.msra.mxu0 0.0
      %739 = vmatprep.subr.mxu0 0.0
      %740 = vmatpush1.msra.mxu0 0.0
      %741 = vmatprep.subr.mxu0 0.0
      %742 = vmatpush1.msra.mxu0 0.0
      %743 = vmatprep.subr.mxu0 0.0
      %744 = vmatpush1.msra.mxu0 0.0
      %745 = vmatprep.subr.mxu0 0.0
      %746 = vmatpush1.msra.mxu0 0.0
      %747 = vmatprep.subr.mxu0 0.0
      %748 = vmatpush1.msra.mxu0 0.0
      %749 = vmatprep.subr.mxu0 0.0
      %750 = vmatpush1.msra.mxu0 0.0
      %751 = vmatprep.subr.mxu0 0.0
      %752 = vmatpush1.msra.mxu0 0.0
      %753 = vmatprep.subr.mxu0 0.0
      %754 = vmatpush1.msra.mxu0 0.0
      %755 = vmatprep.subr.mxu0 0.0
      %756 = vmatpush1.msra.mxu0 0.0
      %757 = vmatprep.subr.mxu0 0.0
      %758 = vmatpush1.msra.mxu0 0.0
      %759 = vmatprep.subr.mxu0 0.0
      %760 = vmatpush1.msra.mxu0 0.0
      %761 = vmatprep.subr.mxu0 0.0
      %762 = vmatpush1.msra.mxu0 0.0
      %763 = vmatprep.subr.mxu0 0.0
      %764 = vmatpush1.msra.mxu0 0.0
      %765 = vmatprep.subr.mxu0 0.0
      %766 = vmatpush1.msra.mxu0 %v733
      %767 = vmatprep.subr.mxu0 0.0
      %768 = vmatpush2.msra.mxu0 0.0
      %769 = vmatprep.subr.mxu0 0.0
      %770 = vmatpush2.msra.mxu0 0.0
      %771 = vmatprep.subr.mxu0 0.0
      %772 = vmatpush2.msra.mxu0 0.0
      %773 = vmatprep.subr.mxu0 0.0
      %774 = vmatpush2.msra.mxu0 0.0
      %775 = vmatprep.subr.mxu0 0.0
      %776 = vmatpush2.msra.mxu0 0.0
      %777 = vmatprep.subr.mxu0 0.0
      %778 = vmatpush2.msra.mxu0 0.0
      %779 = vmatprep.subr.mxu0 0.0
      %780 = vmatpush2.msra.mxu0 0.0
      %781 = vmatprep.subr.mxu0 0.0
      %782 = vmatpush2.msra.mxu0 0.0
      %783 = vmatprep.subr.mxu0 0.0
      %784 = vmatpush2.msra.mxu0 0.0
      %785 = vmatprep.subr.mxu0 0.0
      %786 = vmatpush2.msra.mxu0 0.0
      %787 = vmatprep.subr.mxu0 0.0
      %788 = vmatpush2.msra.mxu0 0.0
      %789 = vmatprep.subr.mxu0 0.0
      %790 = vmatpush2.msra.mxu0 0.0
      %791 = vmatprep.subr.mxu0 0.0
      %792 = vmatpush2.msra.mxu0 0.0
      %793 = vmatprep.subr.mxu0 0.0
      %794 = vmatpush2.msra.mxu0 0.0
      %795 = vmatprep.subr.mxu0 0.0
      %796 = vmatpush2.msra.mxu0 0.0
      %797 = vmatprep.subr.mxu0 0.0
      %798 = vmatpush2.msra.mxu0 0.0
      %799 = vmatprep.mubr.f32.mxu0 0.0
      %800 = vmatmul.mubr.f32.gmra.mxu0 %v637
      %v801 = vpop.f32.mrf.mxu0
      %v802 = vadd.f32 %v478, %v801
      %v803 = vpop.f32.mrf.mxu0
      %804 = vmatprep.mubr.f32.mxu0 0.0
      %805 = vmatmul.mubr.f32.gmra.mxu0 %v640
      %v806 = vpop.f32.mrf.mxu0
      %v807 = vadd.f32 %v483, %v806
      %v808 = vpop.f32.mrf.mxu0
      %809 = vmatprep.mubr.f32.mxu0 0.0
      %810 = vmatmul.mubr.f32.gmra.mxu0 %v643
      %v811 = vpop.f32.mrf.mxu0
      %v812 = vadd.f32 %v488, %v811
      %v813 = vpop.f32.mrf.mxu0
      %814 = vmatprep.mubr.f32.mxu0 0.0
      %815 = vmatmul.mubr.f32.gmra.mxu0 %v646
      %v816 = vpop.f32.mrf.mxu0
      %v817 = vadd.f32 %v493, %v816
      %v818 = vpop.f32.mrf.mxu0
      %819 = vmatprep.mubr.f32.mxu0 0.0
      %820 = vmatmul.mubr.f32.gmra.mxu0 %v649
      %v821 = vpop.f32.mrf.mxu0
      %v822 = vadd.f32 %v498, %v821
      %v823 = vpop.f32.mrf.mxu0
      %824 = vmatprep.mubr.f32.mxu0 0.0
      %825 = vmatmul.mubr.f32.gmra.mxu0 %v652
      %v826 = vpop.f32.mrf.mxu0
      %v827 = vadd.f32 %v503, %v826
      %v828 = vpop.f32.mrf.mxu0
      %829 = vmatprep.mubr.f32.mxu0 0.0
      %830 = vmatmul.mubr.f32.gmra.mxu0 %v655
      %v831 = vpop.f32.mrf.mxu0
      %v832 = vadd.f32 %v508, %v831
      %v833 = vpop.f32.mrf.mxu0
      %834 = vmatprep.mubr.f32.mxu0 0.0
      %835 = vmatmul.mubr.f32.gmra.mxu0 %v658
      %v836 = vpop.f32.mrf.mxu0
      %v837 = vadd.f32 %v513, %v836
      %v838 = vpop.f32.mrf.mxu0
      %839 = vmatprep.mubr.f32.mxu0 0.0
      %840 = vmatmul.mubr.f32.gmra.mxu0 %v661
      %v841 = vpop.f32.mrf.mxu0
      %v842 = vadd.f32 %v518, %v841
      %v843 = vpop.f32.mrf.mxu0
      %844 = vmatprep.mubr.f32.mxu0 0.0
      %845 = vmatmul.mubr.f32.gmra.mxu0 %v664
      %v846 = vpop.f32.mrf.mxu0
      %v847 = vadd.f32 %v523, %v846
      %v848 = vpop.f32.mrf.mxu0
      %849 = vmatprep.mubr.f32.mxu0 0.0
      %850 = vmatmul.mubr.f32.gmra.mxu0 %v667
      %v851 = vpop.f32.mrf.mxu0
      %v852 = vadd.f32 %v528, %v851
      %v853 = vpop.f32.mrf.mxu0
      %854 = vmatprep.mubr.f32.mxu0 0.0
      %855 = vmatmul.mubr.f32.gmra.mxu0 %v670
      %v856 = vpop.f32.mrf.mxu0
      %v857 = vadd.f32 %v533, %v856
      %v858 = vpop.f32.mrf.mxu0
      %859 = vmatprep.mubr.f32.mxu0 0.0
      %860 = vmatmul.mubr.f32.gmra.mxu0 %v673
      %v861 = vpop.f32.mrf.mxu0
      %v862 = vadd.f32 %v538, %v861
      %v863 = vpop.f32.mrf.mxu0
      %864 = vmatprep.mubr.f32.mxu0 0.0
      %865 = vmatmul.mubr.f32.gmra.mxu0 %v676
      %v866 = vpop.f32.mrf.mxu0
      %v867 = vadd.f32 %v543, %v866
      %v868 = vpop.f32.mrf.mxu0
      %869 = vmatprep.mubr.f32.mxu0 0.0
      %870 = vmatmul.mubr.f32.gmra.mxu0 %v679
      %v871 = vpop.f32.mrf.mxu0
      %v872 = vadd.f32 %v548, %v871
      %v873 = vpop.f32.mrf.mxu0
      %874 = vmatprep.mubr.f32.mxu0 0.0
      %875 = vmatmul.mubr.f32.gmra.mxu0 %v682
      %v876 = vpop.f32.mrf.mxu0
      %v877 = vadd.f32 %v553, %v876
      %v878 = vpop.f32.mrf.mxu0
      %879 = vmatprep.mubr.f32.mxu0 0.0
      %880 = vmatmul.mubr.f32.gmra.mxu0 %v685
      %v881 = vpop.f32.mrf.mxu0
      %v882 = vadd.f32 %v558, %v881
      %v883 = vpop.f32.mrf.mxu0
      %884 = vmatprep.mubr.f32.mxu0 0.0
      %885 = vmatmul.mubr.f32.gmra.mxu0 %v688
      %v886 = vpop.f32.mrf.mxu0
      %v887 = vadd.f32 %v563, %v886
      %v888 = vpop.f32.mrf.mxu0
      %889 = vmatprep.mubr.f32.mxu0 0.0
      %890 = vmatmul.mubr.f32.gmra.mxu0 %v691
      %v891 = vpop.f32.mrf.mxu0
      %v892 = vadd.f32 %v568, %v891
      %v893 = vpop.f32.mrf.mxu0
      %894 = vmatprep.mubr.f32.mxu0 0.0
      %895 = vmatmul.mubr.f32.gmra.mxu0 %v694
      %v896 = vpop.f32.mrf.mxu0
      %v897 = vadd.f32 %v573, %v896
      %v898 = vpop.f32.mrf.mxu0
      %899 = vmatprep.mubr.f32.mxu0 0.0
      %900 = vmatmul.mubr.f32.gmra.mxu0 %v697
      %v901 = vpop.f32.mrf.mxu0
      %v902 = vadd.f32 %v578, %v901
      %v903 = vpop.f32.mrf.mxu0
      %904 = vmatprep.mubr.f32.mxu0 0.0
      %905 = vmatmul.mubr.f32.gmra.mxu0 %v700
      %v906 = vpop.f32.mrf.mxu0
      %v907 = vadd.f32 %v583, %v906
      %v908 = vpop.f32.mrf.mxu0
      %909 = vmatprep.mubr.f32.mxu0 0.0
      %910 = vmatmul.mubr.f32.gmra.mxu0 %v703
      %v911 = vpop.f32.mrf.mxu0
      %v912 = vadd.f32 %v588, %v911
      %v913 = vpop.f32.mrf.mxu0
      %914 = vmatprep.mubr.f32.mxu0 0.0
      %915 = vmatmul.mubr.f32.gmra.mxu0 %v706
      %v916 = vpop.f32.mrf.mxu0
      %v917 = vadd.f32 %v593, %v916
      %v918 = vpop.f32.mrf.mxu0
      %919 = vmatprep.mubr.f32.mxu0 0.0
      %920 = vmatmul.mubr.f32.gmra.mxu0 %v709
      %v921 = vpop.f32.mrf.mxu0
      %v922 = vadd.f32 %v598, %v921
      %v923 = vpop.f32.mrf.mxu0
      %924 = vmatprep.mubr.f32.mxu0 0.0
      %925 = vmatmul.mubr.f32.gmra.mxu0 %v712
      %v926 = vpop.f32.mrf.mxu0
      %v927 = vadd.f32 %v603, %v926
      %v928 = vpop.f32.mrf.mxu0
      %929 = vmatprep.mubr.f32.mxu0 0.0
      %930 = vmatmul.mubr.f32.gmra.mxu0 %v715
      %v931 = vpop.f32.mrf.mxu0
      %v932 = vadd.f32 %v608, %v931
      %v933 = vpop.f32.mrf.mxu0
      %934 = vmatprep.mubr.f32.mxu0 0.0
      %935 = vmatmul.mubr.f32.gmra.mxu0 %v718
      %v936 = vpop.f32.mrf.mxu0
      %v937 = vadd.f32 %v613, %v936
      %v938 = vpop.f32.mrf.mxu0
      %939 = vmatprep.mubr.f32.mxu0 0.0
      %940 = vmatmul.mubr.f32.gmra.mxu0 %v721
      %v941 = vpop.f32.mrf.mxu0
      %v942 = vadd.f32 %v618, %v941
      %v943 = vpop.f32.mrf.mxu0
      %944 = vmatprep.mubr.f32.mxu0 0.0
      %945 = vmatmul.mubr.f32.gmra.mxu0 %v724
      %v946 = vpop.f32.mrf.mxu0
      %v947 = vadd.f32 %v623, %v946
      %v948 = vpop.f32.mrf.mxu0
      %949 = vmatprep.mubr.f32.mxu0 0.0
      %950 = vmatmul.mubr.f32.gmra.mxu0 %v727
      %v951 = vpop.f32.mrf.mxu0
      %v952 = vadd.f32 %v628, %v951
      %v953 = vpop.f32.mrf.mxu0
      %954 = vmatprep.mubr.f32.mxu0 0.0
      %955 = vmatmul.mubr.f32.gmra.mxu0 %v730
      %v956 = vpop.f32.mrf.mxu0
      %v957 = vadd.f32 %v633, %v956
      %v958 = vpop.f32.mrf.mxu0
      %959 = vdwg.mxu0
      %v960 = vld [vmem:[%s198 + $0x2] sm:$0xff]
      %v961 = vld [vmem:[%s198 + $0xa] sm:$0xff]
      %v962 = vld [vmem:[%s198 + $0x1a] sm:$0xff]
      %v963 = vld [vmem:[%s198 + $0x22] sm:$0xff]
      %v964 = vld [vmem:[%s198 + $0x32] sm:$0xff]
      %v965 = vld [vmem:[%s198 + $0x3a] sm:$0xff]
      %v966 = vld [vmem:[%s198 + $0x4a] sm:$0xff]
      %v967 = vld [vmem:[%s198 + $0x52] sm:$0xff]
      %v968 = vld [vmem:[%s198 + $0x62] sm:$0xff]
      %v969 = vld [vmem:[%s198 + $0x6a] sm:$0xff]
      %v970 = vld [vmem:[%s198 + $0x7a] sm:$0xff]
      %v971 = vld [vmem:[%s198 + $0x82] sm:$0xff]
      %v972 = vld [vmem:[%s198 + $0x92] sm:$0xff]
      %v973 = vld [vmem:[%s198 + $0x9a] sm:$0xff]
      %v974 = vld [vmem:[%s198 + $0xaa] sm:$0xff]
      %v975 = vld [vmem:[%s198 + $0xb2] sm:$0xff]
      %v976 = vld [vmem:[%s198 + $0xc2] sm:$0xff]
      %v977 = vld [vmem:[%s198 + $0xca] sm:$0xff]
      %v978 = vld [vmem:[%s198 + $0xda] sm:$0xff]
      %v979 = vld [vmem:[%s198 + $0xe2] sm:$0xff]
      %v980 = vld [vmem:[%s198 + $0xf2] sm:$0xff]
      %v981 = vld [vmem:[%s198 + $0xfa] sm:$0xff]
      %v982 = vld [vmem:[%s198 + $0x10a] sm:$0xff]
      %v983 = vld [vmem:[%s198 + $0x112] sm:$0xff]
      %v984 = vld [vmem:[%s198 + $0x122] sm:$0xff]
      %v985 = vld [vmem:[%s198 + $0x12a] sm:$0xff]
      %v986 = vld [vmem:[%s198 + $0x13a] sm:$0xff]
      %v987 = vld [vmem:[%s198 + $0x142] sm:$0xff]
      %v988 = vld [vmem:[%s198 + $0x152] sm:$0xff]
      %v989 = vld [vmem:[%s198 + $0x15a] sm:$0xff]
      %v990 = vld [vmem:[%s198 + $0x16a] sm:$0xff]
      %v991 = vld [vmem:[%s198 + $0x172] sm:$0xff]
      %s992 = scalar_lea.vmem %s1, 8
      %v993 = vld [vmem:[%s992] sm:$0xf]
      %v995 = vsel %vm310, %v960, 0
      %v998 = vsel %vm310, %v961, 0
      %v1001 = vsel %vm310, %v962, 0
      %v1004 = vsel %vm310, %v963, 0
      %v1007 = vsel %vm310, %v964, 0
      %v1010 = vsel %vm310, %v965, 0
      %v1013 = vsel %vm310, %v966, 0
      %v1016 = vsel %vm310, %v967, 0
      %v1019 = vsel %vm310, %v968, 0
      %v1022 = vsel %vm310, %v969, 0
      %v1025 = vsel %vm310, %v970, 0
      %v1028 = vsel %vm310, %v971, 0
      %v1031 = vsel %vm310, %v972, 0
      %v1034 = vsel %vm310, %v973, 0
      %v1037 = vsel %vm310, %v974, 0
      %v1040 = vsel %vm310, %v975, 0
      %v1043 = vsel %vm310, %v976, 0
      %v1046 = vsel %vm310, %v977, 0
      %v1049 = vsel %vm310, %v978, 0
      %v1052 = vsel %vm310, %v979, 0
      %v1055 = vsel %vm310, %v980, 0
      %v1058 = vsel %vm310, %v981, 0
      %v1061 = vsel %vm310, %v982, 0
      %v1064 = vsel %vm310, %v983, 0
      %v1067 = vsel %vm310, %v984, 0
      %v1070 = vsel %vm310, %v985, 0
      %v1073 = vsel %vm310, %v986, 0
      %v1076 = vsel %vm310, %v987, 0
      %v1079 = vsel %vm310, %v988, 0
      %v1082 = vsel %vm310, %v989, 0
      %v1085 = vsel %vm310, %v990, 0
      %v1088 = vsel %vm310, %v991, 0
      %v1091 = vsel %vm407, %v993, 0
      %1093 = vmatprep.subr.mxu0 0.0
      %1094 = vmatpush1.msra.mxu0 0.0
      %1095 = vmatprep.subr.mxu0 0.0
      %1096 = vmatpush1.msra.mxu0 0.0
      %1097 = vmatprep.subr.mxu0 0.0
      %1098 = vmatpush1.msra.mxu0 0.0
      %1099 = vmatprep.subr.mxu0 0.0
      %1100 = vmatpush1.msra.mxu0 0.0
      %1101 = vmatprep.subr.mxu0 0.0
      %1102 = vmatpush1.msra.mxu0 0.0
      %1103 = vmatprep.subr.mxu0 0.0
      %1104 = vmatpush1.msra.mxu0 0.0
      %1105 = vmatprep.subr.mxu0 0.0
      %1106 = vmatpush1.msra.mxu0 0.0
      %1107 = vmatprep.subr.mxu0 0.0
      %1108 = vmatpush1.msra.mxu0 0.0
      %1109 = vmatprep.subr.mxu0 0.0
      %1110 = vmatpush1.msra.mxu0 0.0
      %1111 = vmatprep.subr.mxu0 0.0
      %1112 = vmatpush1.msra.mxu0 0.0
      %1113 = vmatprep.subr.mxu0 0.0
      %1114 = vmatpush1.msra.mxu0 0.0
      %1115 = vmatprep.subr.mxu0 0.0
      %1116 = vmatpush1.msra.mxu0 0.0
      %1117 = vmatprep.subr.mxu0 0.0
      %1118 = vmatpush1.msra.mxu0 0.0
      %1119 = vmatprep.subr.mxu0 0.0
      %1120 = vmatpush1.msra.mxu0 0.0
      %1121 = vmatprep.subr.mxu0 0.0
      %1122 = vmatpush1.msra.mxu0 0.0
      %1123 = vmatprep.subr.mxu0 0.0
      %1124 = vmatpush1.msra.mxu0 %v1091
      %1125 = vmatprep.subr.mxu0 0.0
      %1126 = vmatpush2.msra.mxu0 0.0
      %1127 = vmatprep.subr.mxu0 0.0
      %1128 = vmatpush2.msra.mxu0 0.0
      %1129 = vmatprep.subr.mxu0 0.0
      %1130 = vmatpush2.msra.mxu0 0.0
      %1131 = vmatprep.subr.mxu0 0.0
      %1132 = vmatpush2.msra.mxu0 0.0
      %1133 = vmatprep.subr.mxu0 0.0
      %1134 = vmatpush2.msra.mxu0 0.0
      %1135 = vmatprep.subr.mxu0 0.0
      %1136 = vmatpush2.msra.mxu0 0.0
      %1137 = vmatprep.subr.mxu0 0.0
      %1138 = vmatpush2.msra.mxu0 0.0
      %1139 = vmatprep.subr.mxu0 0.0
      %1140 = vmatpush2.msra.mxu0 0.0
      %1141 = vmatprep.subr.mxu0 0.0
      %1142 = vmatpush2.msra.mxu0 0.0
      %1143 = vmatprep.subr.mxu0 0.0
      %1144 = vmatpush2.msra.mxu0 0.0
      %1145 = vmatprep.subr.mxu0 0.0
      %1146 = vmatpush2.msra.mxu0 0.0
      %1147 = vmatprep.subr.mxu0 0.0
      %1148 = vmatpush2.msra.mxu0 0.0
      %1149 = vmatprep.subr.mxu0 0.0
      %1150 = vmatpush2.msra.mxu0 0.0
      %1151 = vmatprep.subr.mxu0 0.0
      %1152 = vmatpush2.msra.mxu0 0.0
      %1153 = vmatprep.subr.mxu0 0.0
      %1154 = vmatpush2.msra.mxu0 0.0
      %1155 = vmatprep.subr.mxu0 0.0
      %1156 = vmatpush2.msra.mxu0 0.0
      %1157 = vmatprep.mubr.f32.mxu0 0.0
      %1158 = vmatmul.mubr.f32.gmra.mxu0 %v995
      %v1159 = vpop.f32.mrf.mxu0
      %v1160 = vadd.f32 0.0, %v1159
      %v1161 = vpop.f32.mrf.mxu0
      %1162 = vmatprep.mubr.f32.mxu0 0.0
      %1163 = vmatmul.mubr.f32.gmra.mxu0 %v998
      %v1164 = vpop.f32.mrf.mxu0
      %v1165 = vadd.f32 0.0, %v1164
      %v1166 = vpop.f32.mrf.mxu0
      %1167 = vmatprep.mubr.f32.mxu0 0.0
      %1168 = vmatmul.mubr.f32.gmra.mxu0 %v1001
      %v1169 = vpop.f32.mrf.mxu0
      %v1170 = vadd.f32 0.0, %v1169
      %v1171 = vpop.f32.mrf.mxu0
      %1172 = vmatprep.mubr.f32.mxu0 0.0
      %1173 = vmatmul.mubr.f32.gmra.mxu0 %v1004
      %v1174 = vpop.f32.mrf.mxu0
      %v1175 = vadd.f32 0.0, %v1174
      %v1176 = vpop.f32.mrf.mxu0
      %1177 = vmatprep.mubr.f32.mxu0 0.0
      %1178 = vmatmul.mubr.f32.gmra.mxu0 %v1007
      %v1179 = vpop.f32.mrf.mxu0
      %v1180 = vadd.f32 0.0, %v1179
      %v1181 = vpop.f32.mrf.mxu0
      %1182 = vmatprep.mubr.f32.mxu0 0.0
      %1183 = vmatmul.mubr.f32.gmra.mxu0 %v1010
      %v1184 = vpop.f32.mrf.mxu0
      %v1185 = vadd.f32 0.0, %v1184
      %v1186 = vpop.f32.mrf.mxu0
      %1187 = vmatprep.mubr.f32.mxu0 0.0
      %1188 = vmatmul.mubr.f32.gmra.mxu0 %v1013
      %v1189 = vpop.f32.mrf.mxu0
      %v1190 = vadd.f32 0.0, %v1189
      %v1191 = vpop.f32.mrf.mxu0
      %1192 = vmatprep.mubr.f32.mxu0 0.0
      %1193 = vmatmul.mubr.f32.gmra.mxu0 %v1016
      %v1194 = vpop.f32.mrf.mxu0
      %v1195 = vadd.f32 0.0, %v1194
      %v1196 = vpop.f32.mrf.mxu0
      %1197 = vmatprep.mubr.f32.mxu0 0.0
      %1198 = vmatmul.mubr.f32.gmra.mxu0 %v1019
      %v1199 = vpop.f32.mrf.mxu0
      %v1200 = vadd.f32 0.0, %v1199
      %v1201 = vpop.f32.mrf.mxu0
      %1202 = vmatprep.mubr.f32.mxu0 0.0
      %1203 = vmatmul.mubr.f32.gmra.mxu0 %v1022
      %v1204 = vpop.f32.mrf.mxu0
      %v1205 = vadd.f32 0.0, %v1204
      %v1206 = vpop.f32.mrf.mxu0
      %1207 = vmatprep.mubr.f32.mxu0 0.0
      %1208 = vmatmul.mubr.f32.gmra.mxu0 %v1025
      %v1209 = vpop.f32.mrf.mxu0
      %v1210 = vadd.f32 0.0, %v1209
      %v1211 = vpop.f32.mrf.mxu0
      %1212 = vmatprep.mubr.f32.mxu0 0.0
      %1213 = vmatmul.mubr.f32.gmra.mxu0 %v1028
      %v1214 = vpop.f32.mrf.mxu0
      %v1215 = vadd.f32 0.0, %v1214
      %v1216 = vpop.f32.mrf.mxu0
      %1217 = vmatprep.mubr.f32.mxu0 0.0
      %1218 = vmatmul.mubr.f32.gmra.mxu0 %v1031
      %v1219 = vpop.f32.mrf.mxu0
      %v1220 = vadd.f32 0.0, %v1219
      %v1221 = vpop.f32.mrf.mxu0
      %1222 = vmatprep.mubr.f32.mxu0 0.0
      %1223 = vmatmul.mubr.f32.gmra.mxu0 %v1034
      %v1224 = vpop.f32.mrf.mxu0
      %v1225 = vadd.f32 0.0, %v1224
      %v1226 = vpop.f32.mrf.mxu0
      %1227 = vmatprep.mubr.f32.mxu0 0.0
      %1228 = vmatmul.mubr.f32.gmra.mxu0 %v1037
      %v1229 = vpop.f32.mrf.mxu0
      %v1230 = vadd.f32 0.0, %v1229
      %v1231 = vpop.f32.mrf.mxu0
      %1232 = vmatprep.mubr.f32.mxu0 0.0
      %1233 = vmatmul.mubr.f32.gmra.mxu0 %v1040
      %v1234 = vpop.f32.mrf.mxu0
      %v1235 = vadd.f32 0.0, %v1234
      %v1236 = vpop.f32.mrf.mxu0
      %1237 = vmatprep.mubr.f32.mxu0 0.0
      %1238 = vmatmul.mubr.f32.gmra.mxu0 %v1043
      %v1239 = vpop.f32.mrf.mxu0
      %v1240 = vadd.f32 0.0, %v1239
      %v1241 = vpop.f32.mrf.mxu0
      %1242 = vmatprep.mubr.f32.mxu0 0.0
      %1243 = vmatmul.mubr.f32.gmra.mxu0 %v1046
      %v1244 = vpop.f32.mrf.mxu0
      %v1245 = vadd.f32 0.0, %v1244
      %v1246 = vpop.f32.mrf.mxu0
      %1247 = vmatprep.mubr.f32.mxu0 0.0
      %1248 = vmatmul.mubr.f32.gmra.mxu0 %v1049
      %v1249 = vpop.f32.mrf.mxu0
      %v1250 = vadd.f32 0.0, %v1249
      %v1251 = vpop.f32.mrf.mxu0
      %1252 = vmatprep.mubr.f32.mxu0 0.0
      %1253 = vmatmul.mubr.f32.gmra.mxu0 %v1052
      %v1254 = vpop.f32.mrf.mxu0
      %v1255 = vadd.f32 0.0, %v1254
      %v1256 = vpop.f32.mrf.mxu0
      %1257 = vmatprep.mubr.f32.mxu0 0.0
      %1258 = vmatmul.mubr.f32.gmra.mxu0 %v1055
      %v1259 = vpop.f32.mrf.mxu0
      %v1260 = vadd.f32 0.0, %v1259
      %v1261 = vpop.f32.mrf.mxu0
      %1262 = vmatprep.mubr.f32.mxu0 0.0
      %1263 = vmatmul.mubr.f32.gmra.mxu0 %v1058
      %v1264 = vpop.f32.mrf.mxu0
      %v1265 = vadd.f32 0.0, %v1264
      %v1266 = vpop.f32.mrf.mxu0
      %1267 = vmatprep.mubr.f32.mxu0 0.0
      %1268 = vmatmul.mubr.f32.gmra.mxu0 %v1061
      %v1269 = vpop.f32.mrf.mxu0
      %v1270 = vadd.f32 0.0, %v1269
      %v1271 = vpop.f32.mrf.mxu0
      %1272 = vmatprep.mubr.f32.mxu0 0.0
      %1273 = vmatmul.mubr.f32.gmra.mxu0 %v1064
      %v1274 = vpop.f32.mrf.mxu0
      %v1275 = vadd.f32 0.0, %v1274
      %v1276 = vpop.f32.mrf.mxu0
      %1277 = vmatprep.mubr.f32.mxu0 0.0
      %1278 = vmatmul.mubr.f32.gmra.mxu0 %v1067
      %v1279 = vpop.f32.mrf.mxu0
      %v1280 = vadd.f32 0.0, %v1279
      %v1281 = vpop.f32.mrf.mxu0
      %1282 = vmatprep.mubr.f32.mxu0 0.0
      %1283 = vmatmul.mubr.f32.gmra.mxu0 %v1070
      %v1284 = vpop.f32.mrf.mxu0
      %v1285 = vadd.f32 0.0, %v1284
      %v1286 = vpop.f32.mrf.mxu0
      %1287 = vmatprep.mubr.f32.mxu0 0.0
      %1288 = vmatmul.mubr.f32.gmra.mxu0 %v1073
      %v1289 = vpop.f32.mrf.mxu0
      %v1290 = vadd.f32 0.0, %v1289
      %v1291 = vpop.f32.mrf.mxu0
      %1292 = vmatprep.mubr.f32.mxu0 0.0
      %1293 = vmatmul.mubr.f32.gmra.mxu0 %v1076
      %v1294 = vpop.f32.mrf.mxu0
      %v1295 = vadd.f32 0.0, %v1294
      %v1296 = vpop.f32.mrf.mxu0
      %1297 = vmatprep.mubr.f32.mxu0 0.0
      %1298 = vmatmul.mubr.f32.gmra.mxu0 %v1079
      %v1299 = vpop.f32.mrf.mxu0
      %v1300 = vadd.f32 0.0, %v1299
      %v1301 = vpop.f32.mrf.mxu0
      %1302 = vmatprep.mubr.f32.mxu0 0.0
      %1303 = vmatmul.mubr.f32.gmra.mxu0 %v1082
      %v1304 = vpop.f32.mrf.mxu0
      %v1305 = vadd.f32 0.0, %v1304
      %v1306 = vpop.f32.mrf.mxu0
      %1307 = vmatprep.mubr.f32.mxu0 0.0
      %1308 = vmatmul.mubr.f32.gmra.mxu0 %v1085
      %v1309 = vpop.f32.mrf.mxu0
      %v1310 = vadd.f32 0.0, %v1309
      %v1311 = vpop.f32.mrf.mxu0
      %1312 = vmatprep.mubr.f32.mxu0 0.0
      %1313 = vmatmul.mubr.f32.gmra.mxu0 %v1088
      %v1314 = vpop.f32.mrf.mxu0
      %v1315 = vadd.f32 0.0, %v1314
      %v1316 = vpop.f32.mrf.mxu0
      %1317 = vdwg.mxu0
      %v1318 = vadd.f32 %v802, %v1160
      %v1319 = vadd.f32 %v807, %v1165
      %v1320 = vadd.f32 %v812, %v1170
      %v1321 = vadd.f32 %v817, %v1175
      %v1322 = vadd.f32 %v822, %v1180
      %v1323 = vadd.f32 %v827, %v1185
      %v1324 = vadd.f32 %v832, %v1190
      %v1325 = vadd.f32 %v837, %v1195
      %v1326 = vadd.f32 %v842, %v1200
      %v1327 = vadd.f32 %v847, %v1205
      %v1328 = vadd.f32 %v852, %v1210
      %v1329 = vadd.f32 %v857, %v1215
      %v1330 = vadd.f32 %v862, %v1220
      %v1331 = vadd.f32 %v867, %v1225
      %v1332 = vadd.f32 %v872, %v1230
      %v1333 = vadd.f32 %v877, %v1235
      %v1334 = vadd.f32 %v882, %v1240
      %v1335 = vadd.f32 %v887, %v1245
      %v1336 = vadd.f32 %v892, %v1250
      %v1337 = vadd.f32 %v897, %v1255
      %v1338 = vadd.f32 %v902, %v1260
      %v1339 = vadd.f32 %v907, %v1265
      %v1340 = vadd.f32 %v912, %v1270
      %v1341 = vadd.f32 %v917, %v1275
      %v1342 = vadd.f32 %v922, %v1280
      %v1343 = vadd.f32 %v927, %v1285
      %v1344 = vadd.f32 %v932, %v1290
      %v1345 = vadd.f32 %v937, %v1295
      %v1346 = vadd.f32 %v942, %v1300
      %v1347 = vadd.f32 %v947, %v1305
      %v1348 = vadd.f32 %v952, %v1310
      %v1349 = vadd.f32 %v957, %v1315
      %v1350 = vld [vmem:[%s210] sm:$0xff]
      %v1351 = vld [vmem:[%s210 + $0x8] sm:$0xff]
      %v1352 = vld [vmem:[%s210 + $0x18] sm:$0xff]
      %v1353 = vld [vmem:[%s210 + $0x20] sm:$0xff]
      %v1354 = vld [vmem:[%s210 + $0x30] sm:$0xff]
      %v1355 = vld [vmem:[%s210 + $0x38] sm:$0xff]
      %v1356 = vld [vmem:[%s210 + $0x48] sm:$0xff]
      %v1357 = vld [vmem:[%s210 + $0x50] sm:$0xff]
      %v1358 = vld [vmem:[%s210 + $0x60] sm:$0xff]
      %v1359 = vld [vmem:[%s210 + $0x68] sm:$0xff]
      %v1360 = vld [vmem:[%s210 + $0x78] sm:$0xff]
      %v1361 = vld [vmem:[%s210 + $0x80] sm:$0xff]
      %v1362 = vld [vmem:[%s210 + $0x90] sm:$0xff]
      %v1363 = vld [vmem:[%s210 + $0x98] sm:$0xff]
      %v1364 = vld [vmem:[%s210 + $0xa8] sm:$0xff]
      %v1365 = vld [vmem:[%s210 + $0xb0] sm:$0xff]
      %v1366 = vld [vmem:[%s210 + $0xc0] sm:$0xff]
      %v1367 = vld [vmem:[%s210 + $0xc8] sm:$0xff]
      %v1368 = vld [vmem:[%s210 + $0xd8] sm:$0xff]
      %v1369 = vld [vmem:[%s210 + $0xe0] sm:$0xff]
      %v1370 = vld [vmem:[%s210 + $0xf0] sm:$0xff]
      %v1371 = vld [vmem:[%s210 + $0xf8] sm:$0xff]
      %v1372 = vld [vmem:[%s210 + $0x108] sm:$0xff]
      %v1373 = vld [vmem:[%s210 + $0x110] sm:$0xff]
      %v1374 = vld [vmem:[%s210 + $0x120] sm:$0xff]
      %v1375 = vld [vmem:[%s210 + $0x128] sm:$0xff]
      %v1376 = vld [vmem:[%s210 + $0x138] sm:$0xff]
      %v1377 = vld [vmem:[%s210 + $0x140] sm:$0xff]
      %v1378 = vld [vmem:[%s210 + $0x150] sm:$0xff]
      %v1379 = vld [vmem:[%s210 + $0x158] sm:$0xff]
      %v1380 = vld [vmem:[%s210 + $0x168] sm:$0xff]
      %v1381 = vld [vmem:[%s210 + $0x170] sm:$0xff]
      %s1382 = scalar_lea.vmem %s1, 12
      %v1383 = vld [vmem:[%s1382] sm:$0xf]
      %v1385 = vsel %vm310, %v1350, 0
      %v1388 = vsel %vm310, %v1351, 0
      %v1391 = vsel %vm310, %v1352, 0
      %v1394 = vsel %vm310, %v1353, 0
      %v1397 = vsel %vm310, %v1354, 0
      %v1400 = vsel %vm310, %v1355, 0
      %v1403 = vsel %vm310, %v1356, 0
      %v1406 = vsel %vm310, %v1357, 0
      %v1409 = vsel %vm310, %v1358, 0
      %v1412 = vsel %vm310, %v1359, 0
      %v1415 = vsel %vm310, %v1360, 0
      %v1418 = vsel %vm310, %v1361, 0
      %v1421 = vsel %vm310, %v1362, 0
      %v1424 = vsel %vm310, %v1363, 0
      %v1427 = vsel %vm310, %v1364, 0
      %v1430 = vsel %vm310, %v1365, 0
      %v1433 = vsel %vm310, %v1366, 0
      %v1436 = vsel %vm310, %v1367, 0
      %v1439 = vsel %vm310, %v1368, 0
      %v1442 = vsel %vm310, %v1369, 0
      %v1445 = vsel %vm310, %v1370, 0
      %v1448 = vsel %vm310, %v1371, 0
      %v1451 = vsel %vm310, %v1372, 0
      %v1454 = vsel %vm310, %v1373, 0
      %v1457 = vsel %vm310, %v1374, 0
      %v1460 = vsel %vm310, %v1375, 0
      %v1463 = vsel %vm310, %v1376, 0
      %v1466 = vsel %vm310, %v1377, 0
      %v1469 = vsel %vm310, %v1378, 0
      %v1472 = vsel %vm310, %v1379, 0
      %v1475 = vsel %vm310, %v1380, 0
      %v1478 = vsel %vm310, %v1381, 0
      %v1481 = vsel %vm407, %v1383, 0
      %1483 = vmatprep.subr.mxu0 0.0
      %1484 = vmatpush1.msra.mxu0 0.0
      %1485 = vmatprep.subr.mxu0 0.0
      %1486 = vmatpush1.msra.mxu0 0.0
      %1487 = vmatprep.subr.mxu0 0.0
      %1488 = vmatpush1.msra.mxu0 0.0
      %1489 = vmatprep.subr.mxu0 0.0
      %1490 = vmatpush1.msra.mxu0 0.0
      %1491 = vmatprep.subr.mxu0 0.0
      %1492 = vmatpush1.msra.mxu0 0.0
      %1493 = vmatprep.subr.mxu0 0.0
      %1494 = vmatpush1.msra.mxu0 0.0
      %1495 = vmatprep.subr.mxu0 0.0
      %1496 = vmatpush1.msra.mxu0 0.0
      %1497 = vmatprep.subr.mxu0 0.0
      %1498 = vmatpush1.msra.mxu0 0.0
      %1499 = vmatprep.subr.mxu0 0.0
      %1500 = vmatpush1.msra.mxu0 0.0
      %1501 = vmatprep.subr.mxu0 0.0
      %1502 = vmatpush1.msra.mxu0 0.0
      %1503 = vmatprep.subr.mxu0 0.0
      %1504 = vmatpush1.msra.mxu0 0.0
      %1505 = vmatprep.subr.mxu0 0.0
      %1506 = vmatpush1.msra.mxu0 0.0
      %1507 = vmatprep.subr.mxu0 0.0
      %1508 = vmatpush1.msra.mxu0 0.0
      %1509 = vmatprep.subr.mxu0 0.0
      %1510 = vmatpush1.msra.mxu0 0.0
      %1511 = vmatprep.subr.mxu0 0.0
      %1512 = vmatpush1.msra.mxu0 0.0
      %1513 = vmatprep.subr.mxu0 0.0
      %1514 = vmatpush1.msra.mxu0 %v1481
      %1515 = vmatprep.subr.mxu0 0.0
      %1516 = vmatpush2.msra.mxu0 0.0
      %1517 = vmatprep.subr.mxu0 0.0
      %1518 = vmatpush2.msra.mxu0 0.0
      %1519 = vmatprep.subr.mxu0 0.0
      %1520 = vmatpush2.msra.mxu0 0.0
      %1521 = vmatprep.subr.mxu0 0.0
      %1522 = vmatpush2.msra.mxu0 0.0
      %1523 = vmatprep.subr.mxu0 0.0
      %1524 = vmatpush2.msra.mxu0 0.0
      %1525 = vmatprep.subr.mxu0 0.0
      %1526 = vmatpush2.msra.mxu0 0.0
      %1527 = vmatprep.subr.mxu0 0.0
      %1528 = vmatpush2.msra.mxu0 0.0
      %1529 = vmatprep.subr.mxu0 0.0
      %1530 = vmatpush2.msra.mxu0 0.0
      %1531 = vmatprep.subr.mxu0 0.0
      %1532 = vmatpush2.msra.mxu0 0.0
      %1533 = vmatprep.subr.mxu0 0.0
      %1534 = vmatpush2.msra.mxu0 0.0
      %1535 = vmatprep.subr.mxu0 0.0
      %1536 = vmatpush2.msra.mxu0 0.0
      %1537 = vmatprep.subr.mxu0 0.0
      %1538 = vmatpush2.msra.mxu0 0.0
      %1539 = vmatprep.subr.mxu0 0.0
      %1540 = vmatpush2.msra.mxu0 0.0
      %1541 = vmatprep.subr.mxu0 0.0
      %1542 = vmatpush2.msra.mxu0 0.0
      %1543 = vmatprep.subr.mxu0 0.0
      %1544 = vmatpush2.msra.mxu0 0.0
      %1545 = vmatprep.subr.mxu0 0.0
      %1546 = vmatpush2.msra.mxu0 0.0
      %1547 = vmatprep.mubr.f32.mxu0 0.0
      %1548 = vmatmul.mubr.f32.gmra.mxu0 %v1385
      %v1549 = vpop.f32.mrf.mxu0
      %v1550 = vadd.f32 0.0, %v1549
      %v1551 = vpop.f32.mrf.mxu0
      %1552 = vmatprep.mubr.f32.mxu0 0.0
      %1553 = vmatmul.mubr.f32.gmra.mxu0 %v1388
      %v1554 = vpop.f32.mrf.mxu0
      %v1555 = vadd.f32 0.0, %v1554
      %v1556 = vpop.f32.mrf.mxu0
      %1557 = vmatprep.mubr.f32.mxu0 0.0
      %1558 = vmatmul.mubr.f32.gmra.mxu0 %v1391
      %v1559 = vpop.f32.mrf.mxu0
      %v1560 = vadd.f32 0.0, %v1559
      %v1561 = vpop.f32.mrf.mxu0
      %1562 = vmatprep.mubr.f32.mxu0 0.0
      %1563 = vmatmul.mubr.f32.gmra.mxu0 %v1394
      %v1564 = vpop.f32.mrf.mxu0
      %v1565 = vadd.f32 0.0, %v1564
      %v1566 = vpop.f32.mrf.mxu0
      %1567 = vmatprep.mubr.f32.mxu0 0.0
      %1568 = vmatmul.mubr.f32.gmra.mxu0 %v1397
      %v1569 = vpop.f32.mrf.mxu0
      %v1570 = vadd.f32 0.0, %v1569
      %v1571 = vpop.f32.mrf.mxu0
      %1572 = vmatprep.mubr.f32.mxu0 0.0
      %1573 = vmatmul.mubr.f32.gmra.mxu0 %v1400
      %v1574 = vpop.f32.mrf.mxu0
      %v1575 = vadd.f32 0.0, %v1574
      %v1576 = vpop.f32.mrf.mxu0
      %1577 = vmatprep.mubr.f32.mxu0 0.0
      %1578 = vmatmul.mubr.f32.gmra.mxu0 %v1403
      %v1579 = vpop.f32.mrf.mxu0
      %v1580 = vadd.f32 0.0, %v1579
      %v1581 = vpop.f32.mrf.mxu0
      %1582 = vmatprep.mubr.f32.mxu0 0.0
      %1583 = vmatmul.mubr.f32.gmra.mxu0 %v1406
      %v1584 = vpop.f32.mrf.mxu0
      %v1585 = vadd.f32 0.0, %v1584
      %v1586 = vpop.f32.mrf.mxu0
      %1587 = vmatprep.mubr.f32.mxu0 0.0
      %1588 = vmatmul.mubr.f32.gmra.mxu0 %v1409
      %v1589 = vpop.f32.mrf.mxu0
      %v1590 = vadd.f32 0.0, %v1589
      %v1591 = vpop.f32.mrf.mxu0
      %1592 = vmatprep.mubr.f32.mxu0 0.0
      %1593 = vmatmul.mubr.f32.gmra.mxu0 %v1412
      %v1594 = vpop.f32.mrf.mxu0
      %v1595 = vadd.f32 0.0, %v1594
      %v1596 = vpop.f32.mrf.mxu0
      %1597 = vmatprep.mubr.f32.mxu0 0.0
      %1598 = vmatmul.mubr.f32.gmra.mxu0 %v1415
      %v1599 = vpop.f32.mrf.mxu0
      %v1600 = vadd.f32 0.0, %v1599
      %v1601 = vpop.f32.mrf.mxu0
      %1602 = vmatprep.mubr.f32.mxu0 0.0
      %1603 = vmatmul.mubr.f32.gmra.mxu0 %v1418
      %v1604 = vpop.f32.mrf.mxu0
      %v1605 = vadd.f32 0.0, %v1604
      %v1606 = vpop.f32.mrf.mxu0
      %1607 = vmatprep.mubr.f32.mxu0 0.0
      %1608 = vmatmul.mubr.f32.gmra.mxu0 %v1421
      %v1609 = vpop.f32.mrf.mxu0
      %v1610 = vadd.f32 0.0, %v1609
      %v1611 = vpop.f32.mrf.mxu0
      %1612 = vmatprep.mubr.f32.mxu0 0.0
      %1613 = vmatmul.mubr.f32.gmra.mxu0 %v1424
      %v1614 = vpop.f32.mrf.mxu0
      %v1615 = vadd.f32 0.0, %v1614
      %v1616 = vpop.f32.mrf.mxu0
      %1617 = vmatprep.mubr.f32.mxu0 0.0
      %1618 = vmatmul.mubr.f32.gmra.mxu0 %v1427
      %v1619 = vpop.f32.mrf.mxu0
      %v1620 = vadd.f32 0.0, %v1619
      %v1621 = vpop.f32.mrf.mxu0
      %1622 = vmatprep.mubr.f32.mxu0 0.0
      %1623 = vmatmul.mubr.f32.gmra.mxu0 %v1430
      %v1624 = vpop.f32.mrf.mxu0
      %v1625 = vadd.f32 0.0, %v1624
      %v1626 = vpop.f32.mrf.mxu0
      %1627 = vmatprep.mubr.f32.mxu0 0.0
      %1628 = vmatmul.mubr.f32.gmra.mxu0 %v1433
      %v1629 = vpop.f32.mrf.mxu0
      %v1630 = vadd.f32 0.0, %v1629
      %v1631 = vpop.f32.mrf.mxu0
      %1632 = vmatprep.mubr.f32.mxu0 0.0
      %1633 = vmatmul.mubr.f32.gmra.mxu0 %v1436
      %v1634 = vpop.f32.mrf.mxu0
      %v1635 = vadd.f32 0.0, %v1634
      %v1636 = vpop.f32.mrf.mxu0
      %1637 = vmatprep.mubr.f32.mxu0 0.0
      %1638 = vmatmul.mubr.f32.gmra.mxu0 %v1439
      %v1639 = vpop.f32.mrf.mxu0
      %v1640 = vadd.f32 0.0, %v1639
      %v1641 = vpop.f32.mrf.mxu0
      %1642 = vmatprep.mubr.f32.mxu0 0.0
      %1643 = vmatmul.mubr.f32.gmra.mxu0 %v1442
      %v1644 = vpop.f32.mrf.mxu0
      %v1645 = vadd.f32 0.0, %v1644
      %v1646 = vpop.f32.mrf.mxu0
      %1647 = vmatprep.mubr.f32.mxu0 0.0
      %1648 = vmatmul.mubr.f32.gmra.mxu0 %v1445
      %v1649 = vpop.f32.mrf.mxu0
      %v1650 = vadd.f32 0.0, %v1649
      %v1651 = vpop.f32.mrf.mxu0
      %1652 = vmatprep.mubr.f32.mxu0 0.0
      %1653 = vmatmul.mubr.f32.gmra.mxu0 %v1448
      %v1654 = vpop.f32.mrf.mxu0
      %v1655 = vadd.f32 0.0, %v1654
      %v1656 = vpop.f32.mrf.mxu0
      %1657 = vmatprep.mubr.f32.mxu0 0.0
      %1658 = vmatmul.mubr.f32.gmra.mxu0 %v1451
      %v1659 = vpop.f32.mrf.mxu0
      %v1660 = vadd.f32 0.0, %v1659
      %v1661 = vpop.f32.mrf.mxu0
      %1662 = vmatprep.mubr.f32.mxu0 0.0
      %1663 = vmatmul.mubr.f32.gmra.mxu0 %v1454
      %v1664 = vpop.f32.mrf.mxu0
      %v1665 = vadd.f32 0.0, %v1664
      %v1666 = vpop.f32.mrf.mxu0
      %1667 = vmatprep.mubr.f32.mxu0 0.0
      %1668 = vmatmul.mubr.f32.gmra.mxu0 %v1457
      %v1669 = vpop.f32.mrf.mxu0
      %v1670 = vadd.f32 0.0, %v1669
      %v1671 = vpop.f32.mrf.mxu0
      %1672 = vmatprep.mubr.f32.mxu0 0.0
      %1673 = vmatmul.mubr.f32.gmra.mxu0 %v1460
      %v1674 = vpop.f32.mrf.mxu0
      %v1675 = vadd.f32 0.0, %v1674
      %v1676 = vpop.f32.mrf.mxu0
      %1677 = vmatprep.mubr.f32.mxu0 0.0
      %1678 = vmatmul.mubr.f32.gmra.mxu0 %v1463
      %v1679 = vpop.f32.mrf.mxu0
      %v1680 = vadd.f32 0.0, %v1679
      %v1681 = vpop.f32.mrf.mxu0
      %1682 = vmatprep.mubr.f32.mxu0 0.0
      %1683 = vmatmul.mubr.f32.gmra.mxu0 %v1466
      %v1684 = vpop.f32.mrf.mxu0
      %v1685 = vadd.f32 0.0, %v1684
      %v1686 = vpop.f32.mrf.mxu0
      %1687 = vmatprep.mubr.f32.mxu0 0.0
      %1688 = vmatmul.mubr.f32.gmra.mxu0 %v1469
      %v1689 = vpop.f32.mrf.mxu0
      %v1690 = vadd.f32 0.0, %v1689
      %v1691 = vpop.f32.mrf.mxu0
      %1692 = vmatprep.mubr.f32.mxu0 0.0
      %1693 = vmatmul.mubr.f32.gmra.mxu0 %v1472
      %v1694 = vpop.f32.mrf.mxu0
      %v1695 = vadd.f32 0.0, %v1694
      %v1696 = vpop.f32.mrf.mxu0
      %1697 = vmatprep.mubr.f32.mxu0 0.0
      %1698 = vmatmul.mubr.f32.gmra.mxu0 %v1475
      %v1699 = vpop.f32.mrf.mxu0
      %v1700 = vadd.f32 0.0, %v1699
      %v1701 = vpop.f32.mrf.mxu0
      %1702 = vmatprep.mubr.f32.mxu0 0.0
      %1703 = vmatmul.mubr.f32.gmra.mxu0 %v1478
      %v1704 = vpop.f32.mrf.mxu0
      %v1705 = vadd.f32 0.0, %v1704
      %v1706 = vpop.f32.mrf.mxu0
      %1707 = vdwg.mxu0
      %v1708 = vadd.f32 %v1318, %v1550
      %v1709 = vadd.f32 %v1319, %v1555
      %v1710 = vadd.f32 %v1320, %v1560
      %v1711 = vadd.f32 %v1321, %v1565
      %v1712 = vadd.f32 %v1322, %v1570
      %v1713 = vadd.f32 %v1323, %v1575
      %v1714 = vadd.f32 %v1324, %v1580
      %v1715 = vadd.f32 %v1325, %v1585
      %v1716 = vadd.f32 %v1326, %v1590
      %v1717 = vadd.f32 %v1327, %v1595
      %v1718 = vadd.f32 %v1328, %v1600
      %v1719 = vadd.f32 %v1329, %v1605
      %v1720 = vadd.f32 %v1330, %v1610
      %v1721 = vadd.f32 %v1331, %v1615
      %v1722 = vadd.f32 %v1332, %v1620
      %v1723 = vadd.f32 %v1333, %v1625
      %v1724 = vadd.f32 %v1334, %v1630
      %v1725 = vadd.f32 %v1335, %v1635
      %v1726 = vadd.f32 %v1336, %v1640
      %v1727 = vadd.f32 %v1337, %v1645
      %v1728 = vadd.f32 %v1338, %v1650
      %v1729 = vadd.f32 %v1339, %v1655
      %v1730 = vadd.f32 %v1340, %v1660
      %v1731 = vadd.f32 %v1341, %v1665
      %v1732 = vadd.f32 %v1342, %v1670
      %v1733 = vadd.f32 %v1343, %v1675
      %v1734 = vadd.f32 %v1344, %v1680
      %v1735 = vadd.f32 %v1345, %v1685
      %v1736 = vadd.f32 %v1346, %v1690
      %v1737 = vadd.f32 %v1347, %v1695
      %v1738 = vadd.f32 %v1348, %v1700
      %v1739 = vadd.f32 %v1349, %v1705
      %s1740 = scalar_lea.vmem %s1, 16
      %v1741 = vld [vmem:[%s1740] sm:$0xf]
      %v1743 = vsel %vm310, %v211, 0
      %v1746 = vsel %vm310, %v212, 0
      %v1749 = vsel %vm310, %v213, 0
      %v1752 = vsel %vm310, %v214, 0
      %v1755 = vsel %vm310, %v215, 0
      %v1758 = vsel %vm310, %v216, 0
      %v1761 = vsel %vm310, %v217, 0
      %v1764 = vsel %vm310, %v218, 0
      %v1767 = vsel %vm310, %v219, 0
      %v1770 = vsel %vm310, %v220, 0
      %v1773 = vsel %vm310, %v221, 0
      %v1776 = vsel %vm310, %v222, 0
      %v1779 = vsel %vm310, %v223, 0
      %v1782 = vsel %vm310, %v224, 0
      %v1785 = vsel %vm310, %v225, 0
      %v1788 = vsel %vm310, %v226, 0
      %v1791 = vsel %vm310, %v227, 0
      %v1794 = vsel %vm310, %v228, 0
      %v1797 = vsel %vm310, %v229, 0
      %v1800 = vsel %vm310, %v230, 0
      %v1803 = vsel %vm310, %v231, 0
      %v1806 = vsel %vm310, %v232, 0
      %v1809 = vsel %vm310, %v233, 0
      %v1812 = vsel %vm310, %v234, 0
      %v1815 = vsel %vm310, %v235, 0
      %v1818 = vsel %vm310, %v236, 0
      %v1821 = vsel %vm310, %v237, 0
      %v1824 = vsel %vm310, %v238, 0
      %v1827 = vsel %vm310, %v239, 0
      %v1830 = vsel %vm310, %v240, 0
      %v1833 = vsel %vm310, %v241, 0
      %v1836 = vsel %vm310, %v242, 0
      %v1839 = vsel %vm407, %v1741, 0
      %1841 = vmatprep.subr.mxu0 0.0
      %1842 = vmatpush1.msra.mxu0 0.0
      %1843 = vmatprep.subr.mxu0 0.0
      %1844 = vmatpush1.msra.mxu0 0.0
      %1845 = vmatprep.subr.mxu0 0.0
      %1846 = vmatpush1.msra.mxu0 0.0
      %1847 = vmatprep.subr.mxu0 0.0
      %1848 = vmatpush1.msra.mxu0 0.0
      %1849 = vmatprep.subr.mxu0 0.0
      %1850 = vmatpush1.msra.mxu0 0.0
      %1851 = vmatprep.subr.mxu0 0.0
      %1852 = vmatpush1.msra.mxu0 0.0
      %1853 = vmatprep.subr.mxu0 0.0
      %1854 = vmatpush1.msra.mxu0 0.0
      %1855 = vmatprep.subr.mxu0 0.0
      %1856 = vmatpush1.msra.mxu0 0.0
      %1857 = vmatprep.subr.mxu0 0.0
      %1858 = vmatpush1.msra.mxu0 0.0
      %1859 = vmatprep.subr.mxu0 0.0
      %1860 = vmatpush1.msra.mxu0 0.0
      %1861 = vmatprep.subr.mxu0 0.0
      %1862 = vmatpush1.msra.mxu0 0.0
      %1863 = vmatprep.subr.mxu0 0.0
      %1864 = vmatpush1.msra.mxu0 0.0
      %1865 = vmatprep.subr.mxu0 0.0
      %1866 = vmatpush1.msra.mxu0 0.0
      %1867 = vmatprep.subr.mxu0 0.0
      %1868 = vmatpush1.msra.mxu0 0.0
      %1869 = vmatprep.subr.mxu0 0.0
      %1870 = vmatpush1.msra.mxu0 0.0
      %1871 = vmatprep.subr.mxu0 0.0
      %1872 = vmatpush1.msra.mxu0 %v1839
      %1873 = vmatprep.subr.mxu0 0.0
      %1874 = vmatpush2.msra.mxu0 0.0
      %1875 = vmatprep.subr.mxu0 0.0
      %1876 = vmatpush2.msra.mxu0 0.0
      %1877 = vmatprep.subr.mxu0 0.0
      %1878 = vmatpush2.msra.mxu0 0.0
      %1879 = vmatprep.subr.mxu0 0.0
      %1880 = vmatpush2.msra.mxu0 0.0
      %1881 = vmatprep.subr.mxu0 0.0
      %1882 = vmatpush2.msra.mxu0 0.0
      %1883 = vmatprep.subr.mxu0 0.0
      %1884 = vmatpush2.msra.mxu0 0.0
      %1885 = vmatprep.subr.mxu0 0.0
      %1886 = vmatpush2.msra.mxu0 0.0
      %1887 = vmatprep.subr.mxu0 0.0
      %1888 = vmatpush2.msra.mxu0 0.0
      %1889 = vmatprep.subr.mxu0 0.0
      %1890 = vmatpush2.msra.mxu0 0.0
      %1891 = vmatprep.subr.mxu0 0.0
      %1892 = vmatpush2.msra.mxu0 0.0
      %1893 = vmatprep.subr.mxu0 0.0
      %1894 = vmatpush2.msra.mxu0 0.0
      %1895 = vmatprep.subr.mxu0 0.0
      %1896 = vmatpush2.msra.mxu0 0.0
      %1897 = vmatprep.subr.mxu0 0.0
      %1898 = vmatpush2.msra.mxu0 0.0
      %1899 = vmatprep.subr.mxu0 0.0
      %1900 = vmatpush2.msra.mxu0 0.0
      %1901 = vmatprep.subr.mxu0 0.0
      %1902 = vmatpush2.msra.mxu0 0.0
      %1903 = vmatprep.subr.mxu0 0.0
      %1904 = vmatpush2.msra.mxu0 0.0
      %1905 = vmatprep.mubr.f32.mxu0 0.0
      %1906 = vmatmul.mubr.f32.gmra.mxu0 %v1743
      %v1907 = vpop.f32.mrf.mxu0
      %v1908 = vadd.f32 0.0, %v1907
      %v1909 = vpop.f32.mrf.mxu0
      %1910 = vmatprep.mubr.f32.mxu0 0.0
      %1911 = vmatmul.mubr.f32.gmra.mxu0 %v1746
      %v1912 = vpop.f32.mrf.mxu0
      %v1913 = vadd.f32 0.0, %v1912
      %v1914 = vpop.f32.mrf.mxu0
      %1915 = vmatprep.mubr.f32.mxu0 0.0
      %1916 = vmatmul.mubr.f32.gmra.mxu0 %v1749
      %v1917 = vpop.f32.mrf.mxu0
      %v1918 = vadd.f32 0.0, %v1917
      %v1919 = vpop.f32.mrf.mxu0
      %1920 = vmatprep.mubr.f32.mxu0 0.0
      %1921 = vmatmul.mubr.f32.gmra.mxu0 %v1752
      %v1922 = vpop.f32.mrf.mxu0
      %v1923 = vadd.f32 0.0, %v1922
      %v1924 = vpop.f32.mrf.mxu0
      %1925 = vmatprep.mubr.f32.mxu0 0.0
      %1926 = vmatmul.mubr.f32.gmra.mxu0 %v1755
      %v1927 = vpop.f32.mrf.mxu0
      %v1928 = vadd.f32 0.0, %v1927
      %v1929 = vpop.f32.mrf.mxu0
      %1930 = vmatprep.mubr.f32.mxu0 0.0
      %1931 = vmatmul.mubr.f32.gmra.mxu0 %v1758
      %v1932 = vpop.f32.mrf.mxu0
      %v1933 = vadd.f32 0.0, %v1932
      %v1934 = vpop.f32.mrf.mxu0
      %1935 = vmatprep.mubr.f32.mxu0 0.0
      %1936 = vmatmul.mubr.f32.gmra.mxu0 %v1761
      %v1937 = vpop.f32.mrf.mxu0
      %v1938 = vadd.f32 0.0, %v1937
      %v1939 = vpop.f32.mrf.mxu0
      %1940 = vmatprep.mubr.f32.mxu0 0.0
      %1941 = vmatmul.mubr.f32.gmra.mxu0 %v1764
      %v1942 = vpop.f32.mrf.mxu0
      %v1943 = vadd.f32 0.0, %v1942
      %v1944 = vpop.f32.mrf.mxu0
      %1945 = vmatprep.mubr.f32.mxu0 0.0
      %1946 = vmatmul.mubr.f32.gmra.mxu0 %v1767
      %v1947 = vpop.f32.mrf.mxu0
      %v1948 = vadd.f32 0.0, %v1947
      %v1949 = vpop.f32.mrf.mxu0
      %1950 = vmatprep.mubr.f32.mxu0 0.0
      %1951 = vmatmul.mubr.f32.gmra.mxu0 %v1770
      %v1952 = vpop.f32.mrf.mxu0
      %v1953 = vadd.f32 0.0, %v1952
      %v1954 = vpop.f32.mrf.mxu0
      %1955 = vmatprep.mubr.f32.mxu0 0.0
      %1956 = vmatmul.mubr.f32.gmra.mxu0 %v1773
      %v1957 = vpop.f32.mrf.mxu0
      %v1958 = vadd.f32 0.0, %v1957
      %v1959 = vpop.f32.mrf.mxu0
      %1960 = vmatprep.mubr.f32.mxu0 0.0
      %1961 = vmatmul.mubr.f32.gmra.mxu0 %v1776
      %v1962 = vpop.f32.mrf.mxu0
      %v1963 = vadd.f32 0.0, %v1962
      %v1964 = vpop.f32.mrf.mxu0
      %1965 = vmatprep.mubr.f32.mxu0 0.0
      %1966 = vmatmul.mubr.f32.gmra.mxu0 %v1779
      %v1967 = vpop.f32.mrf.mxu0
      %v1968 = vadd.f32 0.0, %v1967
      %v1969 = vpop.f32.mrf.mxu0
      %1970 = vmatprep.mubr.f32.mxu0 0.0
      %1971 = vmatmul.mubr.f32.gmra.mxu0 %v1782
      %v1972 = vpop.f32.mrf.mxu0
      %v1973 = vadd.f32 0.0, %v1972
      %v1974 = vpop.f32.mrf.mxu0
      %1975 = vmatprep.mubr.f32.mxu0 0.0
      %1976 = vmatmul.mubr.f32.gmra.mxu0 %v1785
      %v1977 = vpop.f32.mrf.mxu0
      %v1978 = vadd.f32 0.0, %v1977
      %v1979 = vpop.f32.mrf.mxu0
      %1980 = vmatprep.mubr.f32.mxu0 0.0
      %1981 = vmatmul.mubr.f32.gmra.mxu0 %v1788
      %v1982 = vpop.f32.mrf.mxu0
      %v1983 = vadd.f32 0.0, %v1982
      %v1984 = vpop.f32.mrf.mxu0
      %1985 = vmatprep.mubr.f32.mxu0 0.0
      %1986 = vmatmul.mubr.f32.gmra.mxu0 %v1791
      %v1987 = vpop.f32.mrf.mxu0
      %v1988 = vadd.f32 0.0, %v1987
      %v1989 = vpop.f32.mrf.mxu0
      %1990 = vmatprep.mubr.f32.mxu0 0.0
      %1991 = vmatmul.mubr.f32.gmra.mxu0 %v1794
      %v1992 = vpop.f32.mrf.mxu0
      %v1993 = vadd.f32 0.0, %v1992
      %v1994 = vpop.f32.mrf.mxu0
      %1995 = vmatprep.mubr.f32.mxu0 0.0
      %1996 = vmatmul.mubr.f32.gmra.mxu0 %v1797
      %v1997 = vpop.f32.mrf.mxu0
      %v1998 = vadd.f32 0.0, %v1997
      %v1999 = vpop.f32.mrf.mxu0
      %2000 = vmatprep.mubr.f32.mxu0 0.0
      %2001 = vmatmul.mubr.f32.gmra.mxu0 %v1800
      %v2002 = vpop.f32.mrf.mxu0
      %v2003 = vadd.f32 0.0, %v2002
      %v2004 = vpop.f32.mrf.mxu0
      %2005 = vmatprep.mubr.f32.mxu0 0.0
      %2006 = vmatmul.mubr.f32.gmra.mxu0 %v1803
      %v2007 = vpop.f32.mrf.mxu0
      %v2008 = vadd.f32 0.0, %v2007
      %v2009 = vpop.f32.mrf.mxu0
      %2010 = vmatprep.mubr.f32.mxu0 0.0
      %2011 = vmatmul.mubr.f32.gmra.mxu0 %v1806
      %v2012 = vpop.f32.mrf.mxu0
      %v2013 = vadd.f32 0.0, %v2012
      %v2014 = vpop.f32.mrf.mxu0
      %2015 = vmatprep.mubr.f32.mxu0 0.0
      %2016 = vmatmul.mubr.f32.gmra.mxu0 %v1809
      %v2017 = vpop.f32.mrf.mxu0
      %v2018 = vadd.f32 0.0, %v2017
      %v2019 = vpop.f32.mrf.mxu0
      %2020 = vmatprep.mubr.f32.mxu0 0.0
      %2021 = vmatmul.mubr.f32.gmra.mxu0 %v1812
      %v2022 = vpop.f32.mrf.mxu0
      %v2023 = vadd.f32 0.0, %v2022
      %v2024 = vpop.f32.mrf.mxu0
      %2025 = vmatprep.mubr.f32.mxu0 0.0
      %2026 = vmatmul.mubr.f32.gmra.mxu0 %v1815
      %v2027 = vpop.f32.mrf.mxu0
      %v2028 = vadd.f32 0.0, %v2027
      %v2029 = vpop.f32.mrf.mxu0
      %2030 = vmatprep.mubr.f32.mxu0 0.0
      %2031 = vmatmul.mubr.f32.gmra.mxu0 %v1818
      %v2032 = vpop.f32.mrf.mxu0
      %v2033 = vadd.f32 0.0, %v2032
      %v2034 = vpop.f32.mrf.mxu0
      %2035 = vmatprep.mubr.f32.mxu0 0.0
      %2036 = vmatmul.mubr.f32.gmra.mxu0 %v1821
      %v2037 = vpop.f32.mrf.mxu0
      %v2038 = vadd.f32 0.0, %v2037
      %v2039 = vpop.f32.mrf.mxu0
      %2040 = vmatprep.mubr.f32.mxu0 0.0
      %2041 = vmatmul.mubr.f32.gmra.mxu0 %v1824
      %v2042 = vpop.f32.mrf.mxu0
      %v2043 = vadd.f32 0.0, %v2042
      %v2044 = vpop.f32.mrf.mxu0
      %2045 = vmatprep.mubr.f32.mxu0 0.0
      %2046 = vmatmul.mubr.f32.gmra.mxu0 %v1827
      %v2047 = vpop.f32.mrf.mxu0
      %v2048 = vadd.f32 0.0, %v2047
      %v2049 = vpop.f32.mrf.mxu0
      %2050 = vmatprep.mubr.f32.mxu0 0.0
      %2051 = vmatmul.mubr.f32.gmra.mxu0 %v1830
      %v2052 = vpop.f32.mrf.mxu0
      %v2053 = vadd.f32 0.0, %v2052
      %v2054 = vpop.f32.mrf.mxu0
      %2055 = vmatprep.mubr.f32.mxu0 0.0
      %2056 = vmatmul.mubr.f32.gmra.mxu0 %v1833
      %v2057 = vpop.f32.mrf.mxu0
      %v2058 = vadd.f32 0.0, %v2057
      %v2059 = vpop.f32.mrf.mxu0
      %2060 = vmatprep.mubr.f32.mxu0 0.0
      %2061 = vmatmul.mubr.f32.gmra.mxu0 %v1836
      %v2062 = vpop.f32.mrf.mxu0
      %v2063 = vadd.f32 0.0, %v2062
      %v2064 = vpop.f32.mrf.mxu0
      %2065 = vdwg.mxu0
      %v2066 = vadd.f32 %v1708, %v1908
      %v2067 = vadd.f32 %v1709, %v1913
      %v2068 = vadd.f32 %v1710, %v1918
      %v2069 = vadd.f32 %v1711, %v1923
      %v2070 = vadd.f32 %v1712, %v1928
      %v2071 = vadd.f32 %v1713, %v1933
      %v2072 = vadd.f32 %v1714, %v1938
      %v2073 = vadd.f32 %v1715, %v1943
      %v2074 = vadd.f32 %v1716, %v1948
      %v2075 = vadd.f32 %v1717, %v1953
      %v2076 = vadd.f32 %v1718, %v1958
      %v2077 = vadd.f32 %v1719, %v1963
      %v2078 = vadd.f32 %v1720, %v1968
      %v2079 = vadd.f32 %v1721, %v1973
      %v2080 = vadd.f32 %v1722, %v1978
      %v2081 = vadd.f32 %v1723, %v1983
      %v2082 = vadd.f32 %v1724, %v1988
      %v2083 = vadd.f32 %v1725, %v1993
      %v2084 = vadd.f32 %v1726, %v1998
      %v2085 = vadd.f32 %v1727, %v2003
      %v2086 = vadd.f32 %v1728, %v2008
      %v2087 = vadd.f32 %v1729, %v2013
      %v2088 = vadd.f32 %v1730, %v2018
      %v2089 = vadd.f32 %v1731, %v2023
      %v2090 = vadd.f32 %v1732, %v2028
      %v2091 = vadd.f32 %v1733, %v2033
      %v2092 = vadd.f32 %v1734, %v2038
      %v2093 = vadd.f32 %v1735, %v2043
      %v2094 = vadd.f32 %v1736, %v2048
      %v2095 = vadd.f32 %v1737, %v2053
      %v2096 = vadd.f32 %v1738, %v2058
      %v2097 = vadd.f32 %v1739, %v2063
      %v2098 = vld [vmem:[%s210 + $0x2] sm:$0xff]
      %v2099 = vld [vmem:[%s210 + $0xa] sm:$0xff]
      %v2100 = vld [vmem:[%s210 + $0x1a] sm:$0xff]
      %v2101 = vld [vmem:[%s210 + $0x22] sm:$0xff]
      %v2102 = vld [vmem:[%s210 + $0x32] sm:$0xff]
      %v2103 = vld [vmem:[%s210 + $0x3a] sm:$0xff]
      %v2104 = vld [vmem:[%s210 + $0x4a] sm:$0xff]
      %v2105 = vld [vmem:[%s210 + $0x52] sm:$0xff]
      %v2106 = vld [vmem:[%s210 + $0x62] sm:$0xff]
      %v2107 = vld [vmem:[%s210 + $0x6a] sm:$0xff]
      %v2108 = vld [vmem:[%s210 + $0x7a] sm:$0xff]
      %v2109 = vld [vmem:[%s210 + $0x82] sm:$0xff]
      %v2110 = vld [vmem:[%s210 + $0x92] sm:$0xff]
      %v2111 = vld [vmem:[%s210 + $0x9a] sm:$0xff]
      %v2112 = vld [vmem:[%s210 + $0xaa] sm:$0xff]
      %v2113 = vld [vmem:[%s210 + $0xb2] sm:$0xff]
      %v2114 = vld [vmem:[%s210 + $0xc2] sm:$0xff]
      %v2115 = vld [vmem:[%s210 + $0xca] sm:$0xff]
      %v2116 = vld [vmem:[%s210 + $0xda] sm:$0xff]
      %v2117 = vld [vmem:[%s210 + $0xe2] sm:$0xff]
      %v2118 = vld [vmem:[%s210 + $0xf2] sm:$0xff]
      %v2119 = vld [vmem:[%s210 + $0xfa] sm:$0xff]
      %v2120 = vld [vmem:[%s210 + $0x10a] sm:$0xff]
      %v2121 = vld [vmem:[%s210 + $0x112] sm:$0xff]
      %v2122 = vld [vmem:[%s210 + $0x122] sm:$0xff]
      %v2123 = vld [vmem:[%s210 + $0x12a] sm:$0xff]
      %v2124 = vld [vmem:[%s210 + $0x13a] sm:$0xff]
      %v2125 = vld [vmem:[%s210 + $0x142] sm:$0xff]
      %v2126 = vld [vmem:[%s210 + $0x152] sm:$0xff]
      %v2127 = vld [vmem:[%s210 + $0x15a] sm:$0xff]
      %v2128 = vld [vmem:[%s210 + $0x16a] sm:$0xff]
      %v2129 = vld [vmem:[%s210 + $0x172] sm:$0xff]
      %s2130 = scalar_lea.vmem %s1, 20
      %v2131 = vld [vmem:[%s2130] sm:$0xf]
      %v2133 = vsel %vm310, %v2098, 0
      %v2136 = vsel %vm310, %v2099, 0
      %v2139 = vsel %vm310, %v2100, 0
      %v2142 = vsel %vm310, %v2101, 0
      %v2145 = vsel %vm310, %v2102, 0
      %v2148 = vsel %vm310, %v2103, 0
      %v2151 = vsel %vm310, %v2104, 0
      %v2154 = vsel %vm310, %v2105, 0
      %v2157 = vsel %vm310, %v2106, 0
      %v2160 = vsel %vm310, %v2107, 0
      %v2163 = vsel %vm310, %v2108, 0
      %v2166 = vsel %vm310, %v2109, 0
      %v2169 = vsel %vm310, %v2110, 0
      %v2172 = vsel %vm310, %v2111, 0
      %v2175 = vsel %vm310, %v2112, 0
      %v2178 = vsel %vm310, %v2113, 0
      %v2181 = vsel %vm310, %v2114, 0
      %v2184 = vsel %vm310, %v2115, 0
      %v2187 = vsel %vm310, %v2116, 0
      %v2190 = vsel %vm310, %v2117, 0
      %v2193 = vsel %vm310, %v2118, 0
      %v2196 = vsel %vm310, %v2119, 0
      %v2199 = vsel %vm310, %v2120, 0
      %v2202 = vsel %vm310, %v2121, 0
      %v2205 = vsel %vm310, %v2122, 0
      %v2208 = vsel %vm310, %v2123, 0
      %v2211 = vsel %vm310, %v2124, 0
      %v2214 = vsel %vm310, %v2125, 0
      %v2217 = vsel %vm310, %v2126, 0
      %v2220 = vsel %vm310, %v2127, 0
      %v2223 = vsel %vm310, %v2128, 0
      %v2226 = vsel %vm310, %v2129, 0
      %v2229 = vsel %vm407, %v2131, 0
      %2231 = vmatprep.subr.mxu0 0.0
      %2232 = vmatpush1.msra.mxu0 0.0
      %2233 = vmatprep.subr.mxu0 0.0
      %2234 = vmatpush1.msra.mxu0 0.0
      %2235 = vmatprep.subr.mxu0 0.0
      %2236 = vmatpush1.msra.mxu0 0.0
      %2237 = vmatprep.subr.mxu0 0.0
      %2238 = vmatpush1.msra.mxu0 0.0
      %2239 = vmatprep.subr.mxu0 0.0
      %2240 = vmatpush1.msra.mxu0 0.0
      %2241 = vmatprep.subr.mxu0 0.0
      %2242 = vmatpush1.msra.mxu0 0.0
      %2243 = vmatprep.subr.mxu0 0.0
      %2244 = vmatpush1.msra.mxu0 0.0
      %2245 = vmatprep.subr.mxu0 0.0
      %2246 = vmatpush1.msra.mxu0 0.0
      %2247 = vmatprep.subr.mxu0 0.0
      %2248 = vmatpush1.msra.mxu0 0.0
      %2249 = vmatprep.subr.mxu0 0.0
      %2250 = vmatpush1.msra.mxu0 0.0
      %2251 = vmatprep.subr.mxu0 0.0
      %2252 = vmatpush1.msra.mxu0 0.0
      %2253 = vmatprep.subr.mxu0 0.0
      %2254 = vmatpush1.msra.mxu0 0.0
      %2255 = vmatprep.subr.mxu0 0.0
      %2256 = vmatpush1.msra.mxu0 0.0
      %2257 = vmatprep.subr.mxu0 0.0
      %2258 = vmatpush1.msra.mxu0 0.0
      %2259 = vmatprep.subr.mxu0 0.0
      %2260 = vmatpush1.msra.mxu0 0.0
      %2261 = vmatprep.subr.mxu0 0.0
      %2262 = vmatpush1.msra.mxu0 %v2229
      %2263 = vmatprep.subr.mxu0 0.0
      %2264 = vmatpush2.msra.mxu0 0.0
      %2265 = vmatprep.subr.mxu0 0.0
      %2266 = vmatpush2.msra.mxu0 0.0
      %2267 = vmatprep.subr.mxu0 0.0
      %2268 = vmatpush2.msra.mxu0 0.0
      %2269 = vmatprep.subr.mxu0 0.0
      %2270 = vmatpush2.msra.mxu0 0.0
      %2271 = vmatprep.subr.mxu0 0.0
      %2272 = vmatpush2.msra.mxu0 0.0
      %2273 = vmatprep.subr.mxu0 0.0
      %2274 = vmatpush2.msra.mxu0 0.0
      %2275 = vmatprep.subr.mxu0 0.0
      %2276 = vmatpush2.msra.mxu0 0.0
      %2277 = vmatprep.subr.mxu0 0.0
      %2278 = vmatpush2.msra.mxu0 0.0
      %2279 = vmatprep.subr.mxu0 0.0
      %2280 = vmatpush2.msra.mxu0 0.0
      %2281 = vmatprep.subr.mxu0 0.0
      %2282 = vmatpush2.msra.mxu0 0.0
      %2283 = vmatprep.subr.mxu0 0.0
      %2284 = vmatpush2.msra.mxu0 0.0
      %2285 = vmatprep.subr.mxu0 0.0
      %2286 = vmatpush2.msra.mxu0 0.0
      %2287 = vmatprep.subr.mxu0 0.0
      %2288 = vmatpush2.msra.mxu0 0.0
      %2289 = vmatprep.subr.mxu0 0.0
      %2290 = vmatpush2.msra.mxu0 0.0
      %2291 = vmatprep.subr.mxu0 0.0
      %2292 = vmatpush2.msra.mxu0 0.0
      %2293 = vmatprep.subr.mxu0 0.0
      %2294 = vmatpush2.msra.mxu0 0.0
      %2295 = vmatprep.mubr.f32.mxu0 0.0
      %2296 = vmatmul.mubr.f32.gmra.mxu0 %v2133
      %v2297 = vpop.f32.mrf.mxu0
      %v2298 = vadd.f32 0.0, %v2297
      %v2299 = vpop.f32.mrf.mxu0
      %2300 = vmatprep.mubr.f32.mxu0 0.0
      %2301 = vmatmul.mubr.f32.gmra.mxu0 %v2136
      %v2302 = vpop.f32.mrf.mxu0
      %v2303 = vadd.f32 0.0, %v2302
      %v2304 = vpop.f32.mrf.mxu0
      %2305 = vmatprep.mubr.f32.mxu0 0.0
      %2306 = vmatmul.mubr.f32.gmra.mxu0 %v2139
      %v2307 = vpop.f32.mrf.mxu0
      %v2308 = vadd.f32 0.0, %v2307
      %v2309 = vpop.f32.mrf.mxu0
      %2310 = vmatprep.mubr.f32.mxu0 0.0
      %2311 = vmatmul.mubr.f32.gmra.mxu0 %v2142
      %v2312 = vpop.f32.mrf.mxu0
      %v2313 = vadd.f32 0.0, %v2312
      %v2314 = vpop.f32.mrf.mxu0
      %2315 = vmatprep.mubr.f32.mxu0 0.0
      %2316 = vmatmul.mubr.f32.gmra.mxu0 %v2145
      %v2317 = vpop.f32.mrf.mxu0
      %v2318 = vadd.f32 0.0, %v2317
      %v2319 = vpop.f32.mrf.mxu0
      %2320 = vmatprep.mubr.f32.mxu0 0.0
      %2321 = vmatmul.mubr.f32.gmra.mxu0 %v2148
      %v2322 = vpop.f32.mrf.mxu0
      %v2323 = vadd.f32 0.0, %v2322
      %v2324 = vpop.f32.mrf.mxu0
      %2325 = vmatprep.mubr.f32.mxu0 0.0
      %2326 = vmatmul.mubr.f32.gmra.mxu0 %v2151
      %v2327 = vpop.f32.mrf.mxu0
      %v2328 = vadd.f32 0.0, %v2327
      %v2329 = vpop.f32.mrf.mxu0
      %2330 = vmatprep.mubr.f32.mxu0 0.0
      %2331 = vmatmul.mubr.f32.gmra.mxu0 %v2154
      %v2332 = vpop.f32.mrf.mxu0
      %v2333 = vadd.f32 0.0, %v2332
      %v2334 = vpop.f32.mrf.mxu0
      %2335 = vmatprep.mubr.f32.mxu0 0.0
      %2336 = vmatmul.mubr.f32.gmra.mxu0 %v2157
      %v2337 = vpop.f32.mrf.mxu0
      %v2338 = vadd.f32 0.0, %v2337
      %v2339 = vpop.f32.mrf.mxu0
      %2340 = vmatprep.mubr.f32.mxu0 0.0
      %2341 = vmatmul.mubr.f32.gmra.mxu0 %v2160
      %v2342 = vpop.f32.mrf.mxu0
      %v2343 = vadd.f32 0.0, %v2342
      %v2344 = vpop.f32.mrf.mxu0
      %2345 = vmatprep.mubr.f32.mxu0 0.0
      %2346 = vmatmul.mubr.f32.gmra.mxu0 %v2163
      %v2347 = vpop.f32.mrf.mxu0
      %v2348 = vadd.f32 0.0, %v2347
      %v2349 = vpop.f32.mrf.mxu0
      %2350 = vmatprep.mubr.f32.mxu0 0.0
      %2351 = vmatmul.mubr.f32.gmra.mxu0 %v2166
      %v2352 = vpop.f32.mrf.mxu0
      %v2353 = vadd.f32 0.0, %v2352
      %v2354 = vpop.f32.mrf.mxu0
      %2355 = vmatprep.mubr.f32.mxu0 0.0
      %2356 = vmatmul.mubr.f32.gmra.mxu0 %v2169
      %v2357 = vpop.f32.mrf.mxu0
      %v2358 = vadd.f32 0.0, %v2357
      %v2359 = vpop.f32.mrf.mxu0
      %2360 = vmatprep.mubr.f32.mxu0 0.0
      %2361 = vmatmul.mubr.f32.gmra.mxu0 %v2172
      %v2362 = vpop.f32.mrf.mxu0
      %v2363 = vadd.f32 0.0, %v2362
      %v2364 = vpop.f32.mrf.mxu0
      %2365 = vmatprep.mubr.f32.mxu0 0.0
      %2366 = vmatmul.mubr.f32.gmra.mxu0 %v2175
      %v2367 = vpop.f32.mrf.mxu0
      %v2368 = vadd.f32 0.0, %v2367
      %v2369 = vpop.f32.mrf.mxu0
      %2370 = vmatprep.mubr.f32.mxu0 0.0
      %2371 = vmatmul.mubr.f32.gmra.mxu0 %v2178
      %v2372 = vpop.f32.mrf.mxu0
      %v2373 = vadd.f32 0.0, %v2372
      %v2374 = vpop.f32.mrf.mxu0
      %2375 = vmatprep.mubr.f32.mxu0 0.0
      %2376 = vmatmul.mubr.f32.gmra.mxu0 %v2181
      %v2377 = vpop.f32.mrf.mxu0
      %v2378 = vadd.f32 0.0, %v2377
      %v2379 = vpop.f32.mrf.mxu0
      %2380 = vmatprep.mubr.f32.mxu0 0.0
      %2381 = vmatmul.mubr.f32.gmra.mxu0 %v2184
      %v2382 = vpop.f32.mrf.mxu0
      %v2383 = vadd.f32 0.0, %v2382
      %v2384 = vpop.f32.mrf.mxu0
      %2385 = vmatprep.mubr.f32.mxu0 0.0
      %2386 = vmatmul.mubr.f32.gmra.mxu0 %v2187
      %v2387 = vpop.f32.mrf.mxu0
      %v2388 = vadd.f32 0.0, %v2387
      %v2389 = vpop.f32.mrf.mxu0
      %2390 = vmatprep.mubr.f32.mxu0 0.0
      %2391 = vmatmul.mubr.f32.gmra.mxu0 %v2190
      %v2392 = vpop.f32.mrf.mxu0
      %v2393 = vadd.f32 0.0, %v2392
      %v2394 = vpop.f32.mrf.mxu0
      %2395 = vmatprep.mubr.f32.mxu0 0.0
      %2396 = vmatmul.mubr.f32.gmra.mxu0 %v2193
      %v2397 = vpop.f32.mrf.mxu0
      %v2398 = vadd.f32 0.0, %v2397
      %v2399 = vpop.f32.mrf.mxu0
      %2400 = vmatprep.mubr.f32.mxu0 0.0
      %2401 = vmatmul.mubr.f32.gmra.mxu0 %v2196
      %v2402 = vpop.f32.mrf.mxu0
      %v2403 = vadd.f32 0.0, %v2402
      %v2404 = vpop.f32.mrf.mxu0
      %2405 = vmatprep.mubr.f32.mxu0 0.0
      %2406 = vmatmul.mubr.f32.gmra.mxu0 %v2199
      %v2407 = vpop.f32.mrf.mxu0
      %v2408 = vadd.f32 0.0, %v2407
      %v2409 = vpop.f32.mrf.mxu0
      %2410 = vmatprep.mubr.f32.mxu0 0.0
      %2411 = vmatmul.mubr.f32.gmra.mxu0 %v2202
      %v2412 = vpop.f32.mrf.mxu0
      %v2413 = vadd.f32 0.0, %v2412
      %v2414 = vpop.f32.mrf.mxu0
      %2415 = vmatprep.mubr.f32.mxu0 0.0
      %2416 = vmatmul.mubr.f32.gmra.mxu0 %v2205
      %v2417 = vpop.f32.mrf.mxu0
      %v2418 = vadd.f32 0.0, %v2417
      %v2419 = vpop.f32.mrf.mxu0
      %2420 = vmatprep.mubr.f32.mxu0 0.0
      %2421 = vmatmul.mubr.f32.gmra.mxu0 %v2208
      %v2422 = vpop.f32.mrf.mxu0
      %v2423 = vadd.f32 0.0, %v2422
      %v2424 = vpop.f32.mrf.mxu0
      %2425 = vmatprep.mubr.f32.mxu0 0.0
      %2426 = vmatmul.mubr.f32.gmra.mxu0 %v2211
      %v2427 = vpop.f32.mrf.mxu0
      %v2428 = vadd.f32 0.0, %v2427
      %v2429 = vpop.f32.mrf.mxu0
      %2430 = vmatprep.mubr.f32.mxu0 0.0
      %2431 = vmatmul.mubr.f32.gmra.mxu0 %v2214
      %v2432 = vpop.f32.mrf.mxu0
      %v2433 = vadd.f32 0.0, %v2432
      %v2434 = vpop.f32.mrf.mxu0
      %2435 = vmatprep.mubr.f32.mxu0 0.0
      %2436 = vmatmul.mubr.f32.gmra.mxu0 %v2217
      %v2437 = vpop.f32.mrf.mxu0
      %v2438 = vadd.f32 0.0, %v2437
      %v2439 = vpop.f32.mrf.mxu0
      %2440 = vmatprep.mubr.f32.mxu0 0.0
      %2441 = vmatmul.mubr.f32.gmra.mxu0 %v2220
      %v2442 = vpop.f32.mrf.mxu0
      %v2443 = vadd.f32 0.0, %v2442
      %v2444 = vpop.f32.mrf.mxu0
      %2445 = vmatprep.mubr.f32.mxu0 0.0
      %2446 = vmatmul.mubr.f32.gmra.mxu0 %v2223
      %v2447 = vpop.f32.mrf.mxu0
      %v2448 = vadd.f32 0.0, %v2447
      %v2449 = vpop.f32.mrf.mxu0
      %2450 = vmatprep.mubr.f32.mxu0 0.0
      %2451 = vmatmul.mubr.f32.gmra.mxu0 %v2226
      %v2452 = vpop.f32.mrf.mxu0
      %v2453 = vadd.f32 0.0, %v2452
      %v2454 = vpop.f32.mrf.mxu0
      %2455 = vdwg.mxu0
      %v2456 = vadd.f32 %v2066, %v2298
      %v2457 = vadd.f32 %v2067, %v2303
      %v2458 = vadd.f32 %v2068, %v2308
      %v2459 = vadd.f32 %v2069, %v2313
      %v2460 = vadd.f32 %v2070, %v2318
      %v2461 = vadd.f32 %v2071, %v2323
      %v2462 = vadd.f32 %v2072, %v2328
      %v2463 = vadd.f32 %v2073, %v2333
      %v2464 = vadd.f32 %v2074, %v2338
      %v2465 = vadd.f32 %v2075, %v2343
      %v2466 = vadd.f32 %v2076, %v2348
      %v2467 = vadd.f32 %v2077, %v2353
      %v2468 = vadd.f32 %v2078, %v2358
      %v2469 = vadd.f32 %v2079, %v2363
      %v2470 = vadd.f32 %v2080, %v2368
      %v2471 = vadd.f32 %v2081, %v2373
      %v2472 = vadd.f32 %v2082, %v2378
      %v2473 = vadd.f32 %v2083, %v2383
      %v2474 = vadd.f32 %v2084, %v2388
      %v2475 = vadd.f32 %v2085, %v2393
      %v2476 = vadd.f32 %v2086, %v2398
      %v2477 = vadd.f32 %v2087, %v2403
      %v2478 = vadd.f32 %v2088, %v2408
      %v2479 = vadd.f32 %v2089, %v2413
      %v2480 = vadd.f32 %v2090, %v2418
      %v2481 = vadd.f32 %v2091, %v2423
      %v2482 = vadd.f32 %v2092, %v2428
      %v2483 = vadd.f32 %v2093, %v2433
      %v2484 = vadd.f32 %v2094, %v2438
      %v2485 = vadd.f32 %v2095, %v2443
      %v2486 = vadd.f32 %v2096, %v2448
      %v2487 = vadd.f32 %v2097, %v2453
      %s2488 = scalar_lea.vmem %s198, 48
      %v2489 = vld [vmem:[%s2488] sm:$0xff]
      %v2490 = vld [vmem:[%s2488 + $0x8] sm:$0xff]
      %v2491 = vld [vmem:[%s2488 + $0x18] sm:$0xff]
      %v2492 = vld [vmem:[%s2488 + $0x20] sm:$0xff]
      %v2493 = vld [vmem:[%s2488 + $0x30] sm:$0xff]
      %v2494 = vld [vmem:[%s2488 + $0x38] sm:$0xff]
      %v2495 = vld [vmem:[%s2488 + $0x48] sm:$0xff]
      %v2496 = vld [vmem:[%s2488 + $0x50] sm:$0xff]
      %v2497 = vld [vmem:[%s2488 + $0x60] sm:$0xff]
      %v2498 = vld [vmem:[%s2488 + $0x68] sm:$0xff]
      %v2499 = vld [vmem:[%s2488 + $0x78] sm:$0xff]
      %v2500 = vld [vmem:[%s2488 + $0x80] sm:$0xff]
      %v2501 = vld [vmem:[%s2488 + $0x90] sm:$0xff]
      %v2502 = vld [vmem:[%s2488 + $0x98] sm:$0xff]
      %v2503 = vld [vmem:[%s2488 + $0xa8] sm:$0xff]
      %v2504 = vld [vmem:[%s2488 + $0xb0] sm:$0xff]
      %v2505 = vld [vmem:[%s2488 + $0xc0] sm:$0xff]
      %v2506 = vld [vmem:[%s2488 + $0xc8] sm:$0xff]
      %v2507 = vld [vmem:[%s2488 + $0xd8] sm:$0xff]
      %v2508 = vld [vmem:[%s2488 + $0xe0] sm:$0xff]
      %v2509 = vld [vmem:[%s2488 + $0xf0] sm:$0xff]
      %v2510 = vld [vmem:[%s2488 + $0xf8] sm:$0xff]
      %v2511 = vld [vmem:[%s2488 + $0x108] sm:$0xff]
      %v2512 = vld [vmem:[%s2488 + $0x110] sm:$0xff]
      %v2513 = vld [vmem:[%s2488 + $0x120] sm:$0xff]
      %v2514 = vld [vmem:[%s2488 + $0x128] sm:$0xff]
      %v2515 = vld [vmem:[%s2488 + $0x138] sm:$0xff]
      %v2516 = vld [vmem:[%s2488 + $0x140] sm:$0xff]
      %v2517 = vld [vmem:[%s2488 + $0x150] sm:$0xff]
      %v2518 = vld [vmem:[%s2488 + $0x158] sm:$0xff]
      %v2519 = vld [vmem:[%s2488 + $0x168] sm:$0xff]
      %v2520 = vld [vmem:[%s2488 + $0x170] sm:$0xff]
      %s2521 = scalar_lea.vmem %s1, 24
      %v2522 = vld [vmem:[%s2521] sm:$0xf]
      %v2524 = vsel %vm310, %v2489, 0
      %v2527 = vsel %vm310, %v2490, 0
      %v2530 = vsel %vm310, %v2491, 0
      %v2533 = vsel %vm310, %v2492, 0
      %v2536 = vsel %vm310, %v2493, 0
      %v2539 = vsel %vm310, %v2494, 0
      %v2542 = vsel %vm310, %v2495, 0
      %v2545 = vsel %vm310, %v2496, 0
      %v2548 = vsel %vm310, %v2497, 0
      %v2551 = vsel %vm310, %v2498, 0
      %v2554 = vsel %vm310, %v2499, 0
      %v2557 = vsel %vm310, %v2500, 0
      %v2560 = vsel %vm310, %v2501, 0
      %v2563 = vsel %vm310, %v2502, 0
      %v2566 = vsel %vm310, %v2503, 0
      %v2569 = vsel %vm310, %v2504, 0
      %v2572 = vsel %vm310, %v2505, 0
      %v2575 = vsel %vm310, %v2506, 0
      %v2578 = vsel %vm310, %v2507, 0
      %v2581 = vsel %vm310, %v2508, 0
      %v2584 = vsel %vm310, %v2509, 0
      %v2587 = vsel %vm310, %v2510, 0
      %v2590 = vsel %vm310, %v2511, 0
      %v2593 = vsel %vm310, %v2512, 0
      %v2596 = vsel %vm310, %v2513, 0
      %v2599 = vsel %vm310, %v2514, 0
      %v2602 = vsel %vm310, %v2515, 0
      %v2605 = vsel %vm310, %v2516, 0
      %v2608 = vsel %vm310, %v2517, 0
      %v2611 = vsel %vm310, %v2518, 0
      %v2614 = vsel %vm310, %v2519, 0
      %v2617 = vsel %vm310, %v2520, 0
      %v2620 = vsel %vm407, %v2522, 0
      %2622 = vmatprep.subr.mxu0 0.0
      %2623 = vmatpush1.msra.mxu0 0.0
      %2624 = vmatprep.subr.mxu0 0.0
      %2625 = vmatpush1.msra.mxu0 0.0
      %2626 = vmatprep.subr.mxu0 0.0
      %2627 = vmatpush1.msra.mxu0 0.0
      %2628 = vmatprep.subr.mxu0 0.0
      %2629 = vmatpush1.msra.mxu0 0.0
      %2630 = vmatprep.subr.mxu0 0.0
      %2631 = vmatpush1.msra.mxu0 0.0
      %2632 = vmatprep.subr.mxu0 0.0
      %2633 = vmatpush1.msra.mxu0 0.0
      %2634 = vmatprep.subr.mxu0 0.0
      %2635 = vmatpush1.msra.mxu0 0.0
      %2636 = vmatprep.subr.mxu0 0.0
      %2637 = vmatpush1.msra.mxu0 0.0
      %2638 = vmatprep.subr.mxu0 0.0
      %2639 = vmatpush1.msra.mxu0 0.0
      %2640 = vmatprep.subr.mxu0 0.0
      %2641 = vmatpush1.msra.mxu0 0.0
      %2642 = vmatprep.subr.mxu0 0.0
      %2643 = vmatpush1.msra.mxu0 0.0
      %2644 = vmatprep.subr.mxu0 0.0
      %2645 = vmatpush1.msra.mxu0 0.0
      %2646 = vmatprep.subr.mxu0 0.0
      %2647 = vmatpush1.msra.mxu0 0.0
      %2648 = vmatprep.subr.mxu0 0.0
      %2649 = vmatpush1.msra.mxu0 0.0
      %2650 = vmatprep.subr.mxu0 0.0
      %2651 = vmatpush1.msra.mxu0 0.0
      %2652 = vmatprep.subr.mxu0 0.0
      %2653 = vmatpush1.msra.mxu0 %v2620
      %2654 = vmatprep.subr.mxu0 0.0
      %2655 = vmatpush2.msra.mxu0 0.0
      %2656 = vmatprep.subr.mxu0 0.0
      %2657 = vmatpush2.msra.mxu0 0.0
      %2658 = vmatprep.subr.mxu0 0.0
      %2659 = vmatpush2.msra.mxu0 0.0
      %2660 = vmatprep.subr.mxu0 0.0
      %2661 = vmatpush2.msra.mxu0 0.0
      %2662 = vmatprep.subr.mxu0 0.0
      %2663 = vmatpush2.msra.mxu0 0.0
      %2664 = vmatprep.subr.mxu0 0.0
      %2665 = vmatpush2.msra.mxu0 0.0
      %2666 = vmatprep.subr.mxu0 0.0
      %2667 = vmatpush2.msra.mxu0 0.0
      %2668 = vmatprep.subr.mxu0 0.0
      %2669 = vmatpush2.msra.mxu0 0.0
      %2670 = vmatprep.subr.mxu0 0.0
      %2671 = vmatpush2.msra.mxu0 0.0
      %2672 = vmatprep.subr.mxu0 0.0
      %2673 = vmatpush2.msra.mxu0 0.0
      %2674 = vmatprep.subr.mxu0 0.0
      %2675 = vmatpush2.msra.mxu0 0.0
      %2676 = vmatprep.subr.mxu0 0.0
      %2677 = vmatpush2.msra.mxu0 0.0
      %2678 = vmatprep.subr.mxu0 0.0
      %2679 = vmatpush2.msra.mxu0 0.0
      %2680 = vmatprep.subr.mxu0 0.0
      %2681 = vmatpush2.msra.mxu0 0.0
      %2682 = vmatprep.subr.mxu0 0.0
      %2683 = vmatpush2.msra.mxu0 0.0
      %2684 = vmatprep.subr.mxu0 0.0
      %2685 = vmatpush2.msra.mxu0 0.0
      %2686 = vmatprep.mubr.f32.mxu0 0.0
      %2687 = vmatmul.mubr.f32.gmra.mxu0 %v2524
      %v2688 = vpop.f32.mrf.mxu0
      %v2689 = vadd.f32 0.0, %v2688
      %v2690 = vpop.f32.mrf.mxu0
      %2691 = vmatprep.mubr.f32.mxu0 0.0
      %2692 = vmatmul.mubr.f32.gmra.mxu0 %v2527
      %v2693 = vpop.f32.mrf.mxu0
      %v2694 = vadd.f32 0.0, %v2693
      %v2695 = vpop.f32.mrf.mxu0
      %2696 = vmatprep.mubr.f32.mxu0 0.0
      %2697 = vmatmul.mubr.f32.gmra.mxu0 %v2530
      %v2698 = vpop.f32.mrf.mxu0
      %v2699 = vadd.f32 0.0, %v2698
      %v2700 = vpop.f32.mrf.mxu0
      %2701 = vmatprep.mubr.f32.mxu0 0.0
      %2702 = vmatmul.mubr.f32.gmra.mxu0 %v2533
      %v2703 = vpop.f32.mrf.mxu0
      %v2704 = vadd.f32 0.0, %v2703
      %v2705 = vpop.f32.mrf.mxu0
      %2706 = vmatprep.mubr.f32.mxu0 0.0
      %2707 = vmatmul.mubr.f32.gmra.mxu0 %v2536
      %v2708 = vpop.f32.mrf.mxu0
      %v2709 = vadd.f32 0.0, %v2708
      %v2710 = vpop.f32.mrf.mxu0
      %2711 = vmatprep.mubr.f32.mxu0 0.0
      %2712 = vmatmul.mubr.f32.gmra.mxu0 %v2539
      %v2713 = vpop.f32.mrf.mxu0
      %v2714 = vadd.f32 0.0, %v2713
      %v2715 = vpop.f32.mrf.mxu0
      %2716 = vmatprep.mubr.f32.mxu0 0.0
      %2717 = vmatmul.mubr.f32.gmra.mxu0 %v2542
      %v2718 = vpop.f32.mrf.mxu0
      %v2719 = vadd.f32 0.0, %v2718
      %v2720 = vpop.f32.mrf.mxu0
      %2721 = vmatprep.mubr.f32.mxu0 0.0
      %2722 = vmatmul.mubr.f32.gmra.mxu0 %v2545
      %v2723 = vpop.f32.mrf.mxu0
      %v2724 = vadd.f32 0.0, %v2723
      %v2725 = vpop.f32.mrf.mxu0
      %2726 = vmatprep.mubr.f32.mxu0 0.0
      %2727 = vmatmul.mubr.f32.gmra.mxu0 %v2548
      %v2728 = vpop.f32.mrf.mxu0
      %v2729 = vadd.f32 0.0, %v2728
      %v2730 = vpop.f32.mrf.mxu0
      %2731 = vmatprep.mubr.f32.mxu0 0.0
      %2732 = vmatmul.mubr.f32.gmra.mxu0 %v2551
      %v2733 = vpop.f32.mrf.mxu0
      %v2734 = vadd.f32 0.0, %v2733
      %v2735 = vpop.f32.mrf.mxu0
      %2736 = vmatprep.mubr.f32.mxu0 0.0
      %2737 = vmatmul.mubr.f32.gmra.mxu0 %v2554
      %v2738 = vpop.f32.mrf.mxu0
      %v2739 = vadd.f32 0.0, %v2738
      %v2740 = vpop.f32.mrf.mxu0
      %2741 = vmatprep.mubr.f32.mxu0 0.0
      %2742 = vmatmul.mubr.f32.gmra.mxu0 %v2557
      %v2743 = vpop.f32.mrf.mxu0
      %v2744 = vadd.f32 0.0, %v2743
      %v2745 = vpop.f32.mrf.mxu0
      %2746 = vmatprep.mubr.f32.mxu0 0.0
      %2747 = vmatmul.mubr.f32.gmra.mxu0 %v2560
      %v2748 = vpop.f32.mrf.mxu0
      %v2749 = vadd.f32 0.0, %v2748
      %v2750 = vpop.f32.mrf.mxu0
      %2751 = vmatprep.mubr.f32.mxu0 0.0
      %2752 = vmatmul.mubr.f32.gmra.mxu0 %v2563
      %v2753 = vpop.f32.mrf.mxu0
      %v2754 = vadd.f32 0.0, %v2753
      %v2755 = vpop.f32.mrf.mxu0
      %2756 = vmatprep.mubr.f32.mxu0 0.0
      %2757 = vmatmul.mubr.f32.gmra.mxu0 %v2566
      %v2758 = vpop.f32.mrf.mxu0
      %v2759 = vadd.f32 0.0, %v2758
      %v2760 = vpop.f32.mrf.mxu0
      %2761 = vmatprep.mubr.f32.mxu0 0.0
      %2762 = vmatmul.mubr.f32.gmra.mxu0 %v2569
      %v2763 = vpop.f32.mrf.mxu0
      %v2764 = vadd.f32 0.0, %v2763
      %v2765 = vpop.f32.mrf.mxu0
      %2766 = vmatprep.mubr.f32.mxu0 0.0
      %2767 = vmatmul.mubr.f32.gmra.mxu0 %v2572
      %v2768 = vpop.f32.mrf.mxu0
      %v2769 = vadd.f32 0.0, %v2768
      %v2770 = vpop.f32.mrf.mxu0
      %2771 = vmatprep.mubr.f32.mxu0 0.0
      %2772 = vmatmul.mubr.f32.gmra.mxu0 %v2575
      %v2773 = vpop.f32.mrf.mxu0
      %v2774 = vadd.f32 0.0, %v2773
      %v2775 = vpop.f32.mrf.mxu0
      %2776 = vmatprep.mubr.f32.mxu0 0.0
      %2777 = vmatmul.mubr.f32.gmra.mxu0 %v2578
      %v2778 = vpop.f32.mrf.mxu0
      %v2779 = vadd.f32 0.0, %v2778
      %v2780 = vpop.f32.mrf.mxu0
      %2781 = vmatprep.mubr.f32.mxu0 0.0
      %2782 = vmatmul.mubr.f32.gmra.mxu0 %v2581
      %v2783 = vpop.f32.mrf.mxu0
      %v2784 = vadd.f32 0.0, %v2783
      %v2785 = vpop.f32.mrf.mxu0
      %2786 = vmatprep.mubr.f32.mxu0 0.0
      %2787 = vmatmul.mubr.f32.gmra.mxu0 %v2584
      %v2788 = vpop.f32.mrf.mxu0
      %v2789 = vadd.f32 0.0, %v2788
      %v2790 = vpop.f32.mrf.mxu0
      %2791 = vmatprep.mubr.f32.mxu0 0.0
      %2792 = vmatmul.mubr.f32.gmra.mxu0 %v2587
      %v2793 = vpop.f32.mrf.mxu0
      %v2794 = vadd.f32 0.0, %v2793
      %v2795 = vpop.f32.mrf.mxu0
      %2796 = vmatprep.mubr.f32.mxu0 0.0
      %2797 = vmatmul.mubr.f32.gmra.mxu0 %v2590
      %v2798 = vpop.f32.mrf.mxu0
      %v2799 = vadd.f32 0.0, %v2798
      %v2800 = vpop.f32.mrf.mxu0
      %2801 = vmatprep.mubr.f32.mxu0 0.0
      %2802 = vmatmul.mubr.f32.gmra.mxu0 %v2593
      %v2803 = vpop.f32.mrf.mxu0
      %v2804 = vadd.f32 0.0, %v2803
      %v2805 = vpop.f32.mrf.mxu0
      %2806 = vmatprep.mubr.f32.mxu0 0.0
      %2807 = vmatmul.mubr.f32.gmra.mxu0 %v2596
      %v2808 = vpop.f32.mrf.mxu0
      %v2809 = vadd.f32 0.0, %v2808
      %v2810 = vpop.f32.mrf.mxu0
      %2811 = vmatprep.mubr.f32.mxu0 0.0
      %2812 = vmatmul.mubr.f32.gmra.mxu0 %v2599
      %v2813 = vpop.f32.mrf.mxu0
      %v2814 = vadd.f32 0.0, %v2813
      %v2815 = vpop.f32.mrf.mxu0
      %2816 = vmatprep.mubr.f32.mxu0 0.0
      %2817 = vmatmul.mubr.f32.gmra.mxu0 %v2602
      %v2818 = vpop.f32.mrf.mxu0
      %v2819 = vadd.f32 0.0, %v2818
      %v2820 = vpop.f32.mrf.mxu0
      %2821 = vmatprep.mubr.f32.mxu0 0.0
      %2822 = vmatmul.mubr.f32.gmra.mxu0 %v2605
      %v2823 = vpop.f32.mrf.mxu0
      %v2824 = vadd.f32 0.0, %v2823
      %v2825 = vpop.f32.mrf.mxu0
      %2826 = vmatprep.mubr.f32.mxu0 0.0
      %2827 = vmatmul.mubr.f32.gmra.mxu0 %v2608
      %v2828 = vpop.f32.mrf.mxu0
      %v2829 = vadd.f32 0.0, %v2828
      %v2830 = vpop.f32.mrf.mxu0
      %2831 = vmatprep.mubr.f32.mxu0 0.0
      %2832 = vmatmul.mubr.f32.gmra.mxu0 %v2611
      %v2833 = vpop.f32.mrf.mxu0
      %v2834 = vadd.f32 0.0, %v2833
      %v2835 = vpop.f32.mrf.mxu0
      %2836 = vmatprep.mubr.f32.mxu0 0.0
      %2837 = vmatmul.mubr.f32.gmra.mxu0 %v2614
      %v2838 = vpop.f32.mrf.mxu0
      %v2839 = vadd.f32 0.0, %v2838
      %v2840 = vpop.f32.mrf.mxu0
      %2841 = vmatprep.mubr.f32.mxu0 0.0
      %2842 = vmatmul.mubr.f32.gmra.mxu0 %v2617
      %v2843 = vpop.f32.mrf.mxu0
      %v2844 = vadd.f32 0.0, %v2843
      %v2845 = vpop.f32.mrf.mxu0
      %2846 = vdwg.mxu0
      %v2847 = vadd.f32 %v2456, %v2689
      %v2848 = vadd.f32 %v2457, %v2694
      %v2849 = vadd.f32 %v2458, %v2699
      %v2850 = vadd.f32 %v2459, %v2704
      %v2851 = vadd.f32 %v2460, %v2709
      %v2852 = vadd.f32 %v2461, %v2714
      %v2853 = vadd.f32 %v2462, %v2719
      %v2854 = vadd.f32 %v2463, %v2724
      %v2855 = vadd.f32 %v2464, %v2729
      %v2856 = vadd.f32 %v2465, %v2734
      %v2857 = vadd.f32 %v2466, %v2739
      %v2858 = vadd.f32 %v2467, %v2744
      %v2859 = vadd.f32 %v2468, %v2749
      %v2860 = vadd.f32 %v2469, %v2754
      %v2861 = vadd.f32 %v2470, %v2759
      %v2862 = vadd.f32 %v2471, %v2764
      %v2863 = vadd.f32 %v2472, %v2769
      %v2864 = vadd.f32 %v2473, %v2774
      %v2865 = vadd.f32 %v2474, %v2779
      %v2866 = vadd.f32 %v2475, %v2784
      %v2867 = vadd.f32 %v2476, %v2789
      %v2868 = vadd.f32 %v2477, %v2794
      %v2869 = vadd.f32 %v2478, %v2799
      %v2870 = vadd.f32 %v2479, %v2804
      %v2871 = vadd.f32 %v2480, %v2809
      %v2872 = vadd.f32 %v2481, %v2814
      %v2873 = vadd.f32 %v2482, %v2819
      %v2874 = vadd.f32 %v2483, %v2824
      %v2875 = vadd.f32 %v2484, %v2829
      %v2876 = vadd.f32 %v2485, %v2834
      %v2877 = vadd.f32 %v2486, %v2839
      %v2878 = vadd.f32 %v2487, %v2844
      %v2879 = vld [vmem:[%s2488 + $0x1] sm:$0xff]
      %v2880 = vld [vmem:[%s2488 + $0x9] sm:$0xff]
      %v2881 = vld [vmem:[%s2488 + $0x19] sm:$0xff]
      %v2882 = vld [vmem:[%s2488 + $0x21] sm:$0xff]
      %v2883 = vld [vmem:[%s2488 + $0x31] sm:$0xff]
      %v2884 = vld [vmem:[%s2488 + $0x39] sm:$0xff]
      %v2885 = vld [vmem:[%s2488 + $0x49] sm:$0xff]
      %v2886 = vld [vmem:[%s2488 + $0x51] sm:$0xff]
      %v2887 = vld [vmem:[%s2488 + $0x61] sm:$0xff]
      %v2888 = vld [vmem:[%s2488 + $0x69] sm:$0xff]
      %v2889 = vld [vmem:[%s2488 + $0x79] sm:$0xff]
      %v2890 = vld [vmem:[%s2488 + $0x81] sm:$0xff]
      %v2891 = vld [vmem:[%s2488 + $0x91] sm:$0xff]
      %v2892 = vld [vmem:[%s2488 + $0x99] sm:$0xff]
      %v2893 = vld [vmem:[%s2488 + $0xa9] sm:$0xff]
      %v2894 = vld [vmem:[%s2488 + $0xb1] sm:$0xff]
      %v2895 = vld [vmem:[%s2488 + $0xc1] sm:$0xff]
      %v2896 = vld [vmem:[%s2488 + $0xc9] sm:$0xff]
      %v2897 = vld [vmem:[%s2488 + $0xd9] sm:$0xff]
      %v2898 = vld [vmem:[%s2488 + $0xe1] sm:$0xff]
      %v2899 = vld [vmem:[%s2488 + $0xf1] sm:$0xff]
      %v2900 = vld [vmem:[%s2488 + $0xf9] sm:$0xff]
      %v2901 = vld [vmem:[%s2488 + $0x109] sm:$0xff]
      %v2902 = vld [vmem:[%s2488 + $0x111] sm:$0xff]
      %v2903 = vld [vmem:[%s2488 + $0x121] sm:$0xff]
      %v2904 = vld [vmem:[%s2488 + $0x129] sm:$0xff]
      %v2905 = vld [vmem:[%s2488 + $0x139] sm:$0xff]
      %v2906 = vld [vmem:[%s2488 + $0x141] sm:$0xff]
      %v2907 = vld [vmem:[%s2488 + $0x151] sm:$0xff]
      %v2908 = vld [vmem:[%s2488 + $0x159] sm:$0xff]
      %v2909 = vld [vmem:[%s2488 + $0x169] sm:$0xff]
      %v2910 = vld [vmem:[%s2488 + $0x171] sm:$0xff]
      %s2911 = scalar_lea.vmem %s1, 28
      %v2912 = vld [vmem:[%s2911] sm:$0xf]
      %v2914 = vsel %vm310, %v2879, 0
      %v2917 = vsel %vm310, %v2880, 0
      %v2920 = vsel %vm310, %v2881, 0
      %v2923 = vsel %vm310, %v2882, 0
      %v2926 = vsel %vm310, %v2883, 0
      %v2929 = vsel %vm310, %v2884, 0
      %v2932 = vsel %vm310, %v2885, 0
      %v2935 = vsel %vm310, %v2886, 0
      %v2938 = vsel %vm310, %v2887, 0
      %v2941 = vsel %vm310, %v2888, 0
      %v2944 = vsel %vm310, %v2889, 0
      %v2947 = vsel %vm310, %v2890, 0
      %v2950 = vsel %vm310, %v2891, 0
      %v2953 = vsel %vm310, %v2892, 0
      %v2956 = vsel %vm310, %v2893, 0
      %v2959 = vsel %vm310, %v2894, 0
      %v2962 = vsel %vm310, %v2895, 0
      %v2965 = vsel %vm310, %v2896, 0
      %v2968 = vsel %vm310, %v2897, 0
      %v2971 = vsel %vm310, %v2898, 0
      %v2974 = vsel %vm310, %v2899, 0
      %v2977 = vsel %vm310, %v2900, 0
      %v2980 = vsel %vm310, %v2901, 0
      %v2983 = vsel %vm310, %v2902, 0
      %v2986 = vsel %vm310, %v2903, 0
      %v2989 = vsel %vm310, %v2904, 0
      %v2992 = vsel %vm310, %v2905, 0
      %v2995 = vsel %vm310, %v2906, 0
      %v2998 = vsel %vm310, %v2907, 0
      %v3001 = vsel %vm310, %v2908, 0
      %v3004 = vsel %vm310, %v2909, 0
      %v3007 = vsel %vm310, %v2910, 0
      %v3010 = vsel %vm407, %v2912, 0
      %3012 = vmatprep.subr.mxu0 0.0
      %3013 = vmatpush1.msra.mxu0 0.0
      %3014 = vmatprep.subr.mxu0 0.0
      %3015 = vmatpush1.msra.mxu0 0.0
      %3016 = vmatprep.subr.mxu0 0.0
      %3017 = vmatpush1.msra.mxu0 0.0
      %3018 = vmatprep.subr.mxu0 0.0
      %3019 = vmatpush1.msra.mxu0 0.0
      %3020 = vmatprep.subr.mxu0 0.0
      %3021 = vmatpush1.msra.mxu0 0.0
      %3022 = vmatprep.subr.mxu0 0.0
      %3023 = vmatpush1.msra.mxu0 0.0
      %3024 = vmatprep.subr.mxu0 0.0
      %3025 = vmatpush1.msra.mxu0 0.0
      %3026 = vmatprep.subr.mxu0 0.0
      %3027 = vmatpush1.msra.mxu0 0.0
      %3028 = vmatprep.subr.mxu0 0.0
      %3029 = vmatpush1.msra.mxu0 0.0
      %3030 = vmatprep.subr.mxu0 0.0
      %3031 = vmatpush1.msra.mxu0 0.0
      %3032 = vmatprep.subr.mxu0 0.0
      %3033 = vmatpush1.msra.mxu0 0.0
      %3034 = vmatprep.subr.mxu0 0.0
      %3035 = vmatpush1.msra.mxu0 0.0
      %3036 = vmatprep.subr.mxu0 0.0
      %3037 = vmatpush1.msra.mxu0 0.0
      %3038 = vmatprep.subr.mxu0 0.0
      %3039 = vmatpush1.msra.mxu0 0.0
      %3040 = vmatprep.subr.mxu0 0.0
      %3041 = vmatpush1.msra.mxu0 0.0
      %3042 = vmatprep.subr.mxu0 0.0
      %3043 = vmatpush1.msra.mxu0 %v3010
      %3044 = vmatprep.subr.mxu0 0.0
      %3045 = vmatpush2.msra.mxu0 0.0
      %3046 = vmatprep.subr.mxu0 0.0
      %3047 = vmatpush2.msra.mxu0 0.0
      %3048 = vmatprep.subr.mxu0 0.0
      %3049 = vmatpush2.msra.mxu0 0.0
      %3050 = vmatprep.subr.mxu0 0.0
      %3051 = vmatpush2.msra.mxu0 0.0
      %3052 = vmatprep.subr.mxu0 0.0
      %3053 = vmatpush2.msra.mxu0 0.0
      %3054 = vmatprep.subr.mxu0 0.0
      %3055 = vmatpush2.msra.mxu0 0.0
      %3056 = vmatprep.subr.mxu0 0.0
      %3057 = vmatpush2.msra.mxu0 0.0
      %3058 = vmatprep.subr.mxu0 0.0
      %3059 = vmatpush2.msra.mxu0 0.0
      %3060 = vmatprep.subr.mxu0 0.0
      %3061 = vmatpush2.msra.mxu0 0.0
      %3062 = vmatprep.subr.mxu0 0.0
      %3063 = vmatpush2.msra.mxu0 0.0
      %3064 = vmatprep.subr.mxu0 0.0
      %3065 = vmatpush2.msra.mxu0 0.0
      %3066 = vmatprep.subr.mxu0 0.0
      %3067 = vmatpush2.msra.mxu0 0.0
      %3068 = vmatprep.subr.mxu0 0.0
      %3069 = vmatpush2.msra.mxu0 0.0
      %3070 = vmatprep.subr.mxu0 0.0
      %3071 = vmatpush2.msra.mxu0 0.0
      %3072 = vmatprep.subr.mxu0 0.0
      %3073 = vmatpush2.msra.mxu0 0.0
      %3074 = vmatprep.subr.mxu0 0.0
      %3075 = vmatpush2.msra.mxu0 0.0
      %3076 = vmatprep.mubr.f32.mxu0 0.0
      %3077 = vmatmul.mubr.f32.gmra.mxu0 %v2914
      %v3078 = vpop.f32.mrf.mxu0
      %v3079 = vadd.f32 0.0, %v3078
      %v3080 = vpop.f32.mrf.mxu0
      %3081 = vmatprep.mubr.f32.mxu0 0.0
      %3082 = vmatmul.mubr.f32.gmra.mxu0 %v2917
      %v3083 = vpop.f32.mrf.mxu0
      %v3084 = vadd.f32 0.0, %v3083
      %v3085 = vpop.f32.mrf.mxu0
      %3086 = vmatprep.mubr.f32.mxu0 0.0
      %3087 = vmatmul.mubr.f32.gmra.mxu0 %v2920
      %v3088 = vpop.f32.mrf.mxu0
      %v3089 = vadd.f32 0.0, %v3088
      %v3090 = vpop.f32.mrf.mxu0
      %3091 = vmatprep.mubr.f32.mxu0 0.0
      %3092 = vmatmul.mubr.f32.gmra.mxu0 %v2923
      %v3093 = vpop.f32.mrf.mxu0
      %v3094 = vadd.f32 0.0, %v3093
      %v3095 = vpop.f32.mrf.mxu0
      %3096 = vmatprep.mubr.f32.mxu0 0.0
      %3097 = vmatmul.mubr.f32.gmra.mxu0 %v2926
      %v3098 = vpop.f32.mrf.mxu0
      %v3099 = vadd.f32 0.0, %v3098
      %v3100 = vpop.f32.mrf.mxu0
      %3101 = vmatprep.mubr.f32.mxu0 0.0
      %3102 = vmatmul.mubr.f32.gmra.mxu0 %v2929
      %v3103 = vpop.f32.mrf.mxu0
      %v3104 = vadd.f32 0.0, %v3103
      %v3105 = vpop.f32.mrf.mxu0
      %3106 = vmatprep.mubr.f32.mxu0 0.0
      %3107 = vmatmul.mubr.f32.gmra.mxu0 %v2932
      %v3108 = vpop.f32.mrf.mxu0
      %v3109 = vadd.f32 0.0, %v3108
      %v3110 = vpop.f32.mrf.mxu0
      %3111 = vmatprep.mubr.f32.mxu0 0.0
      %3112 = vmatmul.mubr.f32.gmra.mxu0 %v2935
      %v3113 = vpop.f32.mrf.mxu0
      %v3114 = vadd.f32 0.0, %v3113
      %v3115 = vpop.f32.mrf.mxu0
      %3116 = vmatprep.mubr.f32.mxu0 0.0
      %3117 = vmatmul.mubr.f32.gmra.mxu0 %v2938
      %v3118 = vpop.f32.mrf.mxu0
      %v3119 = vadd.f32 0.0, %v3118
      %v3120 = vpop.f32.mrf.mxu0
      %3121 = vmatprep.mubr.f32.mxu0 0.0
      %3122 = vmatmul.mubr.f32.gmra.mxu0 %v2941
      %v3123 = vpop.f32.mrf.mxu0
      %v3124 = vadd.f32 0.0, %v3123
      %v3125 = vpop.f32.mrf.mxu0
      %3126 = vmatprep.mubr.f32.mxu0 0.0
      %3127 = vmatmul.mubr.f32.gmra.mxu0 %v2944
      %v3128 = vpop.f32.mrf.mxu0
      %v3129 = vadd.f32 0.0, %v3128
      %v3130 = vpop.f32.mrf.mxu0
      %3131 = vmatprep.mubr.f32.mxu0 0.0
      %3132 = vmatmul.mubr.f32.gmra.mxu0 %v2947
      %v3133 = vpop.f32.mrf.mxu0
      %v3134 = vadd.f32 0.0, %v3133
      %v3135 = vpop.f32.mrf.mxu0
      %3136 = vmatprep.mubr.f32.mxu0 0.0
      %3137 = vmatmul.mubr.f32.gmra.mxu0 %v2950
      %v3138 = vpop.f32.mrf.mxu0
      %v3139 = vadd.f32 0.0, %v3138
      %v3140 = vpop.f32.mrf.mxu0
      %3141 = vmatprep.mubr.f32.mxu0 0.0
      %3142 = vmatmul.mubr.f32.gmra.mxu0 %v2953
      %v3143 = vpop.f32.mrf.mxu0
      %v3144 = vadd.f32 0.0, %v3143
      %v3145 = vpop.f32.mrf.mxu0
      %3146 = vmatprep.mubr.f32.mxu0 0.0
      %3147 = vmatmul.mubr.f32.gmra.mxu0 %v2956
      %v3148 = vpop.f32.mrf.mxu0
      %v3149 = vadd.f32 0.0, %v3148
      %v3150 = vpop.f32.mrf.mxu0
      %3151 = vmatprep.mubr.f32.mxu0 0.0
      %3152 = vmatmul.mubr.f32.gmra.mxu0 %v2959
      %v3153 = vpop.f32.mrf.mxu0
      %v3154 = vadd.f32 0.0, %v3153
      %v3155 = vpop.f32.mrf.mxu0
      %3156 = vmatprep.mubr.f32.mxu0 0.0
      %3157 = vmatmul.mubr.f32.gmra.mxu0 %v2962
      %v3158 = vpop.f32.mrf.mxu0
      %v3159 = vadd.f32 0.0, %v3158
      %v3160 = vpop.f32.mrf.mxu0
      %3161 = vmatprep.mubr.f32.mxu0 0.0
      %3162 = vmatmul.mubr.f32.gmra.mxu0 %v2965
      %v3163 = vpop.f32.mrf.mxu0
      %v3164 = vadd.f32 0.0, %v3163
      %v3165 = vpop.f32.mrf.mxu0
      %3166 = vmatprep.mubr.f32.mxu0 0.0
      %3167 = vmatmul.mubr.f32.gmra.mxu0 %v2968
      %v3168 = vpop.f32.mrf.mxu0
      %v3169 = vadd.f32 0.0, %v3168
      %v3170 = vpop.f32.mrf.mxu0
      %3171 = vmatprep.mubr.f32.mxu0 0.0
      %3172 = vmatmul.mubr.f32.gmra.mxu0 %v2971
      %v3173 = vpop.f32.mrf.mxu0
      %v3174 = vadd.f32 0.0, %v3173
      %v3175 = vpop.f32.mrf.mxu0
      %3176 = vmatprep.mubr.f32.mxu0 0.0
      %3177 = vmatmul.mubr.f32.gmra.mxu0 %v2974
      %v3178 = vpop.f32.mrf.mxu0
      %v3179 = vadd.f32 0.0, %v3178
      %v3180 = vpop.f32.mrf.mxu0
      %3181 = vmatprep.mubr.f32.mxu0 0.0
      %3182 = vmatmul.mubr.f32.gmra.mxu0 %v2977
      %v3183 = vpop.f32.mrf.mxu0
      %v3184 = vadd.f32 0.0, %v3183
      %v3185 = vpop.f32.mrf.mxu0
      %3186 = vmatprep.mubr.f32.mxu0 0.0
      %3187 = vmatmul.mubr.f32.gmra.mxu0 %v2980
      %v3188 = vpop.f32.mrf.mxu0
      %v3189 = vadd.f32 0.0, %v3188
      %v3190 = vpop.f32.mrf.mxu0
      %3191 = vmatprep.mubr.f32.mxu0 0.0
      %3192 = vmatmul.mubr.f32.gmra.mxu0 %v2983
      %v3193 = vpop.f32.mrf.mxu0
      %v3194 = vadd.f32 0.0, %v3193
      %v3195 = vpop.f32.mrf.mxu0
      %3196 = vmatprep.mubr.f32.mxu0 0.0
      %3197 = vmatmul.mubr.f32.gmra.mxu0 %v2986
      %v3198 = vpop.f32.mrf.mxu0
      %v3199 = vadd.f32 0.0, %v3198
      %v3200 = vpop.f32.mrf.mxu0
      %3201 = vmatprep.mubr.f32.mxu0 0.0
      %3202 = vmatmul.mubr.f32.gmra.mxu0 %v2989
      %v3203 = vpop.f32.mrf.mxu0
      %v3204 = vadd.f32 0.0, %v3203
      %v3205 = vpop.f32.mrf.mxu0
      %3206 = vmatprep.mubr.f32.mxu0 0.0
      %3207 = vmatmul.mubr.f32.gmra.mxu0 %v2992
      %v3208 = vpop.f32.mrf.mxu0
      %v3209 = vadd.f32 0.0, %v3208
      %v3210 = vpop.f32.mrf.mxu0
      %3211 = vmatprep.mubr.f32.mxu0 0.0
      %3212 = vmatmul.mubr.f32.gmra.mxu0 %v2995
      %v3213 = vpop.f32.mrf.mxu0
      %v3214 = vadd.f32 0.0, %v3213
      %v3215 = vpop.f32.mrf.mxu0
      %3216 = vmatprep.mubr.f32.mxu0 0.0
      %3217 = vmatmul.mubr.f32.gmra.mxu0 %v2998
      %v3218 = vpop.f32.mrf.mxu0
      %v3219 = vadd.f32 0.0, %v3218
      %v3220 = vpop.f32.mrf.mxu0
      %3221 = vmatprep.mubr.f32.mxu0 0.0
      %3222 = vmatmul.mubr.f32.gmra.mxu0 %v3001
      %v3223 = vpop.f32.mrf.mxu0
      %v3224 = vadd.f32 0.0, %v3223
      %v3225 = vpop.f32.mrf.mxu0
      %3226 = vmatprep.mubr.f32.mxu0 0.0
      %3227 = vmatmul.mubr.f32.gmra.mxu0 %v3004
      %v3228 = vpop.f32.mrf.mxu0
      %v3229 = vadd.f32 0.0, %v3228
      %v3230 = vpop.f32.mrf.mxu0
      %3231 = vmatprep.mubr.f32.mxu0 0.0
      %3232 = vmatmul.mubr.f32.gmra.mxu0 %v3007
      %v3233 = vpop.f32.mrf.mxu0
      %v3234 = vadd.f32 0.0, %v3233
      %v3235 = vpop.f32.mrf.mxu0
      %3236 = vdwg.mxu0
      %v3237 = vadd.f32 %v2847, %v3079
      %v3238 = vadd.f32 %v2848, %v3084
      %v3239 = vadd.f32 %v2849, %v3089
      %v3240 = vadd.f32 %v2850, %v3094
      %v3241 = vadd.f32 %v2851, %v3099
      %v3242 = vadd.f32 %v2852, %v3104
      %v3243 = vadd.f32 %v2853, %v3109
      %v3244 = vadd.f32 %v2854, %v3114
      %v3245 = vadd.f32 %v2855, %v3119
      %v3246 = vadd.f32 %v2856, %v3124
      %v3247 = vadd.f32 %v2857, %v3129
      %v3248 = vadd.f32 %v2858, %v3134
      %v3249 = vadd.f32 %v2859, %v3139
      %v3250 = vadd.f32 %v2860, %v3144
      %v3251 = vadd.f32 %v2861, %v3149
      %v3252 = vadd.f32 %v2862, %v3154
      %v3253 = vadd.f32 %v2863, %v3159
      %v3254 = vadd.f32 %v2864, %v3164
      %v3255 = vadd.f32 %v2865, %v3169
      %v3256 = vadd.f32 %v2866, %v3174
      %v3257 = vadd.f32 %v2867, %v3179
      %v3258 = vadd.f32 %v2868, %v3184
      %v3259 = vadd.f32 %v2869, %v3189
      %v3260 = vadd.f32 %v2870, %v3194
      %v3261 = vadd.f32 %v2871, %v3199
      %v3262 = vadd.f32 %v2872, %v3204
      %v3263 = vadd.f32 %v2873, %v3209
      %v3264 = vadd.f32 %v2874, %v3214
      %v3265 = vadd.f32 %v2875, %v3219
      %v3266 = vadd.f32 %v2876, %v3224
      %v3267 = vadd.f32 %v2877, %v3229
      %v3268 = vadd.f32 %v2878, %v3234
      %v3269 = vld [vmem:[%s2488 + $0x2] sm:$0xff]
      %v3270 = vld [vmem:[%s2488 + $0xa] sm:$0xff]
      %v3271 = vld [vmem:[%s2488 + $0x1a] sm:$0xff]
      %v3272 = vld [vmem:[%s2488 + $0x22] sm:$0xff]
      %v3273 = vld [vmem:[%s2488 + $0x32] sm:$0xff]
      %v3274 = vld [vmem:[%s2488 + $0x3a] sm:$0xff]
      %v3275 = vld [vmem:[%s2488 + $0x4a] sm:$0xff]
      %v3276 = vld [vmem:[%s2488 + $0x52] sm:$0xff]
      %v3277 = vld [vmem:[%s2488 + $0x62] sm:$0xff]
      %v3278 = vld [vmem:[%s2488 + $0x6a] sm:$0xff]
      %v3279 = vld [vmem:[%s2488 + $0x7a] sm:$0xff]
      %v3280 = vld [vmem:[%s2488 + $0x82] sm:$0xff]
      %v3281 = vld [vmem:[%s2488 + $0x92] sm:$0xff]
      %v3282 = vld [vmem:[%s2488 + $0x9a] sm:$0xff]
      %v3283 = vld [vmem:[%s2488 + $0xaa] sm:$0xff]
      %v3284 = vld [vmem:[%s2488 + $0xb2] sm:$0xff]
      %v3285 = vld [vmem:[%s2488 + $0xc2] sm:$0xff]
      %v3286 = vld [vmem:[%s2488 + $0xca] sm:$0xff]
      %v3287 = vld [vmem:[%s2488 + $0xda] sm:$0xff]
      %v3288 = vld [vmem:[%s2488 + $0xe2] sm:$0xff]
      %v3289 = vld [vmem:[%s2488 + $0xf2] sm:$0xff]
      %v3290 = vld [vmem:[%s2488 + $0xfa] sm:$0xff]
      %v3291 = vld [vmem:[%s2488 + $0x10a] sm:$0xff]
      %v3292 = vld [vmem:[%s2488 + $0x112] sm:$0xff]
      %v3293 = vld [vmem:[%s2488 + $0x122] sm:$0xff]
      %v3294 = vld [vmem:[%s2488 + $0x12a] sm:$0xff]
      %v3295 = vld [vmem:[%s2488 + $0x13a] sm:$0xff]
      %v3296 = vld [vmem:[%s2488 + $0x142] sm:$0xff]
      %v3297 = vld [vmem:[%s2488 + $0x152] sm:$0xff]
      %v3298 = vld [vmem:[%s2488 + $0x15a] sm:$0xff]
      %v3299 = vld [vmem:[%s2488 + $0x16a] sm:$0xff]
      %v3300 = vld [vmem:[%s2488 + $0x172] sm:$0xff]
      %s3301 = scalar_lea.vmem %s1, 32
      %v3302 = vld [vmem:[%s3301] sm:$0xf]
      %v3304 = vsel %vm310, %v3269, 0
      %v3307 = vsel %vm310, %v3270, 0
      %v3310 = vsel %vm310, %v3271, 0
      %v3313 = vsel %vm310, %v3272, 0
      %v3316 = vsel %vm310, %v3273, 0
      %v3319 = vsel %vm310, %v3274, 0
      %v3322 = vsel %vm310, %v3275, 0
      %v3325 = vsel %vm310, %v3276, 0
      %v3328 = vsel %vm310, %v3277, 0
      %v3331 = vsel %vm310, %v3278, 0
      %v3334 = vsel %vm310, %v3279, 0
      %v3337 = vsel %vm310, %v3280, 0
      %v3340 = vsel %vm310, %v3281, 0
      %v3343 = vsel %vm310, %v3282, 0
      %v3346 = vsel %vm310, %v3283, 0
      %v3349 = vsel %vm310, %v3284, 0
      %v3352 = vsel %vm310, %v3285, 0
      %v3355 = vsel %vm310, %v3286, 0
      %v3358 = vsel %vm310, %v3287, 0
      %v3361 = vsel %vm310, %v3288, 0
      %v3364 = vsel %vm310, %v3289, 0
      %v3367 = vsel %vm310, %v3290, 0
      %v3370 = vsel %vm310, %v3291, 0
      %v3373 = vsel %vm310, %v3292, 0
      %v3376 = vsel %vm310, %v3293, 0
      %v3379 = vsel %vm310, %v3294, 0
      %v3382 = vsel %vm310, %v3295, 0
      %v3385 = vsel %vm310, %v3296, 0
      %v3388 = vsel %vm310, %v3297, 0
      %v3391 = vsel %vm310, %v3298, 0
      %v3394 = vsel %vm310, %v3299, 0
      %v3397 = vsel %vm310, %v3300, 0
      %v3400 = vsel %vm407, %v3302, 0
      %3402 = vmatprep.subr.mxu0 0.0
      %3403 = vmatpush1.msra.mxu0 0.0
      %3404 = vmatprep.subr.mxu0 0.0
      %3405 = vmatpush1.msra.mxu0 0.0
      %3406 = vmatprep.subr.mxu0 0.0
      %3407 = vmatpush1.msra.mxu0 0.0
      %3408 = vmatprep.subr.mxu0 0.0
      %3409 = vmatpush1.msra.mxu0 0.0
      %3410 = vmatprep.subr.mxu0 0.0
      %3411 = vmatpush1.msra.mxu0 0.0
      %3412 = vmatprep.subr.mxu0 0.0
      %3413 = vmatpush1.msra.mxu0 0.0
      %3414 = vmatprep.subr.mxu0 0.0
      %3415 = vmatpush1.msra.mxu0 0.0
      %3416 = vmatprep.subr.mxu0 0.0
      %3417 = vmatpush1.msra.mxu0 0.0
      %3418 = vmatprep.subr.mxu0 0.0
      %3419 = vmatpush1.msra.mxu0 0.0
      %3420 = vmatprep.subr.mxu0 0.0
      %3421 = vmatpush1.msra.mxu0 0.0
      %3422 = vmatprep.subr.mxu0 0.0
      %3423 = vmatpush1.msra.mxu0 0.0
      %3424 = vmatprep.subr.mxu0 0.0
      %3425 = vmatpush1.msra.mxu0 0.0
      %3426 = vmatprep.subr.mxu0 0.0
      %3427 = vmatpush1.msra.mxu0 0.0
      %3428 = vmatprep.subr.mxu0 0.0
      %3429 = vmatpush1.msra.mxu0 0.0
      %3430 = vmatprep.subr.mxu0 0.0
      %3431 = vmatpush1.msra.mxu0 0.0
      %3432 = vmatprep.subr.mxu0 0.0
      %3433 = vmatpush1.msra.mxu0 %v3400
      %3434 = vmatprep.subr.mxu0 0.0
      %3435 = vmatpush2.msra.mxu0 0.0
      %3436 = vmatprep.subr.mxu0 0.0
      %3437 = vmatpush2.msra.mxu0 0.0
      %3438 = vmatprep.subr.mxu0 0.0
      %3439 = vmatpush2.msra.mxu0 0.0
      %3440 = vmatprep.subr.mxu0 0.0
      %3441 = vmatpush2.msra.mxu0 0.0
      %3442 = vmatprep.subr.mxu0 0.0
      %3443 = vmatpush2.msra.mxu0 0.0
      %3444 = vmatprep.subr.mxu0 0.0
      %3445 = vmatpush2.msra.mxu0 0.0
      %3446 = vmatprep.subr.mxu0 0.0
      %3447 = vmatpush2.msra.mxu0 0.0
      %3448 = vmatprep.subr.mxu0 0.0
      %3449 = vmatpush2.msra.mxu0 0.0
      %3450 = vmatprep.subr.mxu0 0.0
      %3451 = vmatpush2.msra.mxu0 0.0
      %3452 = vmatprep.subr.mxu0 0.0
      %3453 = vmatpush2.msra.mxu0 0.0
      %3454 = vmatprep.subr.mxu0 0.0
      %3455 = vmatpush2.msra.mxu0 0.0
      %3456 = vmatprep.subr.mxu0 0.0
      %3457 = vmatpush2.msra.mxu0 0.0
      %3458 = vmatprep.subr.mxu0 0.0
      %3459 = vmatpush2.msra.mxu0 0.0
      %3460 = vmatprep.subr.mxu0 0.0
      %3461 = vmatpush2.msra.mxu0 0.0
      %3462 = vmatprep.subr.mxu0 0.0
      %3463 = vmatpush2.msra.mxu0 0.0
      %3464 = vmatprep.subr.mxu0 0.0
      %3465 = vmatpush2.msra.mxu0 0.0
      %3466 = vmatprep.mubr.f32.mxu0 0.0
      %3467 = vmatmul.mubr.f32.gmra.mxu0 %v3304
      %v3468 = vpop.f32.mrf.mxu0
      %v3469 = vadd.f32 0.0, %v3468
      %v3470 = vpop.f32.mrf.mxu0
      %3471 = vmatprep.mubr.f32.mxu0 0.0
      %3472 = vmatmul.mubr.f32.gmra.mxu0 %v3307
      %v3473 = vpop.f32.mrf.mxu0
      %v3474 = vadd.f32 0.0, %v3473
      %v3475 = vpop.f32.mrf.mxu0
      %3476 = vmatprep.mubr.f32.mxu0 0.0
      %3477 = vmatmul.mubr.f32.gmra.mxu0 %v3310
      %v3478 = vpop.f32.mrf.mxu0
      %v3479 = vadd.f32 0.0, %v3478
      %v3480 = vpop.f32.mrf.mxu0
      %3481 = vmatprep.mubr.f32.mxu0 0.0
      %3482 = vmatmul.mubr.f32.gmra.mxu0 %v3313
      %v3483 = vpop.f32.mrf.mxu0
      %v3484 = vadd.f32 0.0, %v3483
      %v3485 = vpop.f32.mrf.mxu0
      %3486 = vmatprep.mubr.f32.mxu0 0.0
      %3487 = vmatmul.mubr.f32.gmra.mxu0 %v3316
      %v3488 = vpop.f32.mrf.mxu0
      %v3489 = vadd.f32 0.0, %v3488
      %v3490 = vpop.f32.mrf.mxu0
      %3491 = vmatprep.mubr.f32.mxu0 0.0
      %3492 = vmatmul.mubr.f32.gmra.mxu0 %v3319
      %v3493 = vpop.f32.mrf.mxu0
      %v3494 = vadd.f32 0.0, %v3493
      %v3495 = vpop.f32.mrf.mxu0
      %3496 = vmatprep.mubr.f32.mxu0 0.0
      %3497 = vmatmul.mubr.f32.gmra.mxu0 %v3322
      %v3498 = vpop.f32.mrf.mxu0
      %v3499 = vadd.f32 0.0, %v3498
      %v3500 = vpop.f32.mrf.mxu0
      %3501 = vmatprep.mubr.f32.mxu0 0.0
      %3502 = vmatmul.mubr.f32.gmra.mxu0 %v3325
      %v3503 = vpop.f32.mrf.mxu0
      %v3504 = vadd.f32 0.0, %v3503
      %v3505 = vpop.f32.mrf.mxu0
      %3506 = vmatprep.mubr.f32.mxu0 0.0
      %3507 = vmatmul.mubr.f32.gmra.mxu0 %v3328
      %v3508 = vpop.f32.mrf.mxu0
      %v3509 = vadd.f32 0.0, %v3508
      %v3510 = vpop.f32.mrf.mxu0
      %3511 = vmatprep.mubr.f32.mxu0 0.0
      %3512 = vmatmul.mubr.f32.gmra.mxu0 %v3331
      %v3513 = vpop.f32.mrf.mxu0
      %v3514 = vadd.f32 0.0, %v3513
      %v3515 = vpop.f32.mrf.mxu0
      %3516 = vmatprep.mubr.f32.mxu0 0.0
      %3517 = vmatmul.mubr.f32.gmra.mxu0 %v3334
      %v3518 = vpop.f32.mrf.mxu0
      %v3519 = vadd.f32 0.0, %v3518
      %v3520 = vpop.f32.mrf.mxu0
      %3521 = vmatprep.mubr.f32.mxu0 0.0
      %3522 = vmatmul.mubr.f32.gmra.mxu0 %v3337
      %v3523 = vpop.f32.mrf.mxu0
      %v3524 = vadd.f32 0.0, %v3523
      %v3525 = vpop.f32.mrf.mxu0
      %3526 = vmatprep.mubr.f32.mxu0 0.0
      %3527 = vmatmul.mubr.f32.gmra.mxu0 %v3340
      %v3528 = vpop.f32.mrf.mxu0
      %v3529 = vadd.f32 0.0, %v3528
      %v3530 = vpop.f32.mrf.mxu0
      %3531 = vmatprep.mubr.f32.mxu0 0.0
      %3532 = vmatmul.mubr.f32.gmra.mxu0 %v3343
      %v3533 = vpop.f32.mrf.mxu0
      %v3534 = vadd.f32 0.0, %v3533
      %v3535 = vpop.f32.mrf.mxu0
      %3536 = vmatprep.mubr.f32.mxu0 0.0
      %3537 = vmatmul.mubr.f32.gmra.mxu0 %v3346
      %v3538 = vpop.f32.mrf.mxu0
      %v3539 = vadd.f32 0.0, %v3538
      %v3540 = vpop.f32.mrf.mxu0
      %3541 = vmatprep.mubr.f32.mxu0 0.0
      %3542 = vmatmul.mubr.f32.gmra.mxu0 %v3349
      %v3543 = vpop.f32.mrf.mxu0
      %v3544 = vadd.f32 0.0, %v3543
      %v3545 = vpop.f32.mrf.mxu0
      %3546 = vmatprep.mubr.f32.mxu0 0.0
      %3547 = vmatmul.mubr.f32.gmra.mxu0 %v3352
      %v3548 = vpop.f32.mrf.mxu0
      %v3549 = vadd.f32 0.0, %v3548
      %v3550 = vpop.f32.mrf.mxu0
      %3551 = vmatprep.mubr.f32.mxu0 0.0
      %3552 = vmatmul.mubr.f32.gmra.mxu0 %v3355
      %v3553 = vpop.f32.mrf.mxu0
      %v3554 = vadd.f32 0.0, %v3553
      %v3555 = vpop.f32.mrf.mxu0
      %3556 = vmatprep.mubr.f32.mxu0 0.0
      %3557 = vmatmul.mubr.f32.gmra.mxu0 %v3358
      %v3558 = vpop.f32.mrf.mxu0
      %v3559 = vadd.f32 0.0, %v3558
      %v3560 = vpop.f32.mrf.mxu0
      %3561 = vmatprep.mubr.f32.mxu0 0.0
      %3562 = vmatmul.mubr.f32.gmra.mxu0 %v3361
      %v3563 = vpop.f32.mrf.mxu0
      %v3564 = vadd.f32 0.0, %v3563
      %v3565 = vpop.f32.mrf.mxu0
      %3566 = vmatprep.mubr.f32.mxu0 0.0
      %3567 = vmatmul.mubr.f32.gmra.mxu0 %v3364
      %v3568 = vpop.f32.mrf.mxu0
      %v3569 = vadd.f32 0.0, %v3568
      %v3570 = vpop.f32.mrf.mxu0
      %3571 = vmatprep.mubr.f32.mxu0 0.0
      %3572 = vmatmul.mubr.f32.gmra.mxu0 %v3367
      %v3573 = vpop.f32.mrf.mxu0
      %v3574 = vadd.f32 0.0, %v3573
      %v3575 = vpop.f32.mrf.mxu0
      %3576 = vmatprep.mubr.f32.mxu0 0.0
      %3577 = vmatmul.mubr.f32.gmra.mxu0 %v3370
      %v3578 = vpop.f32.mrf.mxu0
      %v3579 = vadd.f32 0.0, %v3578
      %v3580 = vpop.f32.mrf.mxu0
      %3581 = vmatprep.mubr.f32.mxu0 0.0
      %3582 = vmatmul.mubr.f32.gmra.mxu0 %v3373
      %v3583 = vpop.f32.mrf.mxu0
      %v3584 = vadd.f32 0.0, %v3583
      %v3585 = vpop.f32.mrf.mxu0
      %3586 = vmatprep.mubr.f32.mxu0 0.0
      %3587 = vmatmul.mubr.f32.gmra.mxu0 %v3376
      %v3588 = vpop.f32.mrf.mxu0
      %v3589 = vadd.f32 0.0, %v3588
      %v3590 = vpop.f32.mrf.mxu0
      %3591 = vmatprep.mubr.f32.mxu0 0.0
      %3592 = vmatmul.mubr.f32.gmra.mxu0 %v3379
      %v3593 = vpop.f32.mrf.mxu0
      %v3594 = vadd.f32 0.0, %v3593
      %v3595 = vpop.f32.mrf.mxu0
      %3596 = vmatprep.mubr.f32.mxu0 0.0
      %3597 = vmatmul.mubr.f32.gmra.mxu0 %v3382
      %v3598 = vpop.f32.mrf.mxu0
      %v3599 = vadd.f32 0.0, %v3598
      %v3600 = vpop.f32.mrf.mxu0
      %3601 = vmatprep.mubr.f32.mxu0 0.0
      %3602 = vmatmul.mubr.f32.gmra.mxu0 %v3385
      %v3603 = vpop.f32.mrf.mxu0
      %v3604 = vadd.f32 0.0, %v3603
      %v3605 = vpop.f32.mrf.mxu0
      %3606 = vmatprep.mubr.f32.mxu0 0.0
      %3607 = vmatmul.mubr.f32.gmra.mxu0 %v3388
      %v3608 = vpop.f32.mrf.mxu0
      %v3609 = vadd.f32 0.0, %v3608
      %v3610 = vpop.f32.mrf.mxu0
      %3611 = vmatprep.mubr.f32.mxu0 0.0
      %3612 = vmatmul.mubr.f32.gmra.mxu0 %v3391
      %v3613 = vpop.f32.mrf.mxu0
      %v3614 = vadd.f32 0.0, %v3613
      %v3615 = vpop.f32.mrf.mxu0
      %3616 = vmatprep.mubr.f32.mxu0 0.0
      %3617 = vmatmul.mubr.f32.gmra.mxu0 %v3394
      %v3618 = vpop.f32.mrf.mxu0
      %v3619 = vadd.f32 0.0, %v3618
      %v3620 = vpop.f32.mrf.mxu0
      %3621 = vmatprep.mubr.f32.mxu0 0.0
      %3622 = vmatmul.mubr.f32.gmra.mxu0 %v3397
      %v3623 = vpop.f32.mrf.mxu0
      %v3624 = vadd.f32 0.0, %v3623
      %v3625 = vpop.f32.mrf.mxu0
      %3626 = vdwg.mxu0
      %v3627 = vadd.f32 %v3237, %v3469
      %v3628 = vadd.f32 %v3238, %v3474
      %v3629 = vadd.f32 %v3239, %v3479
      %v3630 = vadd.f32 %v3240, %v3484
      %v3631 = vadd.f32 %v3241, %v3489
      %v3632 = vadd.f32 %v3242, %v3494
      %v3633 = vadd.f32 %v3243, %v3499
      %v3634 = vadd.f32 %v3244, %v3504
      %v3635 = vadd.f32 %v3245, %v3509
      %v3636 = vadd.f32 %v3246, %v3514
      %v3637 = vadd.f32 %v3247, %v3519
      %v3638 = vadd.f32 %v3248, %v3524
      %v3639 = vadd.f32 %v3249, %v3529
      %v3640 = vadd.f32 %v3250, %v3534
      %v3641 = vadd.f32 %v3251, %v3539
      %v3642 = vadd.f32 %v3252, %v3544
      %v3643 = vadd.f32 %v3253, %v3549
      %v3644 = vadd.f32 %v3254, %v3554
      %v3645 = vadd.f32 %v3255, %v3559
      %v3646 = vadd.f32 %v3256, %v3564
      %v3647 = vadd.f32 %v3257, %v3569
      %v3648 = vadd.f32 %v3258, %v3574
      %v3649 = vadd.f32 %v3259, %v3579
      %v3650 = vadd.f32 %v3260, %v3584
      %v3651 = vadd.f32 %v3261, %v3589
      %v3652 = vadd.f32 %v3262, %v3594
      %v3653 = vadd.f32 %v3263, %v3599
      %v3654 = vadd.f32 %v3264, %v3604
      %v3655 = vadd.f32 %v3265, %v3609
      %v3656 = vadd.f32 %v3266, %v3614
      %v3657 = vadd.f32 %v3267, %v3619
      %v3658 = vadd.f32 %v3268, %v3624
      %v3659 = vld [vmem:[%s2] sm:$0x1]
      %v3661 = vlaneseq
      %v3662 = vshrl.u32 %v3661, 7
      %v3663 = vsub.s32 0, %v3662
      %v3664 = vrot.slane %v3659, %v3663
      %v3666 = vadd.f32 %v3627, %v3664
      %v3667 = vadd.f32 %v3628, %v3664
      %v3668 = vadd.f32 %v3629, %v3664
      %v3669 = vadd.f32 %v3630, %v3664
      %v3670 = vadd.f32 %v3631, %v3664
      %v3671 = vadd.f32 %v3632, %v3664
      %v3672 = vadd.f32 %v3633, %v3664
      %v3673 = vadd.f32 %v3634, %v3664
      %v3674 = vadd.f32 %v3635, %v3664
      %v3675 = vadd.f32 %v3636, %v3664
      %v3676 = vadd.f32 %v3637, %v3664
      %v3677 = vadd.f32 %v3638, %v3664
      %v3678 = vadd.f32 %v3639, %v3664
      %v3679 = vadd.f32 %v3640, %v3664
      %v3680 = vadd.f32 %v3641, %v3664
      %v3681 = vadd.f32 %v3642, %v3664
      %v3682 = vadd.f32 %v3643, %v3664
      %v3683 = vadd.f32 %v3644, %v3664
      %v3684 = vadd.f32 %v3645, %v3664
      %v3685 = vadd.f32 %v3646, %v3664
      %v3686 = vadd.f32 %v3647, %v3664
      %v3687 = vadd.f32 %v3648, %v3664
      %v3688 = vadd.f32 %v3649, %v3664
      %v3689 = vadd.f32 %v3650, %v3664
      %v3690 = vadd.f32 %v3651, %v3664
      %v3691 = vadd.f32 %v3652, %v3664
      %v3692 = vadd.f32 %v3653, %v3664
      %v3693 = vadd.f32 %v3654, %v3664
      %v3694 = vadd.f32 %v3655, %v3664
      %v3695 = vadd.f32 %v3656, %v3664
      %v3696 = vadd.f32 %v3657, %v3664
      %v3697 = vadd.f32 %v3658, %v3664
      %v3698 = vmax.f32 %v3666, 0.0
      %v3699 = vmax.f32 %v3667, 0.0
      %v3700 = vmax.f32 %v3668, 0.0
      %v3701 = vmax.f32 %v3669, 0.0
      %v3702 = vmax.f32 %v3670, 0.0
      %v3703 = vmax.f32 %v3671, 0.0
      %v3704 = vmax.f32 %v3672, 0.0
      %v3705 = vmax.f32 %v3673, 0.0
      %v3706 = vmax.f32 %v3674, 0.0
      %v3707 = vmax.f32 %v3675, 0.0
      %v3708 = vmax.f32 %v3676, 0.0
      %v3709 = vmax.f32 %v3677, 0.0
      %v3710 = vmax.f32 %v3678, 0.0
      %v3711 = vmax.f32 %v3679, 0.0
      %v3712 = vmax.f32 %v3680, 0.0
      %v3713 = vmax.f32 %v3681, 0.0
      %v3714 = vmax.f32 %v3682, 0.0
      %v3715 = vmax.f32 %v3683, 0.0
      %v3716 = vmax.f32 %v3684, 0.0
      %v3717 = vmax.f32 %v3685, 0.0
      %v3718 = vmax.f32 %v3686, 0.0
      %v3719 = vmax.f32 %v3687, 0.0
      %v3720 = vmax.f32 %v3688, 0.0
      %v3721 = vmax.f32 %v3689, 0.0
      %v3722 = vmax.f32 %v3690, 0.0
      %v3723 = vmax.f32 %v3691, 0.0
      %v3724 = vmax.f32 %v3692, 0.0
      %v3725 = vmax.f32 %v3693, 0.0
      %v3726 = vmax.f32 %v3694, 0.0
      %v3727 = vmax.f32 %v3695, 0.0
      %v3728 = vmax.f32 %v3696, 0.0
      %v3729 = vmax.f32 %v3697, 0.0
      %3762 = vrot.lane.b32.xlu0 %v3698, 4
      %v3763 = vpop.permute.xlu0 %3762
      %3764 = vrot.lane.b32.xlu0 %v3699, 4
      %v3765 = vpop.permute.xlu0 %3764
      %3766 = vrot.lane.b32.xlu0 %v3700, 4
      %v3767 = vpop.permute.xlu0 %3766
      %3768 = vrot.lane.b32.xlu0 %v3701, 4
      %v3769 = vpop.permute.xlu0 %3768
      %3770 = vrot.lane.b32.xlu0 %v3702, 4
      %v3771 = vpop.permute.xlu0 %3770
      %3772 = vrot.lane.b32.xlu0 %v3703, 4
      %v3773 = vpop.permute.xlu0 %3772
      %3774 = vrot.lane.b32.xlu0 %v3704, 4
      %v3775 = vpop.permute.xlu0 %3774
      %3776 = vrot.lane.b32.xlu0 %v3705, 4
      %v3777 = vpop.permute.xlu0 %3776
      %3778 = vrot.lane.b32.xlu0 %v3706, 4
      %v3779 = vpop.permute.xlu0 %3778
      %3780 = vrot.lane.b32.xlu0 %v3707, 4
      %v3781 = vpop.permute.xlu0 %3780
      %3782 = vrot.lane.b32.xlu0 %v3708, 4
      %v3783 = vpop.permute.xlu0 %3782
      %3784 = vrot.lane.b32.xlu0 %v3709, 4
      %v3785 = vpop.permute.xlu0 %3784
      %3786 = vrot.lane.b32.xlu0 %v3710, 4
      %v3787 = vpop.permute.xlu0 %3786
      %3788 = vrot.lane.b32.xlu0 %v3711, 4
      %v3789 = vpop.permute.xlu0 %3788
      %3790 = vrot.lane.b32.xlu0 %v3712, 4
      %v3791 = vpop.permute.xlu0 %3790
      %3792 = vrot.lane.b32.xlu0 %v3713, 4
      %v3793 = vpop.permute.xlu0 %3792
      %3794 = vrot.lane.b32.xlu0 %v3714, 4
      %v3795 = vpop.permute.xlu0 %3794
      %3796 = vrot.lane.b32.xlu0 %v3715, 4
      %v3797 = vpop.permute.xlu0 %3796
      %3798 = vrot.lane.b32.xlu0 %v3716, 4
      %v3799 = vpop.permute.xlu0 %3798
      %3800 = vrot.lane.b32.xlu0 %v3717, 4
      %v3801 = vpop.permute.xlu0 %3800
      %3802 = vrot.lane.b32.xlu0 %v3718, 4
      %v3803 = vpop.permute.xlu0 %3802
      %3804 = vrot.lane.b32.xlu0 %v3719, 4
      %v3805 = vpop.permute.xlu0 %3804
      %3806 = vrot.lane.b32.xlu0 %v3720, 4
      %v3807 = vpop.permute.xlu0 %3806
      %3808 = vrot.lane.b32.xlu0 %v3721, 4
      %v3809 = vpop.permute.xlu0 %3808
      %3810 = vrot.lane.b32.xlu0 %v3722, 4
      %v3811 = vpop.permute.xlu0 %3810
      %3812 = vrot.lane.b32.xlu0 %v3723, 4
      %v3813 = vpop.permute.xlu0 %3812
      %3814 = vrot.lane.b32.xlu0 %v3724, 4
      %v3815 = vpop.permute.xlu0 %3814
      %3816 = vrot.lane.b32.xlu0 %v3725, 4
      %v3817 = vpop.permute.xlu0 %3816
      %3818 = vrot.lane.b32.xlu0 %v3726, 4
      %v3819 = vpop.permute.xlu0 %3818
      %3820 = vrot.lane.b32.xlu0 %v3727, 4
      %v3821 = vpop.permute.xlu0 %3820
      %3822 = vrot.lane.b32.xlu0 %v3728, 4
      %v3823 = vpop.permute.xlu0 %3822
      %3824 = vrot.lane.b32.xlu0 %v3729, 4
      %v3825 = vpop.permute.xlu0 %3824
      %v3858 = vsel %vm310, %v211, %v3763
      %v3859 = vsel %vm310, %v212, %v3765
      %v3860 = vsel %vm310, %v213, %v3767
      %v3861 = vsel %vm310, %v214, %v3769
      %v3862 = vsel %vm310, %v215, %v3771
      %v3863 = vsel %vm310, %v216, %v3773
      %v3864 = vsel %vm310, %v217, %v3775
      %v3865 = vsel %vm310, %v218, %v3777
      %v3866 = vsel %vm310, %v219, %v3779
      %v3867 = vsel %vm310, %v220, %v3781
      %v3868 = vsel %vm310, %v221, %v3783
      %v3869 = vsel %vm310, %v222, %v3785
      %v3870 = vsel %vm310, %v223, %v3787
      %v3871 = vsel %vm310, %v224, %v3789
      %v3872 = vsel %vm310, %v225, %v3791
      %v3873 = vsel %vm310, %v226, %v3793
      %v3874 = vsel %vm310, %v227, %v3795
      %v3875 = vsel %vm310, %v228, %v3797
      %v3876 = vsel %vm310, %v229, %v3799
      %v3877 = vsel %vm310, %v230, %v3801
      %v3878 = vsel %vm310, %v231, %v3803
      %v3879 = vsel %vm310, %v232, %v3805
      %v3880 = vsel %vm310, %v233, %v3807
      %v3881 = vsel %vm310, %v234, %v3809
      %v3882 = vsel %vm310, %v235, %v3811
      %v3883 = vsel %vm310, %v236, %v3813
      %v3884 = vsel %vm310, %v237, %v3815
      %v3885 = vsel %vm310, %v238, %v3817
      %v3886 = vsel %vm310, %v239, %v3819
      %v3887 = vsel %vm310, %v240, %v3821
      %v3888 = vsel %vm310, %v241, %v3823
      %v3889 = vsel %vm310, %v242, %v3825
      %vm3890 = vcmask 64512
      %3891 = vst.msk [vmem:[%s208] sm:$0xff] %vm3890, %v3858
      %3892 = vst.msk [vmem:[%s208 + $0x8] sm:$0xff] %vm3890, %v3859
      %3893 = vst.msk [vmem:[%s208 + $0x10] sm:$0xff] %vm3890, %v3860
      %3894 = vst.msk [vmem:[%s208 + $0x18] sm:$0xff] %vm3890, %v3861
      %3895 = vst.msk [vmem:[%s208 + $0x20] sm:$0xff] %vm3890, %v3862
      %3896 = vst.msk [vmem:[%s208 + $0x28] sm:$0xff] %vm3890, %v3863
      %3897 = vst.msk [vmem:[%s208 + $0x30] sm:$0xff] %vm3890, %v3864
      %3898 = vst.msk [vmem:[%s208 + $0x38] sm:$0xff] %vm3890, %v3865
      %3899 = vst.msk [vmem:[%s208 + $0x40] sm:$0xff] %vm3890, %v3866
      %3900 = vst.msk [vmem:[%s208 + $0x48] sm:$0xff] %vm3890, %v3867
      %3901 = vst.msk [vmem:[%s208 + $0x50] sm:$0xff] %vm3890, %v3868
      %3902 = vst.msk [vmem:[%s208 + $0x58] sm:$0xff] %vm3890, %v3869
      %3903 = vst.msk [vmem:[%s208 + $0x60] sm:$0xff] %vm3890, %v3870
      %3904 = vst.msk [vmem:[%s208 + $0x68] sm:$0xff] %vm3890, %v3871
      %3905 = vst.msk [vmem:[%s208 + $0x70] sm:$0xff] %vm3890, %v3872
      %3906 = vst.msk [vmem:[%s208 + $0x78] sm:$0xff] %vm3890, %v3873
      %3907 = vst.msk [vmem:[%s208 + $0x80] sm:$0xff] %vm3890, %v3874
      %3908 = vst.msk [vmem:[%s208 + $0x88] sm:$0xff] %vm3890, %v3875
      %3909 = vst.msk [vmem:[%s208 + $0x90] sm:$0xff] %vm3890, %v3876
      %3910 = vst.msk [vmem:[%s208 + $0x98] sm:$0xff] %vm3890, %v3877
      %3911 = vst.msk [vmem:[%s208 + $0xa0] sm:$0xff] %vm3890, %v3878
      %3912 = vst.msk [vmem:[%s208 + $0xa8] sm:$0xff] %vm3890, %v3879
      %3913 = vst.msk [vmem:[%s208 + $0xb0] sm:$0xff] %vm3890, %v3880
      %3914 = vst.msk [vmem:[%s208 + $0xb8] sm:$0xff] %vm3890, %v3881
      %3915 = vst.msk [vmem:[%s208 + $0xc0] sm:$0xff] %vm3890, %v3882
      %3916 = vst.msk [vmem:[%s208 + $0xc8] sm:$0xff] %vm3890, %v3883
      %3917 = vst.msk [vmem:[%s208 + $0xd0] sm:$0xff] %vm3890, %v3884
      %3918 = vst.msk [vmem:[%s208 + $0xd8] sm:$0xff] %vm3890, %v3885
      %3919 = vst.msk [vmem:[%s208 + $0xe0] sm:$0xff] %vm3890, %v3886
      %3920 = vst.msk [vmem:[%s208 + $0xe8] sm:$0xff] %vm3890, %v3887
      %3921 = vst.msk [vmem:[%s208 + $0xf0] sm:$0xff] %vm3890, %v3888
      %3922 = vst.msk [vmem:[%s208 + $0xf8] sm:$0xff] %vm3890, %v3889
      %s3923 = smul.u32 16, %s19
      %p3924 = scmp.lt.s32.totalorder %s18, 1
      %s3925 = scalar_select %p3924, %s18, 1
      %p3926 = scmp.lt.s32.totalorder %s3923, 15
      %s3927 = scalar_select %p3926, %s3923, 15
      %s3928 = smul.addr %s3927, 2
      %s3929 = smul.addr %s3925, 32
      %s3930 = sadd.s32 %s3928, %s3929
      %s3931 = smul.addr %s3930, 8
      %s3932 = scalar_lea.vmem %s3, %s3931
      // Predicated region
      $region33: #{tpu_custom_call.1} parent=31 // pred_check
        %p3933 = pneg %p116
      $region34: #{tpu_custom_call.1} parent=31 // pred_check_branch
        %3935 = sbr.rel (%p3933) target = $region36
      $region35: #{tpu_custom_call.1} parent=31 // pred_region
        %s3936 = smul.u32 16, %s19
      $region36: #{tpu_custom_call.1} parent=31 // pred_fallthru
        _
    $region32: #{tpu_custom_call.1} parent=5 // pred_fallthru
      _
    %p3937 = scmp.le.s32.totalorder 2, %s9
    // Predicated region
    $region37: #{tpu_custom_call.1} parent=5 // pred_check
      %p3938 = pneg %p3937
    $region38: #{tpu_custom_call.1} parent=5 // pred_check_branch
      %3940 = sbr.rel (%p3938) target = $region40
    $region39: #{tpu_custom_call.1} parent=5 // pred_region
      %s3941 = ssub.s32 %s9, 2
      // Predicated region
      $region41: #{tpu_custom_call.1} parent=39 // pred_check
        %p3942 = pneg %p122
      $region42: #{tpu_custom_call.1} parent=39 // pred_check_branch
        %3944 = sbr.rel (%p3942) target = $region44
      $region43: #{tpu_custom_call.1} parent=39 // pred_region
        %s3945 = smul.u32 16, %s21
        %p3946 = scmp.lt.s32.totalorder %s20, 1
        %s3947 = scalar_select %p3946, %s20, 1
        %p3948 = scmp.lt.s32.totalorder %s3945, 15
        %s3949 = scalar_select %p3948, %s3945, 15
        %s3950 = smul.addr %s3949, 2
        %s3951 = smul.addr %s3947, 32
        %s3952 = sadd.s32 %s3950, %s3951
        %s3953 = smul.addr %s3952, 8
        %s3954 = scalar_lea.vmem %s3, %s3953
      $region44: #{tpu_custom_call.1} parent=39 // pred_fallthru
        _
    $region40: #{tpu_custom_call.1} parent=5 // pred_fallthru
      _
  $region6: #{tpu_custom_call.1} parent=0 // loop_footer
    %s13 = sadd.s32 1, %s9
  $region7: #{tpu_custom_call.1} parent=0 // loop_footer_branch
    %8 = sbr.rel target = $region3
  $region8: #{tpu_custom_call.1} parent=0 // loop_exit
    _

</llo_original>
